<compile_context>
chip_gen: v5e
topology: v5e:2x2
jax: 0.10.0
libtpu: 0.0.40
codegen_flags: <defaults>
</compile_context>

<pallas_src>
import math

import jax
import jax.numpy as jnp
from jax.experimental import pallas as pl
from jax.experimental.pallas import tpu as pltpu

# Hard-concrete constants from the L0 paper / new_layers defaults.
GAMMA = -0.1
ZETA = 1.1
DROPRATE_INIT = 0.3
QZ_LOGA_MEAN = math.log(1.0 - DROPRATE_INIT) - math.log(DROPRATE_INIT)


def hard_concrete_gate(qz):
    """Deterministic (eval-mode) hard-concrete gate. Pallas-safe (exp/div/clip)."""
    s = 1.0 / (1.0 + jnp.exp(-qz))
    return jnp.clip(s * (ZETA - GAMMA) + GAMMA, 0.0, 1.0)


# --------------------------------------------------------------------------
# Pallas kernels
# --------------------------------------------------------------------------
def conv_pool_relu_kernel(p_ref, w_ref, qz_ref, o_ref):
    """Fused conv (im2col matmul) + 2x2 max-pool + ReLU + L0 output-channel gate.

    p_ref : (4, tm, K) bf16  im2col patches; leading axis = pool quadrant,
                             rows ordered (batch, pooled-row, pooled-col)
    w_ref : (K, Cout)  bf16  conv weight in matmul form (feature order cin,kh,kw)
    qz_ref: (1, Cout)  f32   qz_loga; gate computed in-kernel
    o_ref : (tm, Cout) bf16  pooled, relu'd, gated activations
    """
    tm, cout = o_ref.shape
    k = p_ref.shape[2]
    # Single merged MXU pass over all four pool quadrants (layout-preserving
    # page merge: tm is a multiple of 16).
    p = p_ref[...].reshape(4 * tm, k)
    y = jnp.dot(p, w_ref[...], preferred_element_type=jnp.float32)   # (4*tm, Cout) f32
    pooled = jnp.maximum(jnp.maximum(y[0:tm], y[tm:2 * tm]),
                         jnp.maximum(y[2 * tm:3 * tm], y[3 * tm:4 * tm]))
    act = jnp.maximum(pooled, 0.0)
    z = hard_concrete_gate(qz_ref[...])          # (1, Cout); z >= 0 commutes with max/relu
    o_ref[...] = (act * z).astype(o_ref.dtype)


def fc_fused_kernel(x_ref, qz1_ref, w1_ref, b1_ref, qz2_ref, w2_ref, b2_ref, o_ref):
    """Fused fc1(+bias,relu) + fc2(+bias); L0 gates applied to activations.

    (x * z1) @ W1 == x @ (diag(z1) W1): the raw (ungated) fc weights are read once;
    the fc1 output stays resident in VMEM (no HBM round-trip of h3).
    """
    x = x_ref[...].astype(jnp.float32)
    z1 = hard_concrete_gate(qz1_ref[...])                       # (1, In)
    xg = (x * z1).astype(jnp.bfloat16)
    h = jnp.dot(xg, w1_ref[...], preferred_element_type=jnp.float32) + b1_ref[...]
    h = jnp.maximum(h, 0.0)                                     # F.dropout(training=False) -> id
    z2 = hard_concrete_gate(qz2_ref[...])                       # (1, Hid)
    hg = (h * z2).astype(jnp.bfloat16)
    o_ref[...] = jnp.dot(hg, w2_ref[...], preferred_element_type=jnp.float32) + b2_ref[...]


# --------------------------------------------------------------------------
# pallas_call wrappers
# --------------------------------------------------------------------------
def conv_pool_relu(patches, w_mat, qz):
    _, m, k = patches.shape
    cout = w_mat.shape[1]
    # Split the pooled-row axis when big enough: "parallel" lets v7x use both
    # TensorCores; tm stays a multiple of 16 (bf16 sublane packing).
    tm = m // 2 if (m >= 256 and m % 32 == 0) else m
    grid = (m // tm,)
    return pl.pallas_call(
        conv_pool_relu_kernel,
        out_shape=jax.ShapeDtypeStruct((m, cout), jnp.bfloat16),
        grid=grid,
        in_specs=[
            pl.BlockSpec((4, tm, k), lambda i: (0, i, 0)),
            pl.BlockSpec((k, cout), lambda i: (0, 0)),
            pl.BlockSpec((1, cout), lambda i: (0, 0)),
        ],
        out_specs=pl.BlockSpec((tm, cout), lambda i: (i, 0)),
        compiler_params=pltpu.CompilerParams(dimension_semantics=("parallel",)),
    )(patches, w_mat, qz)


def fc1_fc2_fused(x, qz1, w1, b1, qz2, w2, b2):
    bsz, in_f = x.shape
    hid = w1.shape[1]
    out_f = w2.shape[1]
    # Batch-split only pays off for nontrivial batch (v7x megacore); B=2 -> one block.
    tb = bsz // 2 if (bsz >= 32 and bsz % 32 == 0) else bsz
    grid = (bsz // tb,)
    return pl.pallas_call(
        fc_fused_kernel,
        out_shape=jax.ShapeDtypeStruct((bsz, out_f), jnp.float32),
        grid=grid,
        in_specs=[
            pl.BlockSpec((tb, in_f), lambda i: (i, 0)),
            pl.BlockSpec((1, in_f), lambda i: (0, 0)),
            pl.BlockSpec((in_f, hid), lambda i: (0, 0)),
            pl.BlockSpec((1, hid), lambda i: (0, 0)),
            pl.BlockSpec((1, hid), lambda i: (0, 0)),
            pl.BlockSpec((hid, out_f), lambda i: (0, 0)),
            pl.BlockSpec((1, out_f), lambda i: (0, 0)),
        ],
        out_specs=pl.BlockSpec((tb, out_f), lambda i: (i, 0)),
        compiler_params=pltpu.CompilerParams(dimension_semantics=("parallel",)),
    )(x, qz1, w1, b1, qz2, w2, b2)


# --------------------------------------------------------------------------
# JAX glue: im2col grouped by pool quadrant
# --------------------------------------------------------------------------
def im2col_pool_quads(x_bhwc, ksize):
    """(B,H,W,C) -> (4, B*Hp*Wp, C*ks*ks).

    Leading axis = 2x2 max-pool quadrant; rows ordered (batch, pooled-row,
    pooled-col); features ordered (c, kh, kw) to match PyTorch's
    weight.reshape(Cout, -1)."""
    b, h, w, c = x_bhwc.shape
    ho, wo = h - ksize + 1, w - ksize + 1
    pats = jnp.stack(
        [x_bhwc[:, i:i + ho, j:j + wo, :] for i in range(ksize) for j in range(ksize)],
        axis=-1,
    )                                               # (B, Ho, Wo, C, ks*ks)
    feat = c * ksize * ksize
    pats = pats.reshape(b, ho, wo, feat)            # feature order (c, kh, kw)
    hp, wp = ho // 2, wo // 2
    pats = pats.reshape(b, hp, 2, wp, 2, feat)
    pats = jnp.transpose(pats, (2, 4, 0, 1, 3, 5))  # (2, 2, B, Hp, Wp, feat)
    return pats.reshape(4, b * hp * wp, feat)


# --------------------------------------------------------------------------
# Forward pass (inference mode: dropout layers are identity)
# --------------------------------------------------------------------------
@jax.jit
def l0_model_cnn_forward(x_nchw, params):
    b = x_nchw.shape[0]
    x = jnp.transpose(x_nchw, (0, 2, 3, 1)).astype(jnp.bfloat16)      # (B, 28, 28, 1)

    # conv1: 1 -> 32, k=5, no bias; maxpool(2) + relu + L0 gate fused in-kernel.
    p1 = im2col_pool_quads(x, 5)                                      # (4, B*144, 25) bf16
    w1_mat = params["conv1_w"].reshape(32, -1).T                      # (25, 32) bf16
    h1_rows = conv_pool_relu(p1, w1_mat, params["conv1_qz"][None, :]) # (B*144, 32) bf16
    # F.dropout(p=0.5, training=False) -> identity
    h1 = h1_rows.reshape(b, 12, 12, 32)                               # rows are (b,hp,wp)

    # conv2: 32 -> 64, k=5, no bias; maxpool(2) + relu + L0 gate fused in-kernel.
    # TODO(synk): conv2 im2col is still fused-XLA glue (bf16); building the 25-tap
    # patches fully in-VMEM inside the kernel would remove this intermediate.
    p2 = im2col_pool_quads(h1, 5)                                     # (4, B*16, 800) bf16
    w2_mat = params["conv2_w"].reshape(64, -1).T                      # (800, 64) bf16
    h2_rows = conv_pool_relu(p2, w2_mat, params["conv2_qz"][None, :]) # (B*16, 64) bf16
    # dropout -> identity

    # flatten in PyTorch NCHW order: h2.view(-1, 64*4*4) flattens (C, H, W).
    h2 = jnp.transpose(h2_rows.reshape(b, 4, 4, 64), (0, 3, 1, 2))    # (B, 64, 4, 4)
    h2_flat = h2.reshape(b, 64 * 4 * 4)                               # (B, 1024) bf16

    # fc1 (1024->1000, bias, relu) + fc2 (1000->10, bias) fused; dropout -> identity.
    return fc1_fc2_fused(
        h2_flat,
        params["fc1_qz"][None, :], params["fc1_w"], params["fc1_b"],
        params["fc2_qz"][None, :], params["fc2_w"], params["fc2_b"])


# --------------------------------------------------------------------------
# Deterministic parameter init (shapes per L0ModelCNN.__init__)
# Matmul weights stored in bf16 (MXU operands; f32 accumulation); gates/biases f32.
# --------------------------------------------------------------------------
def init_params(key):
    ks = jax.random.split(key, 8)
    p = {}
    # conv1: L0Conv2d(1, 32, 5, bias=False); gate per output channel
    p["conv1_w"] = (0.1 * jax.random.normal(ks[0], (32, 1, 5, 5), jnp.float32)).astype(jnp.bfloat16)
    p["conv1_qz"] = QZ_LOGA_MEAN + 1e-2 * jax.random.normal(ks[1], (32,), jnp.float32)
    # conv2: L0Conv2d(32, 64, 5, bias=False)
    p["conv2_w"] = (0.05 * jax.random.normal(ks[2], (64, 32, 5, 5), jnp.float32)).astype(jnp.bfloat16)
    p["conv2_qz"] = QZ_LOGA_MEAN + 1e-2 * jax.random.normal(ks[3], (64,), jnp.float32)
    # fc1: L0Dense(1024, 1000, bias=True); gate per input feature
    p["fc1_w"] = (0.02 * jax.random.normal(ks[4], (1024, 1000), jnp.float32)).astype(jnp.bfloat16)
    p["fc1_b"] = jnp.zeros((1, 1000), jnp.float32)
    p["fc1_qz"] = QZ_LOGA_MEAN + 1e-2 * jax.random.normal(ks[5], (1024,), jnp.float32)
    # fc2: L0Dense(1000, 10, bias=True)
    p["fc2_w"] = (0.02 * jax.random.normal(ks[6], (1000, 10), jnp.float32)).astype(jnp.bfloat16)
    p["fc2_b"] = jnp.zeros((1, 10), jnp.float32)
    p["fc2_qz"] = QZ_LOGA_MEAN + 1e-2 * jax.random.normal(ks[7], (1000,), jnp.float32)
    return p


if __name__ == "__main__":
    key = jax.random.PRNGKey(0)
    kx, kp = jax.random.split(key)
    B = 2
    # MNIST-shaped input implied by fc1 (64*4*4): (B, 1, 28, 28), NCHW.
    x = jax.random.normal(kx, (B, 1, 28, 28), jnp.float32)
    params = init_params(kp)

    out = jax.block_until_ready(l0_model_cnn_forward(x, params))
    assert out.shape == (B, 10), out.shape
    assert bool(jnp.all(jnp.isfinite(out)))
    # TODO(synk): training-mode stochastic hard-concrete gate sampling, F.dropout,
    # and the regularization()/sparsity-counting methods are not part of the
    # forward hot path and are not implemented here (inference semantics only).
    print("KERNEL_OK")
</pallas_src>

<mosaic_0001>
module attributes {stable_mosaic.version = 11 : i64} {
  func.func @conv_pool_relu_kernel(%arg0: i32, %arg1: memref<4x144x25xbf16, #tpu.memory_space<vmem>>, %arg2: memref<25x32xbf16, #tpu.memory_space<vmem>>, %arg3: memref<1x32xf32, #tpu.memory_space<vmem>>, %arg4: memref<144x32xbf16, #tpu.memory_space<vmem>>) attributes {dimension_semantics = [#tpu.dimension_semantics<parallel>], iteration_bounds = array<i64: 2>, scalar_prefetch = 0 : i64, scratch_operands = 0 : i64, tpu.core_type = #tpu.core_type<tc>, window_params = [{transform_indices = @transform_0, window_bounds = array<i64: 4, 144, 25>}, {pipeline_mode = #tpu.pipeline_mode<synchronous>, transform_indices = @transform_1, window_bounds = array<i64: 25, 32>}, {pipeline_mode = #tpu.pipeline_mode<synchronous>, transform_indices = @transform_2, window_bounds = array<i64: 1, 32>}, {transform_indices = @transform_3, window_bounds = array<i64: 144, 32>}]} {
    %c0 = arith.constant 0 : index
    %c0_0 = arith.constant 0 : index
    %c0_1 = arith.constant 0 : index
    %0 = vector.load %arg1[%c0, %c0_0, %c0_1] : memref<4x144x25xbf16, #tpu.memory_space<vmem>>, vector<4x144x25xbf16>
    %1 = vector.shape_cast %0 : vector<4x144x25xbf16> to vector<576x25xbf16>
    %c0_2 = arith.constant 0 : index
    %c0_3 = arith.constant 0 : index
    %2 = vector.load %arg2[%c0_2, %c0_3] : memref<25x32xbf16, #tpu.memory_space<vmem>>, vector<25x32xbf16>
    %cst = arith.constant dense<0.000000e+00> : vector<576x32xf32>
    %3 = tpu.matmul %1, %2, %cst {dimension_numbers = #tpu.dot_dimension_numbers<[1], [0], [0], [1], [0, 0, 1, 1], [], []>} : vector<576x25xbf16>, vector<25x32xbf16>, vector<576x32xf32> -> vector<576x32xf32>
    %4 = vector.extract_strided_slice %3 {offsets = [0, 0], sizes = [144, 32], strides = [1, 1]} : vector<576x32xf32> to vector<144x32xf32>
    %5 = vector.extract_strided_slice %3 {offsets = [144, 0], sizes = [144, 32], strides = [1, 1]} : vector<576x32xf32> to vector<144x32xf32>
    %6 = arith.maximumf %4, %5 : vector<144x32xf32>
    %7 = vector.extract_strided_slice %3 {offsets = [288, 0], sizes = [144, 32], strides = [1, 1]} : vector<576x32xf32> to vector<144x32xf32>
    %8 = vector.extract_strided_slice %3 {offsets = [432, 0], sizes = [144, 32], strides = [1, 1]} : vector<576x32xf32> to vector<144x32xf32>
    %9 = arith.maximumf %7, %8 : vector<144x32xf32>
    %10 = arith.maximumf %6, %9 : vector<144x32xf32>
    %cst_4 = arith.constant 0.000000e+00 : f32
    %11 = vector.broadcast %cst_4 : f32 to vector<144x32xf32>
    %12 = arith.maximumf %10, %11 : vector<144x32xf32>
    %c0_5 = arith.constant 0 : index
    %c0_6 = arith.constant 0 : index
    %13 = vector.load %arg3[%c0_5, %c0_6] : memref<1x32xf32, #tpu.memory_space<vmem>>, vector<1x32xf32>
    %cst_7 = arith.constant 0.000000e+00 : f32
    %14 = vector.broadcast %cst_7 : f32 to vector<1x32xf32>
    %15 = arith.subf %14, %13 : vector<1x32xf32>
    %16 = math.exp %15 : vector<1x32xf32>
    %cst_8 = arith.constant 1.000000e+00 : f32
    %17 = vector.broadcast %cst_8 : f32 to vector<1x32xf32>
    %18 = arith.addf %17, %16 : vector<1x32xf32>
    %cst_9 = arith.constant 1.000000e+00 : f32
    %19 = vector.broadcast %cst_9 : f32 to vector<1x32xf32>
    %20 = arith.divf %19, %18 : vector<1x32xf32>
    %cst_10 = arith.constant 1.200000e+00 : f32
    %21 = vector.broadcast %cst_10 : f32 to vector<1x32xf32>
    %22 = arith.mulf %20, %21 : vector<1x32xf32>
    %cst_11 = arith.constant -1.000000e-01 : f32
    %23 = vector.broadcast %cst_11 : f32 to vector<1x32xf32>
    %24 = arith.addf %22, %23 : vector<1x32xf32>
    %cst_12 = arith.constant 0.000000e+00 : f32
    %cst_13 = arith.constant 1.000000e+00 : f32
    %25 = vector.broadcast %cst_12 : f32 to vector<1x32xf32>
    %26 = arith.maximumf %25, %24 : vector<1x32xf32>
    %27 = vector.broadcast %cst_13 : f32 to vector<1x32xf32>
    %28 = arith.minimumf %27, %26 : vector<1x32xf32>
    %29 = vector.broadcast %28 : vector<1x32xf32> to vector<144x32xf32>
    %30 = arith.mulf %12, %29 : vector<144x32xf32>
    %31 = arith.truncf %30 : vector<144x32xf32> to vector<144x32xbf16>
    %c0_14 = arith.constant 0 : index
    %c0_15 = arith.constant 0 : index
    %32 = vector.load %arg4[%c0_14, %c0_15] : memref<144x32xbf16, #tpu.memory_space<vmem>>, vector<144x32xbf16>
    tpu.vector_store %arg4[%c0_14, %c0_15], %31 {strides = array<i32>} : memref<144x32xbf16, #tpu.memory_space<vmem>>, vector<144x32xbf16>,
    return
  }
  func.func @transform_0(%arg0: i32) -> (i32, i32, i32) {
    %c0_i32 = arith.constant 0 : i32
    %c0_i32_0 = arith.constant 0 : i32
    %c0_i32_1 = arith.constant 0 : i32
    return %c0_i32, %arg0, %c0_i32_0 : i32, i32, i32
  }
  func.func @transform_1(%arg0: i32) -> (i32, i32) {
    %c0_i32 = arith.constant 0 : i32
    %c0_i32_0 = arith.constant 0 : i32
    %c0_i32_1 = arith.constant 0 : i32
    return %c0_i32, %c0_i32_0 : i32, i32
  }
  func.func @transform_2(%arg0: i32) -> (i32, i32) {
    %c0_i32 = arith.constant 0 : i32
    %c0_i32_0 = arith.constant 0 : i32
    %c0_i32_1 = arith.constant 0 : i32
    return %c0_i32, %c0_i32_0 : i32, i32
  }
  func.func @transform_3(%arg0: i32) -> (i32, i32) {
    %c0_i32 = arith.constant 0 : i32
    %c0_i32_0 = arith.constant 0 : i32
    return %arg0, %c0_i32 : i32, i32
  }
}

module attributes {stable_mosaic.version = 11 : i64} {
  func.func @conv_pool_relu_kernel(%arg0: i32, %arg1: memref<4x32x800xbf16, #tpu.memory_space<vmem>>, %arg2: memref<800x64xbf16, #tpu.memory_space<vmem>>, %arg3: memref<1x64xf32, #tpu.memory_space<vmem>>, %arg4: memref<32x64xbf16, #tpu.memory_space<vmem>>) attributes {dimension_semantics = [#tpu.dimension_semantics<parallel>], iteration_bounds = array<i64: 1>, scalar_prefetch = 0 : i64, scratch_operands = 0 : i64, tpu.core_type = #tpu.core_type<tc>, window_params = [{transform_indices = @transform_0, window_bounds = array<i64: 4, 32, 800>}, {pipeline_mode = #tpu.pipeline_mode<synchronous>, transform_indices = @transform_1, window_bounds = array<i64: 800, 64>}, {pipeline_mode = #tpu.pipeline_mode<synchronous>, transform_indices = @transform_2, window_bounds = array<i64: 1, 64>}, {transform_indices = @transform_3, window_bounds = array<i64: 32, 64>}]} {
    %c0 = arith.constant 0 : index
    %c0_0 = arith.constant 0 : index
    %c0_1 = arith.constant 0 : index
    %0 = vector.load %arg1[%c0, %c0_0, %c0_1] : memref<4x32x800xbf16, #tpu.memory_space<vmem>>, vector<4x32x800xbf16>
    %1 = vector.shape_cast %0 : vector<4x32x800xbf16> to vector<128x800xbf16>
    %c0_2 = arith.constant 0 : index
    %c0_3 = arith.constant 0 : index
    %2 = vector.load %arg2[%c0_2, %c0_3] : memref<800x64xbf16, #tpu.memory_space<vmem>>, vector<800x64xbf16>
    %cst = arith.constant dense<0.000000e+00> : vector<128x64xf32>
    %3 = tpu.matmul %1, %2, %cst {dimension_numbers = #tpu.dot_dimension_numbers<[1], [0], [0], [1], [0, 0, 1, 1], [], []>} : vector<128x800xbf16>, vector<800x64xbf16>, vector<128x64xf32> -> vector<128x64xf32>
    %4 = vector.extract_strided_slice %3 {offsets = [0, 0], sizes = [32, 64], strides = [1, 1]} : vector<128x64xf32> to vector<32x64xf32>
    %5 = vector.extract_strided_slice %3 {offsets = [32, 0], sizes = [32, 64], strides = [1, 1]} : vector<128x64xf32> to vector<32x64xf32>
    %6 = arith.maximumf %4, %5 : vector<32x64xf32>
    %7 = vector.extract_strided_slice %3 {offsets = [64, 0], sizes = [32, 64], strides = [1, 1]} : vector<128x64xf32> to vector<32x64xf32>
    %8 = vector.extract_strided_slice %3 {offsets = [96, 0], sizes = [32, 64], strides = [1, 1]} : vector<128x64xf32> to vector<32x64xf32>
    %9 = arith.maximumf %7, %8 : vector<32x64xf32>
    %10 = arith.maximumf %6, %9 : vector<32x64xf32>
    %cst_4 = arith.constant 0.000000e+00 : f32
    %11 = vector.broadcast %cst_4 : f32 to vector<32x64xf32>
    %12 = arith.maximumf %10, %11 : vector<32x64xf32>
    %c0_5 = arith.constant 0 : index
    %c0_6 = arith.constant 0 : index
    %13 = vector.load %arg3[%c0_5, %c0_6] : memref<1x64xf32, #tpu.memory_space<vmem>>, vector<1x64xf32>
    %cst_7 = arith.constant 0.000000e+00 : f32
    %14 = vector.broadcast %cst_7 : f32 to vector<1x64xf32>
    %15 = arith.subf %14, %13 : vector<1x64xf32>
    %16 = math.exp %15 : vector<1x64xf32>
    %cst_8 = arith.constant 1.000000e+00 : f32
    %17 = vector.broadcast %cst_8 : f32 to vector<1x64xf32>
    %18 = arith.addf %17, %16 : vector<1x64xf32>
    %cst_9 = arith.constant 1.000000e+00 : f32
    %19 = vector.broadcast %cst_9 : f32 to vector<1x64xf32>
    %20 = arith.divf %19, %18 : vector<1x64xf32>
    %cst_10 = arith.constant 1.200000e+00 : f32
    %21 = vector.broadcast %cst_10 : f32 to vector<1x64xf32>
    %22 = arith.mulf %20, %21 : vector<1x64xf32>
    %cst_11 = arith.constant -1.000000e-01 : f32
    %23 = vector.broadcast %cst_11 : f32 to vector<1x64xf32>
    %24 = arith.addf %22, %23 : vector<1x64xf32>
    %cst_12 = arith.constant 0.000000e+00 : f32
    %cst_13 = arith.constant 1.000000e+00 : f32
    %25 = vector.broadcast %cst_12 : f32 to vector<1x64xf32>
    %26 = arith.maximumf %25, %24 : vector<1x64xf32>
    %27 = vector.broadcast %cst_13 : f32 to vector<1x64xf32>
    %28 = arith.minimumf %27, %26 : vector<1x64xf32>
    %29 = vector.broadcast %28 : vector<1x64xf32> to vector<32x64xf32>
    %30 = arith.mulf %12, %29 : vector<32x64xf32>
    %31 = arith.truncf %30 : vector<32x64xf32> to vector<32x64xbf16>
    %c0_14 = arith.constant 0 : index
    %c0_15 = arith.constant 0 : index
    %32 = vector.load %arg4[%c0_14, %c0_15] : memref<32x64xbf16, #tpu.memory_space<vmem>>, vector<32x64xbf16>
    tpu.vector_store %arg4[%c0_14, %c0_15], %31 {strides = array<i32>} : memref<32x64xbf16, #tpu.memory_space<vmem>>, vector<32x64xbf16>,
    return
  }
  func.func @transform_0(%arg0: i32) -> (i32, i32, i32) {
    %c0_i32 = arith.constant 0 : i32
    %c0_i32_0 = arith.constant 0 : i32
    %c0_i32_1 = arith.constant 0 : i32
    return %c0_i32, %arg0, %c0_i32_0 : i32, i32, i32
  }
  func.func @transform_1(%arg0: i32) -> (i32, i32) {
    %c0_i32 = arith.constant 0 : i32
    %c0_i32_0 = arith.constant 0 : i32
    %c0_i32_1 = arith.constant 0 : i32
    return %c0_i32, %c0_i32_0 : i32, i32
  }
  func.func @transform_2(%arg0: i32) -> (i32, i32) {
    %c0_i32 = arith.constant 0 : i32
    %c0_i32_0 = arith.constant 0 : i32
    %c0_i32_1 = arith.constant 0 : i32
    return %c0_i32, %c0_i32_0 : i32, i32
  }
  func.func @transform_3(%arg0: i32) -> (i32, i32) {
    %c0_i32 = arith.constant 0 : i32
    %c0_i32_0 = arith.constant 0 : i32
    return %arg0, %c0_i32 : i32, i32
  }
}

module attributes {stable_mosaic.version = 11 : i64} {
  func.func @fc_fused_kernel(%arg0: i32, %arg1: memref<2x1024xbf16, #tpu.memory_space<vmem>>, %arg2: memref<1x1024xf32, #tpu.memory_space<vmem>>, %arg3: memref<1024x1000xbf16, #tpu.memory_space<vmem>>, %arg4: memref<1x1000xf32, #tpu.memory_space<vmem>>, %arg5: memref<1x1000xf32, #tpu.memory_space<vmem>>, %arg6: memref<1000x10xbf16, #tpu.memory_space<vmem>>, %arg7: memref<1x10xf32, #tpu.memory_space<vmem>>, %arg8: memref<2x10xf32, #tpu.memory_space<vmem>>) attributes {dimension_semantics = [#tpu.dimension_semantics<parallel>], iteration_bounds = array<i64: 1>, scalar_prefetch = 0 : i64, scratch_operands = 0 : i64, tpu.core_type = #tpu.core_type<tc>, window_params = [{transform_indices = @transform_0, window_bounds = array<i64: 2, 1024>}, {pipeline_mode = #tpu.pipeline_mode<synchronous>, transform_indices = @transform_1, window_bounds = array<i64: 1, 1024>}, {pipeline_mode = #tpu.pipeline_mode<synchronous>, transform_indices = @transform_2, window_bounds = array<i64: 1024, 1000>}, {pipeline_mode = #tpu.pipeline_mode<synchronous>, transform_indices = @transform_3, window_bounds = array<i64: 1, 1000>}, {pipeline_mode = #tpu.pipeline_mode<synchronous>, transform_indices = @transform_4, window_bounds = array<i64: 1, 1000>}, {pipeline_mode = #tpu.pipeline_mode<synchronous>, transform_indices = @transform_5, window_bounds = array<i64: 1000, 10>}, {pipeline_mode = #tpu.pipeline_mode<synchronous>, transform_indices = @transform_6, window_bounds = array<i64: 1, 10>}, {transform_indices = @transform_7, window_bounds = array<i64: 2, 10>}]} {
    %c0 = arith.constant 0 : index
    %c0_0 = arith.constant 0 : index
    %0 = vector.load %arg1[%c0, %c0_0] : memref<2x1024xbf16, #tpu.memory_space<vmem>>, vector<2x1024xbf16>
    %1 = arith.extf %0 : vector<2x1024xbf16> to vector<2x1024xf32>
    %c0_1 = arith.constant 0 : index
    %c0_2 = arith.constant 0 : index
    %2 = vector.load %arg2[%c0_1, %c0_2] : memref<1x1024xf32, #tpu.memory_space<vmem>>, vector<1x1024xf32>
    %cst = arith.constant 0.000000e+00 : f32
    %3 = vector.broadcast %cst : f32 to vector<1x1024xf32>
    %4 = arith.subf %3, %2 : vector<1x1024xf32>
    %5 = math.exp %4 : vector<1x1024xf32>
    %cst_3 = arith.constant 1.000000e+00 : f32
    %6 = vector.broadcast %cst_3 : f32 to vector<1x1024xf32>
    %7 = arith.addf %6, %5 : vector<1x1024xf32>
    %cst_4 = arith.constant 1.000000e+00 : f32
    %8 = vector.broadcast %cst_4 : f32 to vector<1x1024xf32>
    %9 = arith.divf %8, %7 : vector<1x1024xf32>
    %cst_5 = arith.constant 1.200000e+00 : f32
    %10 = vector.broadcast %cst_5 : f32 to vector<1x1024xf32>
    %11 = arith.mulf %9, %10 : vector<1x1024xf32>
    %cst_6 = arith.constant -1.000000e-01 : f32
    %12 = vector.broadcast %cst_6 : f32 to vector<1x1024xf32>
    %13 = arith.addf %11, %12 : vector<1x1024xf32>
    %cst_7 = arith.constant 0.000000e+00 : f32
    %cst_8 = arith.constant 1.000000e+00 : f32
    %14 = vector.broadcast %cst_7 : f32 to vector<1x1024xf32>
    %15 = arith.maximumf %14, %13 : vector<1x1024xf32>
    %16 = vector.broadcast %cst_8 : f32 to vector<1x1024xf32>
    %17 = arith.minimumf %16, %15 : vector<1x1024xf32>
    %18 = vector.broadcast %17 : vector<1x1024xf32> to vector<2x1024xf32>
    %19 = arith.mulf %1, %18 : vector<2x1024xf32>
    %20 = arith.truncf %19 : vector<2x1024xf32> to vector<2x1024xbf16>
    %c0_9 = arith.constant 0 : index
    %c0_10 = arith.constant 0 : index
    %21 = vector.load %arg3[%c0_9, %c0_10] : memref<1024x1000xbf16, #tpu.memory_space<vmem>>, vector<1024x1000xbf16>
    %cst_11 = arith.constant dense<0.000000e+00> : vector<2x1000xf32>
    %22 = tpu.matmul %20, %21, %cst_11 {dimension_numbers = #tpu.dot_dimension_numbers<[1], [0], [0], [1], [0, 0, 1, 1], [], []>} : vector<2x1024xbf16>, vector<1024x1000xbf16>, vector<2x1000xf32> -> vector<2x1000xf32>
    %c0_12 = arith.constant 0 : index
    %c0_13 = arith.constant 0 : index
    %23 = vector.load %arg4[%c0_12, %c0_13] : memref<1x1000xf32, #tpu.memory_space<vmem>>, vector<1x1000xf32>
    %24 = vector.broadcast %23 : vector<1x1000xf32> to vector<2x1000xf32>
    %25 = arith.addf %22, %24 : vector<2x1000xf32>
    %cst_14 = arith.constant 0.000000e+00 : f32
    %26 = vector.broadcast %cst_14 : f32 to vector<2x1000xf32>
    %27 = arith.maximumf %25, %26 : vector<2x1000xf32>
    %c0_15 = arith.constant 0 : index
    %c0_16 = arith.constant 0 : index
    %28 = vector.load %arg5[%c0_15, %c0_16] : memref<1x1000xf32, #tpu.memory_space<vmem>>, vector<1x1000xf32>
    %cst_17 = arith.constant 0.000000e+00 : f32
    %29 = vector.broadcast %cst_17 : f32 to vector<1x1000xf32>
    %30 = arith.subf %29, %28 : vector<1x1000xf32>
    %31 = math.exp %30 : vector<1x1000xf32>
    %cst_18 = arith.constant 1.000000e+00 : f32
    %32 = vector.broadcast %cst_18 : f32 to vector<1x1000xf32>
    %33 = arith.addf %32, %31 : vector<1x1000xf32>
    %cst_19 = arith.constant 1.000000e+00 : f32
    %34 = vector.broadcast %cst_19 : f32 to vector<1x1000xf32>
    %35 = arith.divf %34, %33 : vector<1x1000xf32>
    %cst_20 = arith.constant 1.200000e+00 : f32
    %36 = vector.broadcast %cst_20 : f32 to vector<1x1000xf32>
    %37 = arith.mulf %35, %36 : vector<1x1000xf32>
    %cst_21 = arith.constant -1.000000e-01 : f32
    %38 = vector.broadcast %cst_21 : f32 to vector<1x1000xf32>
    %39 = arith.addf %37, %38 : vector<1x1000xf32>
    %cst_22 = arith.constant 0.000000e+00 : f32
    %cst_23 = arith.constant 1.000000e+00 : f32
    %40 = vector.broadcast %cst_22 : f32 to vector<1x1000xf32>
    %41 = arith.maximumf %40, %39 : vector<1x1000xf32>
    %42 = vector.broadcast %cst_23 : f32 to vector<1x1000xf32>
    %43 = arith.minimumf %42, %41 : vector<1x1000xf32>
    %44 = vector.broadcast %43 : vector<1x1000xf32> to vector<2x1000xf32>
    %45 = arith.mulf %27, %44 : vector<2x1000xf32>
    %46 = arith.truncf %45 : vector<2x1000xf32> to vector<2x1000xbf16>
    %c0_24 = arith.constant 0 : index
    %c0_25 = arith.constant 0 : index
    %47 = vector.load %arg6[%c0_24, %c0_25] : memref<1000x10xbf16, #tpu.memory_space<vmem>>, vector<1000x10xbf16>
    %cst_26 = arith.constant dense<0.000000e+00> : vector<2x10xf32>
    %48 = tpu.matmul %46, %47, %cst_26 {dimension_numbers = #tpu.dot_dimension_numbers<[1], [0], [0], [1], [0, 0, 1, 1], [], []>} : vector<2x1000xbf16>, vector<1000x10xbf16>, vector<2x10xf32> -> vector<2x10xf32>
    %c0_27 = arith.constant 0 : index
    %c0_28 = arith.constant 0 : index
    %49 = vector.load %arg7[%c0_27, %c0_28] : memref<1x10xf32, #tpu.memory_space<vmem>>, vector<1x10xf32>
    %50 = vector.broadcast %49 : vector<1x10xf32> to vector<2x10xf32>
    %51 = arith.addf %48, %50 : vector<2x10xf32>
    %c0_29 = arith.constant 0 : index
    %c0_30 = arith.constant 0 : index
    %52 = vector.load %arg8[%c0_29, %c0_30] : memref<2x10xf32, #tpu.memory_space<vmem>>, vector<2x10xf32>
    tpu.vector_store %arg8[%c0_29, %c0_30], %51 {strides = array<i32>} : memref<2x10xf32, #tpu.memory_space<vmem>>, vector<2x10xf32>,
    return
  }
  func.func @transform_0(%arg0: i32) -> (i32, i32) {
    %c0_i32 = arith.constant 0 : i32
    %c0_i32_0 = arith.constant 0 : i32
    return %arg0, %c0_i32 : i32, i32
  }
  func.func @transform_1(%arg0: i32) -> (i32, i32) {
    %c0_i32 = arith.constant 0 : i32
    %c0_i32_0 = arith.constant 0 : i32
    %c0_i32_1 = arith.constant 0 : i32
    return %c0_i32, %c0_i32_0 : i32, i32
  }
  func.func @transform_2(%arg0: i32) -> (i32, i32) {
    %c0_i32 = arith.constant 0 : i32
    %c0_i32_0 = arith.constant 0 : i32
    %c0_i32_1 = arith.constant 0 : i32
    return %c0_i32, %c0_i32_0 : i32, i32
  }
  func.func @transform_3(%arg0: i32) -> (i32, i32) {
    %c0_i32 = arith.constant 0 : i32
    %c0_i32_0 = arith.constant 0 : i32
    %c0_i32_1 = arith.constant 0 : i32
    return %c0_i32, %c0_i32_0 : i32, i32
  }
  func.func @transform_4(%arg0: i32) -> (i32, i32) {
    %c0_i32 = arith.constant 0 : i32
    %c0_i32_0 = arith.constant 0 : i32
    %c0_i32_1 = arith.constant 0 : i32
    return %c0_i32, %c0_i32_0 : i32, i32
  }
  func.func @transform_5(%arg0: i32) -> (i32, i32) {
    %c0_i32 = arith.constant 0 : i32
    %c0_i32_0 = arith.constant 0 : i32
    %c0_i32_1 = arith.constant 0 : i32
    return %c0_i32, %c0_i32_0 : i32, i32
  }
  func.func @transform_6(%arg0: i32) -> (i32, i32) {
    %c0_i32 = arith.constant 0 : i32
    %c0_i32_0 = arith.constant 0 : i32
    %c0_i32_1 = arith.constant 0 : i32
    return %c0_i32, %c0_i32_0 : i32, i32
  }
  func.func @transform_7(%arg0: i32) -> (i32, i32) {
    %c0_i32 = arith.constant 0 : i32
    %c0_i32_0 = arith.constant 0 : i32
    return %arg0, %c0_i32 : i32, i32
  }
}

</mosaic_0001>

<llo_original>
// kernel: l0_model_cnn_forward.3
$region0: #{l0_model_cnn_forward.3}
  #allocation0 [shape = 'u32[]', space=smem, size = 0x4, offset = 0x4, fixed_abs, tag = 'smem constant byte address 0x4 - core index']
  #allocation1 [shape = 'u32[72,128]{1,0:T(1,128)}', space=vmem, size = 0x9000, scoped, tag = 'internal scratch']
  %s0 = inlined_call_operand.vmem [shape: bf16[4,288,25], index: 0, kind: input, shape index: {}]
  %s1 = inlined_call_operand.vmem [shape: bf16[25,32], index: 1, kind: input, shape index: {}]
  %s2 = inlined_call_operand.vmem [shape: f32[1,32], index: 2, kind: input, shape index: {}]
  %s3 = inlined_call_operand.vmem [shape: bf16[288,32], index: 3, kind: output, shape index: {}]
  %s4 = sld [smem:[#allocation0]]
  $region86: #{l0_model_cnn_forward.3} parent=0
    _
  %s6 = ssub.s32 1, %s4
  %s7 = scalar_select 0, %s6, %s4
  $region1: #{l0_model_cnn_forward.3} parent=0
    #allocation2 [shape = 'u8[294912]{0}', space=vmem, size = 0x48000, scoped, tag = 'input window, operand 0']
    loop: start=0, step=1, limit=4
    $region2: #{l0_model_cnn_forward.3} parent=1 // loop_pre_header
      _
    $region3: #{l0_model_cnn_forward.3} parent=1 // loop_header
      %s9 = sphi 0, %s13
      %p10 = scmp.ge.s32.totalorder %s9, 4
      %s19 = sphi 0, %s21
      %s22 = sphi 0, %s19
      %s23 = sphi 0, %s22
      %s39 = sphi 0, %s23
      %s43 = sphi 0, %s43
      %s45 = sphi 0, %s43
      %s46 = sphi 0, %s45
      %s60 = sphi 0, %s46
      %s64 = sphi 0, %s64
      %s66 = sphi 0, %s64
      %s67 = sphi 0, %s66
      %s81 = sphi 0, %s67
      %s87 = sphi 0, %s89
      %s90 = sphi 0, %s87
      %s91 = sphi 0, %s90
      %s107 = sphi 0, %s91
    $region4: #{l0_model_cnn_forward.3} parent=1 // loop_header_branch
      %12 = sbr.rel (%p10) target = $region8
    $region5: #{l0_model_cnn_forward.3} parent=1 // loop_body
      %s14 = ssub.s32 %s9, 1
      %s15 = ssub.s32 %s9, 2
      %s16 = sadd.s32 %s9, 1
      %s17 = ssub.s32 %s9, %s16
      %p18 = scmp.eq.s32.totalorder %s17, 0
      %s20 = sadd.s32 %s19, 1
      %s21 = scalar_select %p18, %s19, %s20
      %p24 = pneg %p18
      %p25 = scmp.eq.s32.totalorder %s9, 1
      %p26 = por %p24, %p25
      %p27 = scmp.ne.s32.totalorder %s19, %s22
      %p28 = scmp.eq.s32.totalorder %s9, 0
      %p29 = por %p27, %p28
      %p30 = scmp.ne.s32.totalorder %s19, %s22
      %p31 = scmp.eq.s32.totalorder %s14, 1
      %p32 = por %p30, %p31
      %p33 = scmp.ne.s32.totalorder %s22, %s23
      %p34 = scmp.eq.s32.totalorder %s14, 0
      %p35 = por %p33, %p34
      %p36 = scmp.ne.s32.totalorder %s22, %s23
      %p37 = scmp.eq.s32.totalorder %s15, 1
      %p38 = por %p36, %p37
      %p40 = scmp.ne.s32.totalorder %s23, %s39
      %p41 = scmp.eq.s32.totalorder %s15, 0
      %p42 = por %p40, %p41
      %s44 = sadd.s32 %s43, 1
      %p47 = scmp.eq.s32.totalorder %s9, 1
      %p48 = scmp.ne.s32.totalorder %s43, %s45
      %p49 = scmp.eq.s32.totalorder %s9, 0
      %p50 = por %p48, %p49
      %p51 = scmp.ne.s32.totalorder %s43, %s45
      %p52 = scmp.eq.s32.totalorder %s14, 1
      %p53 = por %p51, %p52
      %p54 = scmp.ne.s32.totalorder %s45, %s46
      %p55 = scmp.eq.s32.totalorder %s14, 0
      %p56 = por %p54, %p55
      %p57 = scmp.ne.s32.totalorder %s45, %s46
      %p58 = scmp.eq.s32.totalorder %s15, 1
      %p59 = por %p57, %p58
      %p61 = scmp.ne.s32.totalorder %s46, %s60
      %p62 = scmp.eq.s32.totalorder %s15, 0
      %p63 = por %p61, %p62
      %s65 = sadd.s32 %s64, 1
      %p68 = scmp.eq.s32.totalorder %s9, 1
      %p69 = scmp.ne.s32.totalorder %s64, %s66
      %p70 = scmp.eq.s32.totalorder %s9, 0
      %p71 = por %p69, %p70
      %p72 = scmp.ne.s32.totalorder %s64, %s66
      %p73 = scmp.eq.s32.totalorder %s14, 1
      %p74 = por %p72, %p73
      %p75 = scmp.ne.s32.totalorder %s66, %s67
      %p76 = scmp.eq.s32.totalorder %s14, 0
      %p77 = por %p75, %p76
      %p78 = scmp.ne.s32.totalorder %s66, %s67
      %p79 = scmp.eq.s32.totalorder %s15, 1
      %p80 = por %p78, %p79
      %p82 = scmp.ne.s32.totalorder %s67, %s81
      %p83 = scmp.eq.s32.totalorder %s15, 0
      %p84 = por %p82, %p83
      %s85 = ssub.s32 %s9, %s16
      %p86 = scmp.eq.s32.totalorder %s85, 0
      %s88 = sadd.s32 %s87, 1
      %s89 = scalar_select %p86, %s87, %s88
      %p92 = pneg %p86
      %p93 = scmp.eq.s32.totalorder %s9, 1
      %p94 = por %p92, %p93
      %p95 = scmp.ne.s32.totalorder %s87, %s90
      %p96 = scmp.eq.s32.totalorder %s9, 0
      %p97 = por %p95, %p96
      %p98 = scmp.ne.s32.totalorder %s87, %s90
      %p99 = scmp.eq.s32.totalorder %s14, 1
      %p100 = por %p98, %p99
      %p101 = scmp.ne.s32.totalorder %s90, %s91
      %p102 = scmp.eq.s32.totalorder %s14, 0
      %p103 = por %p101, %p102
      %p104 = scmp.ne.s32.totalorder %s90, %s91
      %p105 = scmp.eq.s32.totalorder %s15, 1
      %p106 = por %p104, %p105
      %p108 = scmp.ne.s32.totalorder %s91, %s107
      %p109 = scmp.eq.s32.totalorder %s15, 0
      %p110 = por %p108, %p109
      %p111 = scmp.le.s32.totalorder 1, %s9
      %p112 = scmp.lt.s32.totalorder %s9, 3
      %p113 = pnand %p111, %p112
      %p114 = pneg %p113
      // Predicated region
      $region9: #{l0_model_cnn_forward.3} parent=5 // pred_check
        _
      $region10: #{l0_model_cnn_forward.3} parent=5 // pred_check_branch
        %116 = sbr.rel (%p113) target = $region12
      $region11: #{l0_model_cnn_forward.3} parent=5 // pred_region
        %s117 = ssub.s32 %s9, 1
        // Predicated region
        $region13: #{l0_model_cnn_forward.3} parent=11 // pred_check
          %p118 = pneg %p56
        $region14: #{l0_model_cnn_forward.3} parent=11 // pred_check_branch
          %120 = sbr.rel (%p118) target = $region16
        $region15: #{l0_model_cnn_forward.3} parent=11 // pred_region
          _
        $region16: #{l0_model_cnn_forward.3} parent=11 // pred_fallthru
          _
        // Predicated region
        $region17: #{l0_model_cnn_forward.3} parent=11 // pred_check
          %p121 = pneg %p77
        $region18: #{l0_model_cnn_forward.3} parent=11 // pred_check_branch
          %123 = sbr.rel (%p121) target = $region20
        $region19: #{l0_model_cnn_forward.3} parent=11 // pred_region
          _
        $region20: #{l0_model_cnn_forward.3} parent=11 // pred_fallthru
          _
      $region12: #{l0_model_cnn_forward.3} parent=5 // pred_fallthru
        _
      %p124 = scmp.lt.s32.totalorder %s9, 2
      // Predicated region
      $region21: #{l0_model_cnn_forward.3} parent=5 // pred_check
        %p125 = pneg %p124
      $region22: #{l0_model_cnn_forward.3} parent=5 // pred_check_branch
        %127 = sbr.rel (%p125) target = $region24
      $region23: #{l0_model_cnn_forward.3} parent=5 // pred_region
        // Predicated region
        $region25: #{l0_model_cnn_forward.3} parent=23 // pred_check
          %p128 = pneg %p29
        $region26: #{l0_model_cnn_forward.3} parent=23 // pred_check_branch
          %130 = sbr.rel (%p128) target = $region28
        $region27: #{l0_model_cnn_forward.3} parent=23 // pred_region
          %s131 = sand.u32 %s19, 1
          %s132 = sand.u32 %s19, 1
          %s133 = smul.addr %s132, 288
          %s134 = scalar_lea.vmem [#allocation2], %s133
          %s135 = smul.u32 18, %s9
          %s136 = smul.addr %s135, 4
          %s137 = scalar_lea.vmem %s0, %s136
          // Predicated region
          $region29: #{l0_model_cnn_forward.3} parent=27 // pred_check
            _
          $region30: #{l0_model_cnn_forward.3} parent=27 // pred_check_branch
            %139 = sbr.rel (0) target = $region32
          $region31: #{l0_model_cnn_forward.3} parent=27 // pred_region
            // Predicated region
            $region33: #{l0_model_cnn_forward.3} parent=31 // pred_check
              _
            $region34: #{l0_model_cnn_forward.3} parent=31 // pred_check_branch
              %141 = sbr.rel target = $region36
            $region35: #{l0_model_cnn_forward.3} parent=31 // pred_region
              // Predicated region
              $region48: #{l0_model_cnn_forward.3} parent=35 // pred_check
                _
              $region49: #{l0_model_cnn_forward.3} parent=35 // pred_check_branch
                %299 = sbr.rel (0) target = $region51
              $region50: #{l0_model_cnn_forward.3} parent=35 // pred_region
                loop: start=0, step=1, limit=1
                $region52: #{l0_model_cnn_forward.3} parent=50 // loop_pre_header
                  _
                $region53: #{l0_model_cnn_forward.3} parent=50 // loop_header
                  %s301 = sphi 0, %s305
                  %p302 = scmp.ge.s32.totalorder %s301, 1
                  %s306 = sphi %s137, %s137
                  %s307 = sphi %s134, %s134
                $region54: #{l0_model_cnn_forward.3} parent=50 // loop_header_branch
                  %304 = sbr.rel (%p302) target = $region58
                $region55: #{l0_model_cnn_forward.3} parent=50 // loop_body
                  _
                $region56: #{l0_model_cnn_forward.3} parent=50 // loop_footer
                  %s305 = sadd.s32 1, %s301
                $region57: #{l0_model_cnn_forward.3} parent=50 // loop_footer_branch
                  %300 = sbr.rel target = $region53
                $region58: #{l0_model_cnn_forward.3} parent=50 // loop_exit
                  _
                %s309 = ssub.s32 16, 1
                loop: start=0, step=1, limit=1
                $region59: #{l0_model_cnn_forward.3} parent=50 // loop_pre_header
                  _
                $region60: #{l0_model_cnn_forward.3} parent=50 // loop_header
                  %s311 = sphi 0, %s315
                  %p312 = scmp.ge.s32.totalorder %s311, 1
                  %s316 = sphi %s137, %s137
                  %s317 = sphi %s134, %s134
                $region61: #{l0_model_cnn_forward.3} parent=50 // loop_header_branch
                  %314 = sbr.rel (%p312) target = $region65
                $region62: #{l0_model_cnn_forward.3} parent=50 // loop_body
                  %v318 = vld [vmem:[%s316] sm:%s309]
                  %319 = vst [vmem:[%s317] sm:%s309] %v318
                  %v320 = vld [vmem:[%s316 + $0x4] sm:%s309]
                  %321 = vst [vmem:[%s317 + $0x4] sm:%s309] %v320
                  %v322 = vld [vmem:[%s316 + $0x8] sm:%s309]
                  %323 = vst [vmem:[%s317 + $0x8] sm:%s309] %v322
                  %v324 = vld [vmem:[%s316 + $0xc] sm:%s309]
                  %325 = vst [vmem:[%s317 + $0xc] sm:%s309] %v324
                  %v326 = vld [vmem:[%s316 + $0x10] sm:%s309]
                  %327 = vst [vmem:[%s317 + $0x10] sm:%s309] %v326
                  %v328 = vld [vmem:[%s316 + $0x14] sm:%s309]
                  %329 = vst [vmem:[%s317 + $0x14] sm:%s309] %v328
                  %v330 = vld [vmem:[%s316 + $0x18] sm:%s309]
                  %331 = vst [vmem:[%s317 + $0x18] sm:%s309] %v330
                  %v332 = vld [vmem:[%s316 + $0x1c] sm:%s309]
                  %333 = vst [vmem:[%s317 + $0x1c] sm:%s309] %v332
                  %v334 = vld [vmem:[%s316 + $0x20] sm:%s309]
                  %335 = vst [vmem:[%s317 + $0x20] sm:%s309] %v334
                  %v336 = vld [vmem:[%s316 + $0x24] sm:%s309]
                  %337 = vst [vmem:[%s317 + $0x24] sm:%s309] %v336
                  %v338 = vld [vmem:[%s316 + $0x28] sm:%s309]
                  %339 = vst [vmem:[%s317 + $0x28] sm:%s309] %v338
                  %v340 = vld [vmem:[%s316 + $0x2c] sm:%s309]
                  %341 = vst [vmem:[%s317 + $0x2c] sm:%s309] %v340
                  %v342 = vld [vmem:[%s316 + $0x30] sm:%s309]
                  %343 = vst [vmem:[%s317 + $0x30] sm:%s309] %v342
                  %v344 = vld [vmem:[%s316 + $0x34] sm:%s309]
                  %345 = vst [vmem:[%s317 + $0x34] sm:%s309] %v344
                  %v346 = vld [vmem:[%s316 + $0x38] sm:%s309]
                  %347 = vst [vmem:[%s317 + $0x38] sm:%s309] %v346
                  %v348 = vld [vmem:[%s316 + $0x3c] sm:%s309]
                  %349 = vst [vmem:[%s317 + $0x3c] sm:%s309] %v348
                  %v350 = vld [vmem:[%s316 + $0x40] sm:%s309]
                  %351 = vst [vmem:[%s317 + $0x40] sm:%s309] %v350
                  %v352 = vld [vmem:[%s316 + $0x44] sm:%s309]
                  %353 = vst [vmem:[%s317 + $0x44] sm:%s309] %v352
                  %v354 = vld [vmem:[%s316 + $0x90] sm:%s309]
                  %355 = vst [vmem:[%s317 + $0x48] sm:%s309] %v354
                  %v356 = vld [vmem:[%s316 + $0x94] sm:%s309]
                  %357 = vst [vmem:[%s317 + $0x4c] sm:%s309] %v356
                  %v358 = vld [vmem:[%s316 + $0x98] sm:%s309]
                  %359 = vst [vmem:[%s317 + $0x50] sm:%s309] %v358
                  %v360 = vld [vmem:[%s316 + $0x9c] sm:%s309]
                  %361 = vst [vmem:[%s317 + $0x54] sm:%s309] %v360
                  %v362 = vld [vmem:[%s316 + $0xa0] sm:%s309]
                  %363 = vst [vmem:[%s317 + $0x58] sm:%s309] %v362
                  %v364 = vld [vmem:[%s316 + $0xa4] sm:%s309]
                  %365 = vst [vmem:[%s317 + $0x5c] sm:%s309] %v364
                  %v366 = vld [vmem:[%s316 + $0xa8] sm:%s309]
                  %367 = vst [vmem:[%s317 + $0x60] sm:%s309] %v366
                  %v368 = vld [vmem:[%s316 + $0xac] sm:%s309]
                  %369 = vst [vmem:[%s317 + $0x64] sm:%s309] %v368
                  %v370 = vld [vmem:[%s316 + $0xb0] sm:%s309]
                  %371 = vst [vmem:[%s317 + $0x68] sm:%s309] %v370
                  %v372 = vld [vmem:[%s316 + $0xb4] sm:%s309]
                  %373 = vst [vmem:[%s317 + $0x6c] sm:%s309] %v372
                  %v374 = vld [vmem:[%s316 + $0xb8] sm:%s309]
                  %375 = vst [vmem:[%s317 + $0x70] sm:%s309] %v374
                  %v376 = vld [vmem:[%s316 + $0xbc] sm:%s309]
                  %377 = vst [vmem:[%s317 + $0x74] sm:%s309] %v376
                  %v378 = vld [vmem:[%s316 + $0xc0] sm:%s309]
                  %379 = vst [vmem:[%s317 + $0x78] sm:%s309] %v378
                  %v380 = vld [vmem:[%s316 + $0xc4] sm:%s309]
                  %381 = vst [vmem:[%s317 + $0x7c] sm:%s309] %v380
                  %v382 = vld [vmem:[%s316 + $0xc8] sm:%s309]
                  %383 = vst [vmem:[%s317 + $0x80] sm:%s309] %v382
                  %v384 = vld [vmem:[%s316 + $0xcc] sm:%s309]
                  %385 = vst [vmem:[%s317 + $0x84] sm:%s309] %v384
                  %v386 = vld [vmem:[%s316 + $0xd0] sm:%s309]
                  %387 = vst [vmem:[%s317 + $0x88] sm:%s309] %v386
                  %v388 = vld [vmem:[%s316 + $0xd4] sm:%s309]
                  %389 = vst [vmem:[%s317 + $0x8c] sm:%s309] %v388
                  %v390 = vld [vmem:[%s316 + $0x120] sm:%s309]
                  %391 = vst [vmem:[%s317 + $0x90] sm:%s309] %v390
                  %v392 = vld [vmem:[%s316 + $0x124] sm:%s309]
                  %393 = vst [vmem:[%s317 + $0x94] sm:%s309] %v392
                  %v394 = vld [vmem:[%s316 + $0x128] sm:%s309]
                  %395 = vst [vmem:[%s317 + $0x98] sm:%s309] %v394
                  %v396 = vld [vmem:[%s316 + $0x12c] sm:%s309]
                  %397 = vst [vmem:[%s317 + $0x9c] sm:%s309] %v396
                  %v398 = vld [vmem:[%s316 + $0x130] sm:%s309]
                  %399 = vst [vmem:[%s317 + $0xa0] sm:%s309] %v398
                  %v400 = vld [vmem:[%s316 + $0x134] sm:%s309]
                  %401 = vst [vmem:[%s317 + $0xa4] sm:%s309] %v400
                  %v402 = vld [vmem:[%s316 + $0x138] sm:%s309]
                  %403 = vst [vmem:[%s317 + $0xa8] sm:%s309] %v402
                  %v404 = vld [vmem:[%s316 + $0x13c] sm:%s309]
                  %405 = vst [vmem:[%s317 + $0xac] sm:%s309] %v404
                  %v406 = vld [vmem:[%s316 + $0x140] sm:%s309]
                  %407 = vst [vmem:[%s317 + $0xb0] sm:%s309] %v406
                  %v408 = vld [vmem:[%s316 + $0x144] sm:%s309]
                  %409 = vst [vmem:[%s317 + $0xb4] sm:%s309] %v408
                  %v410 = vld [vmem:[%s316 + $0x148] sm:%s309]
                  %411 = vst [vmem:[%s317 + $0xb8] sm:%s309] %v410
                  %v412 = vld [vmem:[%s316 + $0x14c] sm:%s309]
                  %413 = vst [vmem:[%s317 + $0xbc] sm:%s309] %v412
                  %v414 = vld [vmem:[%s316 + $0x150] sm:%s309]
                  %415 = vst [vmem:[%s317 + $0xc0] sm:%s309] %v414
                  %v416 = vld [vmem:[%s316 + $0x154] sm:%s309]
                  %417 = vst [vmem:[%s317 + $0xc4] sm:%s309] %v416
                  %v418 = vld [vmem:[%s316 + $0x158] sm:%s309]
                  %419 = vst [vmem:[%s317 + $0xc8] sm:%s309] %v418
                  %v420 = vld [vmem:[%s316 + $0x15c] sm:%s309]
                  %421 = vst [vmem:[%s317 + $0xcc] sm:%s309] %v420
                  %v422 = vld [vmem:[%s316 + $0x160] sm:%s309]
                  %423 = vst [vmem:[%s317 + $0xd0] sm:%s309] %v422
                  %v424 = vld [vmem:[%s316 + $0x164] sm:%s309]
                  %425 = vst [vmem:[%s317 + $0xd4] sm:%s309] %v424
                  %v426 = vld [vmem:[%s316 + $0x1b0] sm:%s309]
                  %427 = vst [vmem:[%s317 + $0xd8] sm:%s309] %v426
                  %v428 = vld [vmem:[%s316 + $0x1b4] sm:%s309]
                  %429 = vst [vmem:[%s317 + $0xdc] sm:%s309] %v428
                  %v430 = vld [vmem:[%s316 + $0x1b8] sm:%s309]
                  %431 = vst [vmem:[%s317 + $0xe0] sm:%s309] %v430
                  %v432 = vld [vmem:[%s316 + $0x1bc] sm:%s309]
                  %433 = vst [vmem:[%s317 + $0xe4] sm:%s309] %v432
                  %v434 = vld [vmem:[%s316 + $0x1c0] sm:%s309]
                  %435 = vst [vmem:[%s317 + $0xe8] sm:%s309] %v434
                  %v436 = vld [vmem:[%s316 + $0x1c4] sm:%s309]
                  %437 = vst [vmem:[%s317 + $0xec] sm:%s309] %v436
                  %v438 = vld [vmem:[%s316 + $0x1c8] sm:%s309]
                  %439 = vst [vmem:[%s317 + $0xf0] sm:%s309] %v438
                  %v440 = vld [vmem:[%s316 + $0x1cc] sm:%s309]
                  %441 = vst [vmem:[%s317 + $0xf4] sm:%s309] %v440
                  %v442 = vld [vmem:[%s316 + $0x1d0] sm:%s309]
                  %443 = vst [vmem:[%s317 + $0xf8] sm:%s309] %v442
                  %v444 = vld [vmem:[%s316 + $0x1d4] sm:%s309]
                  %445 = vst [vmem:[%s317 + $0xfc] sm:%s309] %v444
                  %v446 = vld [vmem:[%s316 + $0x1d8] sm:%s309]
                  %447 = vst [vmem:[%s317 + $0x100] sm:%s309] %v446
                  %v448 = vld [vmem:[%s316 + $0x1dc] sm:%s309]
                  %449 = vst [vmem:[%s317 + $0x104] sm:%s309] %v448
                  %v450 = vld [vmem:[%s316 + $0x1e0] sm:%s309]
                  %451 = vst [vmem:[%s317 + $0x108] sm:%s309] %v450
                  %v452 = vld [vmem:[%s316 + $0x1e4] sm:%s309]
                  %453 = vst [vmem:[%s317 + $0x10c] sm:%s309] %v452
                  %v454 = vld [vmem:[%s316 + $0x1e8] sm:%s309]
                  %455 = vst [vmem:[%s317 + $0x110] sm:%s309] %v454
                  %v456 = vld [vmem:[%s316 + $0x1ec] sm:%s309]
                  %457 = vst [vmem:[%s317 + $0x114] sm:%s309] %v456
                  %v458 = vld [vmem:[%s316 + $0x1f0] sm:%s309]
                  %459 = vst [vmem:[%s317 + $0x118] sm:%s309] %v458
                  %v460 = vld [vmem:[%s316 + $0x1f4] sm:%s309]
                  %461 = vst [vmem:[%s317 + $0x11c] sm:%s309] %v460
                $region63: #{l0_model_cnn_forward.3} parent=50 // loop_footer
                  %s315 = sadd.s32 1, %s311
                $region64: #{l0_model_cnn_forward.3} parent=50 // loop_footer_branch
                  %310 = sbr.rel target = $region60
                $region65: #{l0_model_cnn_forward.3} parent=50 // loop_exit
                  _
              $region51: #{l0_model_cnn_forward.3} parent=35 // pred_fallthru
                _
            $region36: #{l0_model_cnn_forward.3} parent=31 // pred_fallthru
              _
            // Predicated region
            $region37: #{l0_model_cnn_forward.3} parent=31 // pred_check
              _
            $region38: #{l0_model_cnn_forward.3} parent=31 // pred_check_branch
              %143 = sbr.rel (0) target = $region40
            $region39: #{l0_model_cnn_forward.3} parent=31 // pred_region
              %s145 = ssub.s32 16, 1
              loop: start=0, step=1, limit=1
              $region41: #{l0_model_cnn_forward.3} parent=39 // loop_pre_header
                _
              $region42: #{l0_model_cnn_forward.3} parent=39 // loop_header
                %s147 = sphi 0, %s151
                %p148 = scmp.ge.s32.totalorder %s147, 1
                %s152 = sphi %s137, %s137
                %s153 = sphi %s134, %s134
              $region43: #{l0_model_cnn_forward.3} parent=39 // loop_header_branch
                %150 = sbr.rel (%p148) target = $region47
              $region44: #{l0_model_cnn_forward.3} parent=39 // loop_body
                %v154 = vld [vmem:[%s152] sm:%s145]
                %155 = vst [vmem:[%s153] sm:%s145] %v154
                %v156 = vld [vmem:[%s152 + $0x4] sm:%s145]
                %157 = vst [vmem:[%s153 + $0x4] sm:%s145] %v156
                %v158 = vld [vmem:[%s152 + $0x8] sm:%s145]
                %159 = vst [vmem:[%s153 + $0x8] sm:%s145] %v158
                %v160 = vld [vmem:[%s152 + $0xc] sm:%s145]
                %161 = vst [vmem:[%s153 + $0xc] sm:%s145] %v160
                %v162 = vld [vmem:[%s152 + $0x10] sm:%s145]
                %163 = vst [vmem:[%s153 + $0x10] sm:%s145] %v162
                %v164 = vld [vmem:[%s152 + $0x14] sm:%s145]
                %165 = vst [vmem:[%s153 + $0x14] sm:%s145] %v164
                %v166 = vld [vmem:[%s152 + $0x18] sm:%s145]
                %167 = vst [vmem:[%s153 + $0x18] sm:%s145] %v166
                %v168 = vld [vmem:[%s152 + $0x1c] sm:%s145]
                %169 = vst [vmem:[%s153 + $0x1c] sm:%s145] %v168
                %v170 = vld [vmem:[%s152 + $0x20] sm:%s145]
                %171 = vst [vmem:[%s153 + $0x20] sm:%s145] %v170
                %v172 = vld [vmem:[%s152 + $0x24] sm:%s145]
                %173 = vst [vmem:[%s153 + $0x24] sm:%s145] %v172
                %v174 = vld [vmem:[%s152 + $0x28] sm:%s145]
                %175 = vst [vmem:[%s153 + $0x28] sm:%s145] %v174
                %v176 = vld [vmem:[%s152 + $0x2c] sm:%s145]
                %177 = vst [vmem:[%s153 + $0x2c] sm:%s145] %v176
                %v178 = vld [vmem:[%s152 + $0x30] sm:%s145]
                %179 = vst [vmem:[%s153 + $0x30] sm:%s145] %v178
                %v180 = vld [vmem:[%s152 + $0x34] sm:%s145]
                %181 = vst [vmem:[%s153 + $0x34] sm:%s145] %v180
                %v182 = vld [vmem:[%s152 + $0x38] sm:%s145]
                %183 = vst [vmem:[%s153 + $0x38] sm:%s145] %v182
                %v184 = vld [vmem:[%s152 + $0x3c] sm:%s145]
                %185 = vst [vmem:[%s153 + $0x3c] sm:%s145] %v184
                %v186 = vld [vmem:[%s152 + $0x40] sm:%s145]
                %187 = vst [vmem:[%s153 + $0x40] sm:%s145] %v186
                %v188 = vld [vmem:[%s152 + $0x44] sm:%s145]
                %189 = vst [vmem:[%s153 + $0x44] sm:%s145] %v188
                %v190 = vld [vmem:[%s152 + $0x90] sm:%s145]
                %191 = vst [vmem:[%s153 + $0x48] sm:%s145] %v190
                %v192 = vld [vmem:[%s152 + $0x94] sm:%s145]
                %193 = vst [vmem:[%s153 + $0x4c] sm:%s145] %v192
                %v194 = vld [vmem:[%s152 + $0x98] sm:%s145]
                %195 = vst [vmem:[%s153 + $0x50] sm:%s145] %v194
                %v196 = vld [vmem:[%s152 + $0x9c] sm:%s145]
                %197 = vst [vmem:[%s153 + $0x54] sm:%s145] %v196
                %v198 = vld [vmem:[%s152 + $0xa0] sm:%s145]
                %199 = vst [vmem:[%s153 + $0x58] sm:%s145] %v198
                %v200 = vld [vmem:[%s152 + $0xa4] sm:%s145]
                %201 = vst [vmem:[%s153 + $0x5c] sm:%s145] %v200
                %v202 = vld [vmem:[%s152 + $0xa8] sm:%s145]
                %203 = vst [vmem:[%s153 + $0x60] sm:%s145] %v202
                %v204 = vld [vmem:[%s152 + $0xac] sm:%s145]
                %205 = vst [vmem:[%s153 + $0x64] sm:%s145] %v204
                %v206 = vld [vmem:[%s152 + $0xb0] sm:%s145]
                %207 = vst [vmem:[%s153 + $0x68] sm:%s145] %v206
                %v208 = vld [vmem:[%s152 + $0xb4] sm:%s145]
                %209 = vst [vmem:[%s153 + $0x6c] sm:%s145] %v208
                %v210 = vld [vmem:[%s152 + $0xb8] sm:%s145]
                %211 = vst [vmem:[%s153 + $0x70] sm:%s145] %v210
                %v212 = vld [vmem:[%s152 + $0xbc] sm:%s145]
                %213 = vst [vmem:[%s153 + $0x74] sm:%s145] %v212
                %v214 = vld [vmem:[%s152 + $0xc0] sm:%s145]
                %215 = vst [vmem:[%s153 + $0x78] sm:%s145] %v214
                %v216 = vld [vmem:[%s152 + $0xc4] sm:%s145]
                %217 = vst [vmem:[%s153 + $0x7c] sm:%s145] %v216
                %v218 = vld [vmem:[%s152 + $0xc8] sm:%s145]
                %219 = vst [vmem:[%s153 + $0x80] sm:%s145] %v218
                %v220 = vld [vmem:[%s152 + $0xcc] sm:%s145]
                %221 = vst [vmem:[%s153 + $0x84] sm:%s145] %v220
                %v222 = vld [vmem:[%s152 + $0xd0] sm:%s145]
                %223 = vst [vmem:[%s153 + $0x88] sm:%s145] %v222
                %v224 = vld [vmem:[%s152 + $0xd4] sm:%s145]
                %225 = vst [vmem:[%s153 + $0x8c] sm:%s145] %v224
                %v226 = vld [vmem:[%s152 + $0x120] sm:%s145]
                %227 = vst [vmem:[%s153 + $0x90] sm:%s145] %v226
                %v228 = vld [vmem:[%s152 + $0x124] sm:%s145]
                %229 = vst [vmem:[%s153 + $0x94] sm:%s145] %v228
                %v230 = vld [vmem:[%s152 + $0x128] sm:%s145]
                %231 = vst [vmem:[%s153 + $0x98] sm:%s145] %v230
                %v232 = vld [vmem:[%s152 + $0x12c] sm:%s145]
                %233 = vst [vmem:[%s153 + $0x9c] sm:%s145] %v232
                %v234 = vld [vmem:[%s152 + $0x130] sm:%s145]
                %235 = vst [vmem:[%s153 + $0xa0] sm:%s145] %v234
                %v236 = vld [vmem:[%s152 + $0x134] sm:%s145]
                %237 = vst [vmem:[%s153 + $0xa4] sm:%s145] %v236
                %v238 = vld [vmem:[%s152 + $0x138] sm:%s145]
                %239 = vst [vmem:[%s153 + $0xa8] sm:%s145] %v238
                %v240 = vld [vmem:[%s152 + $0x13c] sm:%s145]
                %241 = vst [vmem:[%s153 + $0xac] sm:%s145] %v240
                %v242 = vld [vmem:[%s152 + $0x140] sm:%s145]
                %243 = vst [vmem:[%s153 + $0xb0] sm:%s145] %v242
                %v244 = vld [vmem:[%s152 + $0x144] sm:%s145]
                %245 = vst [vmem:[%s153 + $0xb4] sm:%s145] %v244
                %v246 = vld [vmem:[%s152 + $0x148] sm:%s145]
                %247 = vst [vmem:[%s153 + $0xb8] sm:%s145] %v246
                %v248 = vld [vmem:[%s152 + $0x14c] sm:%s145]
                %249 = vst [vmem:[%s153 + $0xbc] sm:%s145] %v248
                %v250 = vld [vmem:[%s152 + $0x150] sm:%s145]
                %251 = vst [vmem:[%s153 + $0xc0] sm:%s145] %v250
                %v252 = vld [vmem:[%s152 + $0x154] sm:%s145]
                %253 = vst [vmem:[%s153 + $0xc4] sm:%s145] %v252
                %v254 = vld [vmem:[%s152 + $0x158] sm:%s145]
                %255 = vst [vmem:[%s153 + $0xc8] sm:%s145] %v254
                %v256 = vld [vmem:[%s152 + $0x15c] sm:%s145]
                %257 = vst [vmem:[%s153 + $0xcc] sm:%s145] %v256
                %v258 = vld [vmem:[%s152 + $0x160] sm:%s145]
                %259 = vst [vmem:[%s153 + $0xd0] sm:%s145] %v258
                %v260 = vld [vmem:[%s152 + $0x164] sm:%s145]
                %261 = vst [vmem:[%s153 + $0xd4] sm:%s145] %v260
                %v262 = vld [vmem:[%s152 + $0x1b0] sm:%s145]
                %263 = vst [vmem:[%s153 + $0xd8] sm:%s145] %v262
                %v264 = vld [vmem:[%s152 + $0x1b4] sm:%s145]
                %265 = vst [vmem:[%s153 + $0xdc] sm:%s145] %v264
                %v266 = vld [vmem:[%s152 + $0x1b8] sm:%s145]
                %267 = vst [vmem:[%s153 + $0xe0] sm:%s145] %v266
                %v268 = vld [vmem:[%s152 + $0x1bc] sm:%s145]
                %269 = vst [vmem:[%s153 + $0xe4] sm:%s145] %v268
                %v270 = vld [vmem:[%s152 + $0x1c0] sm:%s145]
                %271 = vst [vmem:[%s153 + $0xe8] sm:%s145] %v270
                %v272 = vld [vmem:[%s152 + $0x1c4] sm:%s145]
                %273 = vst [vmem:[%s153 + $0xec] sm:%s145] %v272
                %v274 = vld [vmem:[%s152 + $0x1c8] sm:%s145]
                %275 = vst [vmem:[%s153 + $0xf0] sm:%s145] %v274
                %v276 = vld [vmem:[%s152 + $0x1cc] sm:%s145]
                %277 = vst [vmem:[%s153 + $0xf4] sm:%s145] %v276
                %v278 = vld [vmem:[%s152 + $0x1d0] sm:%s145]
                %279 = vst [vmem:[%s153 + $0xf8] sm:%s145] %v278
                %v280 = vld [vmem:[%s152 + $0x1d4] sm:%s145]
                %281 = vst [vmem:[%s153 + $0xfc] sm:%s145] %v280
                %v282 = vld [vmem:[%s152 + $0x1d8] sm:%s145]
                %283 = vst [vmem:[%s153 + $0x100] sm:%s145] %v282
                %v284 = vld [vmem:[%s152 + $0x1dc] sm:%s145]
                %285 = vst [vmem:[%s153 + $0x104] sm:%s145] %v284
                %v286 = vld [vmem:[%s152 + $0x1e0] sm:%s145]
                %287 = vst [vmem:[%s153 + $0x108] sm:%s145] %v286
                %v288 = vld [vmem:[%s152 + $0x1e4] sm:%s145]
                %289 = vst [vmem:[%s153 + $0x10c] sm:%s145] %v288
                %v290 = vld [vmem:[%s152 + $0x1e8] sm:%s145]
                %291 = vst [vmem:[%s153 + $0x110] sm:%s145] %v290
                %v292 = vld [vmem:[%s152 + $0x1ec] sm:%s145]
                %293 = vst [vmem:[%s153 + $0x114] sm:%s145] %v292
                %v294 = vld [vmem:[%s152 + $0x1f0] sm:%s145]
                %295 = vst [vmem:[%s153 + $0x118] sm:%s145] %v294
                %v296 = vld [vmem:[%s152 + $0x1f4] sm:%s145]
                %297 = vst [vmem:[%s153 + $0x11c] sm:%s145] %v296
              $region45: #{l0_model_cnn_forward.3} parent=39 // loop_footer
                %s151 = sadd.s32 1, %s147
              $region46: #{l0_model_cnn_forward.3} parent=39 // loop_footer_branch
                %146 = sbr.rel target = $region42
              $region47: #{l0_model_cnn_forward.3} parent=39 // loop_exit
                _
            $region40: #{l0_model_cnn_forward.3} parent=31 // pred_fallthru
              _
          $region32: #{l0_model_cnn_forward.3} parent=27 // pred_fallthru
            _
          %462 = vnop
        $region28: #{l0_model_cnn_forward.3} parent=23 // pred_fallthru
          _
      $region24: #{l0_model_cnn_forward.3} parent=5 // pred_fallthru
        _
      %p463 = scmp.le.s32.totalorder 1, %s9
      %p464 = scmp.lt.s32.totalorder %s9, 3
      %p465 = pnand %p463, %p464
      %p466 = pneg %p465
      // Predicated region
      $region66: #{l0_model_cnn_forward.3} parent=5 // pred_check
        _
      $region67: #{l0_model_cnn_forward.3} parent=5 // pred_check_branch
        %468 = sbr.rel (%p465) target = $region69
      $region68: #{l0_model_cnn_forward.3} parent=5 // pred_region
        %s469 = ssub.s32 %s9, 1
        %s470 = sand.u32 %s22, 1
        %s471 = sand.u32 %s22, 1
        %s472 = smul.addr %s471, 288
        %s473 = scalar_lea.vmem [#allocation2], %s472
        // Predicated region
        $region70: #{l0_model_cnn_forward.3} parent=68 // pred_check
          %p474 = pneg %p35
        $region71: #{l0_model_cnn_forward.3} parent=68 // pred_check_branch
          %476 = sbr.rel (%p474) target = $region73
        $region72: #{l0_model_cnn_forward.3} parent=68 // pred_region
          _
        $region73: #{l0_model_cnn_forward.3} parent=68 // pred_fallthru
          _
        %s477 = sand.u32 %s22, 1
        %s478 = sand.u32 %s22, 1
        %s479 = smul.addr %s478, 288
        %s480 = scalar_lea.vmem [#allocation2], %s479
        %p481 = pneg %p35
        %p482 = pneg %p32
        %p483 = pneg %p56
        %p484 = pneg %p53
        %p485 = pneg %p77
        %p486 = pneg %p74
        %p487 = pneg %p103
        %p488 = pneg %p100
        %s489 = smul.u32 18, %s14
        %p490 = scmp.lt.s32.totalorder %s489, 35
        %s491 = scalar_select %p490, %s489, 35
        %s492 = smul.addr %s491, 4
        %s493 = scalar_lea.vmem %s3, %s492
        %s494 = smul.u32 18, %s14
        %s495 = smul.u32 18, %s14
        %p496 = scmp.lt.s32.totalorder %s495, 35
        %s497 = scalar_select %p496, %s495, 35
        %s498 = smul.addr %s497, 4
        %s499 = scalar_lea.vmem %s3, %s498
        %s500 = smul.u32 18, %s14
        %v502 = vld [vmem:[%s473] sm:$0xf]
        %v503 = vld [vmem:[%s473 + $0x4] sm:$0xf]
        %v504 = vld [vmem:[%s473 + $0x8] sm:$0xf]
        %v505 = vld [vmem:[%s473 + $0xc] sm:$0xf]
        %v506 = vld [vmem:[%s473 + $0x10] sm:$0xf]
        %v507 = vld [vmem:[%s473 + $0x14] sm:$0xf]
        %v508 = vld [vmem:[%s473 + $0x18] sm:$0xf]
        %v509 = vld [vmem:[%s473 + $0x1c] sm:$0xf]
        %v510 = vld [vmem:[%s473 + $0x20] sm:$0xf]
        %v511 = vld [vmem:[%s473 + $0x24] sm:$0xf]
        %v512 = vld [vmem:[%s473 + $0x28] sm:$0xf]
        %v513 = vld [vmem:[%s473 + $0x2c] sm:$0xf]
        %v514 = vld [vmem:[%s473 + $0x30] sm:$0xf]
        %v515 = vld [vmem:[%s473 + $0x34] sm:$0xf]
        %v516 = vld [vmem:[%s473 + $0x38] sm:$0xf]
        %v517 = vld [vmem:[%s473 + $0x3c] sm:$0xf]
        %v518 = vld [vmem:[%s473 + $0x40] sm:$0xf]
        %v519 = vld [vmem:[%s473 + $0x44] sm:$0xf]
        %v520 = vld [vmem:[%s473 + $0x48] sm:$0xf]
        %v521 = vld [vmem:[%s473 + $0x4c] sm:$0xf]
        %v522 = vld [vmem:[%s473 + $0x50] sm:$0xf]
        %v523 = vld [vmem:[%s473 + $0x54] sm:$0xf]
        %v524 = vld [vmem:[%s473 + $0x58] sm:$0xf]
        %v525 = vld [vmem:[%s473 + $0x5c] sm:$0xf]
        %v526 = vld [vmem:[%s473 + $0x60] sm:$0xf]
        %v527 = vld [vmem:[%s473 + $0x64] sm:$0xf]
        %v528 = vld [vmem:[%s473 + $0x68] sm:$0xf]
        %v529 = vld [vmem:[%s473 + $0x6c] sm:$0xf]
        %v530 = vld [vmem:[%s473 + $0x70] sm:$0xf]
        %v531 = vld [vmem:[%s473 + $0x74] sm:$0xf]
        %v532 = vld [vmem:[%s473 + $0x78] sm:$0xf]
        %v533 = vld [vmem:[%s473 + $0x7c] sm:$0xf]
        %v534 = vld [vmem:[%s473 + $0x80] sm:$0xf]
        %v535 = vld [vmem:[%s473 + $0x84] sm:$0xf]
        %v536 = vld [vmem:[%s473 + $0x88] sm:$0xf]
        %v537 = vld [vmem:[%s473 + $0x8c] sm:$0xf]
        %v538 = vld [vmem:[%s473 + $0x90] sm:$0xf]
        %v539 = vld [vmem:[%s473 + $0x94] sm:$0xf]
        %v540 = vld [vmem:[%s473 + $0x98] sm:$0xf]
        %v541 = vld [vmem:[%s473 + $0x9c] sm:$0xf]
        %v542 = vld [vmem:[%s473 + $0xa0] sm:$0xf]
        %v543 = vld [vmem:[%s473 + $0xa4] sm:$0xf]
        %v544 = vld [vmem:[%s473 + $0xa8] sm:$0xf]
        %v545 = vld [vmem:[%s473 + $0xac] sm:$0xf]
        %v546 = vld [vmem:[%s473 + $0xb0] sm:$0xf]
        %v547 = vld [vmem:[%s473 + $0xb4] sm:$0xf]
        %v548 = vld [vmem:[%s473 + $0xb8] sm:$0xf]
        %v549 = vld [vmem:[%s473 + $0xbc] sm:$0xf]
        %v550 = vld [vmem:[%s473 + $0xc0] sm:$0xf]
        %v551 = vld [vmem:[%s473 + $0xc4] sm:$0xf]
        %v552 = vld [vmem:[%s473 + $0xc8] sm:$0xf]
        %v553 = vld [vmem:[%s473 + $0xcc] sm:$0xf]
        %v554 = vld [vmem:[%s473 + $0xd0] sm:$0xf]
        %v555 = vld [vmem:[%s473 + $0xd4] sm:$0xf]
        %v556 = vld [vmem:[%s473 + $0xd8] sm:$0xf]
        %v557 = vld [vmem:[%s473 + $0xdc] sm:$0xf]
        %v558 = vld [vmem:[%s473 + $0xe0] sm:$0xf]
        %v559 = vld [vmem:[%s473 + $0xe4] sm:$0xf]
        %v560 = vld [vmem:[%s473 + $0xe8] sm:$0xf]
        %v561 = vld [vmem:[%s473 + $0xec] sm:$0xf]
        %v562 = vld [vmem:[%s473 + $0xf0] sm:$0xf]
        %v563 = vld [vmem:[%s473 + $0xf4] sm:$0xf]
        %v564 = vld [vmem:[%s473 + $0xf8] sm:$0xf]
        %v565 = vld [vmem:[%s473 + $0xfc] sm:$0xf]
        %v566 = vld [vmem:[%s473 + $0x100] sm:$0xf]
        %v567 = vld [vmem:[%s473 + $0x104] sm:$0xf]
        %v568 = vld [vmem:[%s473 + $0x108] sm:$0xf]
        %v569 = vld [vmem:[%s473 + $0x10c] sm:$0xf]
        %v570 = vld [vmem:[%s473 + $0x110] sm:$0xf]
        %v571 = vld [vmem:[%s473 + $0x114] sm:$0xf]
        %v572 = vld [vmem:[%s473 + $0x118] sm:$0xf]
        %v573 = vld [vmem:[%s473 + $0x11c] sm:$0xf]
        %v574 = vld [vmem:[%s1] sm:$0xf]
        %v575 = vld [vmem:[%s1 + $0x4] sm:$0xf]
        %v576 = vld [vmem:[%s1 + $0x8] sm:$0xf]
        %v577 = vld [vmem:[%s1 + $0xc] sm:$0x1]
        %v650 = vunpack.c.l.b16 %v502
        %v651 = vunpack.c.l.b16 %v503
        %v652 = vunpack.c.l.b16 %v504
        %v653 = vunpack.c.l.b16 %v505
        %v654 = vunpack.c.l.b16 %v506
        %v655 = vunpack.c.l.b16 %v507
        %v656 = vunpack.c.l.b16 %v508
        %v657 = vunpack.c.l.b16 %v509
        %v658 = vunpack.c.l.b16 %v510
        %v659 = vunpack.c.l.b16 %v511
        %v660 = vunpack.c.l.b16 %v512
        %v661 = vunpack.c.l.b16 %v513
        %v662 = vunpack.c.l.b16 %v514
        %v663 = vunpack.c.l.b16 %v515
        %v664 = vunpack.c.l.b16 %v516
        %v665 = vunpack.c.l.b16 %v517
        %v666 = vunpack.c.l.b16 %v518
        %v667 = vunpack.c.l.b16 %v519
        %v668 = vunpack.c.l.b16 %v520
        %v669 = vunpack.c.l.b16 %v521
        %v670 = vunpack.c.l.b16 %v522
        %v671 = vunpack.c.l.b16 %v523
        %v672 = vunpack.c.l.b16 %v524
        %v673 = vunpack.c.l.b16 %v525
        %v674 = vunpack.c.l.b16 %v526
        %v675 = vunpack.c.l.b16 %v527
        %v676 = vunpack.c.l.b16 %v528
        %v677 = vunpack.c.l.b16 %v529
        %v678 = vunpack.c.l.b16 %v530
        %v679 = vunpack.c.l.b16 %v531
        %v680 = vunpack.c.l.b16 %v532
        %v681 = vunpack.c.l.b16 %v533
        %v682 = vunpack.c.l.b16 %v534
        %v683 = vunpack.c.l.b16 %v535
        %v684 = vunpack.c.l.b16 %v536
        %v685 = vunpack.c.l.b16 %v537
        %v686 = vunpack.c.l.b16 %v538
        %v687 = vunpack.c.l.b16 %v539
        %v688 = vunpack.c.l.b16 %v540
        %v689 = vunpack.c.l.b16 %v541
        %v690 = vunpack.c.l.b16 %v542
        %v691 = vunpack.c.l.b16 %v543
        %v692 = vunpack.c.l.b16 %v544
        %v693 = vunpack.c.l.b16 %v545
        %v694 = vunpack.c.l.b16 %v546
        %v695 = vunpack.c.l.b16 %v547
        %v696 = vunpack.c.l.b16 %v548
        %v697 = vunpack.c.l.b16 %v549
        %v698 = vunpack.c.l.b16 %v550
        %v699 = vunpack.c.l.b16 %v551
        %v700 = vunpack.c.l.b16 %v552
        %v701 = vunpack.c.l.b16 %v553
        %v702 = vunpack.c.l.b16 %v554
        %v703 = vunpack.c.l.b16 %v555
        %v704 = vunpack.c.l.b16 %v556
        %v705 = vunpack.c.l.b16 %v557
        %v706 = vunpack.c.l.b16 %v558
        %v707 = vunpack.c.l.b16 %v559
        %v708 = vunpack.c.l.b16 %v560
        %v709 = vunpack.c.l.b16 %v561
        %v710 = vunpack.c.l.b16 %v562
        %v711 = vunpack.c.l.b16 %v563
        %v712 = vunpack.c.l.b16 %v564
        %v713 = vunpack.c.l.b16 %v565
        %v714 = vunpack.c.l.b16 %v566
        %v715 = vunpack.c.l.b16 %v567
        %v716 = vunpack.c.l.b16 %v568
        %v717 = vunpack.c.l.b16 %v569
        %v718 = vunpack.c.l.b16 %v570
        %v719 = vunpack.c.l.b16 %v571
        %v720 = vunpack.c.l.b16 %v572
        %v721 = vunpack.c.l.b16 %v573
        %v722 = vpack.c.b16 %v651, %v650
        %v723 = vpack.c.b16 %v653, %v652
        %v724 = vpack.c.b16 %v655, %v654
        %v725 = vpack.c.b16 %v657, %v656
        %v726 = vpack.c.b16 %v659, %v658
        %v727 = vpack.c.b16 %v661, %v660
        %v728 = vpack.c.b16 %v663, %v662
        %v729 = vpack.c.b16 %v665, %v664
        %v730 = vpack.c.b16 %v667, %v666
        %v731 = vpack.c.b16 %v669, %v668
        %v732 = vpack.c.b16 %v671, %v670
        %v733 = vpack.c.b16 %v673, %v672
        %v734 = vpack.c.b16 %v675, %v674
        %v735 = vpack.c.b16 %v677, %v676
        %v736 = vpack.c.b16 %v679, %v678
        %v737 = vpack.c.b16 %v681, %v680
        %v738 = vpack.c.b16 %v683, %v682
        %v739 = vpack.c.b16 %v685, %v684
        %v740 = vpack.c.b16 %v687, %v686
        %v741 = vpack.c.b16 %v689, %v688
        %v742 = vpack.c.b16 %v691, %v690
        %v743 = vpack.c.b16 %v693, %v692
        %v744 = vpack.c.b16 %v695, %v694
        %v745 = vpack.c.b16 %v697, %v696
        %v746 = vpack.c.b16 %v699, %v698
        %v747 = vpack.c.b16 %v701, %v700
        %v748 = vpack.c.b16 %v703, %v702
        %v749 = vpack.c.b16 %v705, %v704
        %v750 = vpack.c.b16 %v707, %v706
        %v751 = vpack.c.b16 %v709, %v708
        %v752 = vpack.c.b16 %v711, %v710
        %v753 = vpack.c.b16 %v713, %v712
        %v754 = vpack.c.b16 %v715, %v714
        %v755 = vpack.c.b16 %v717, %v716
        %v756 = vpack.c.b16 %v719, %v718
        %v757 = vpack.c.b16 %v721, %v720
        %v762 = vunpack.c.l.b16 %v574
        %v763 = vunpack.c.l.b16 %v575
        %v764 = vunpack.c.l.b16 %v576
        %v765 = vunpack.c.l.b16 %v577
        %v766 = vpack.c.b16 %v763, %v762
        %v767 = vpack.c.b16 %v765, %v764
        %vm769 = vcmask 203776
        %v771 = vsel %vm769, %v722, 0
        %v774 = vsel %vm769, %v723, 0
        %v777 = vsel %vm769, %v724, 0
        %v780 = vsel %vm769, %v725, 0
        %v783 = vsel %vm769, %v726, 0
        %v786 = vsel %vm769, %v727, 0
        %v789 = vsel %vm769, %v728, 0
        %v792 = vsel %vm769, %v729, 0
        %v795 = vsel %vm769, %v730, 0
        %v798 = vsel %vm769, %v731, 0
        %v801 = vsel %vm769, %v732, 0
        %v804 = vsel %vm769, %v733, 0
        %v807 = vsel %vm769, %v734, 0
        %v810 = vsel %vm769, %v735, 0
        %v813 = vsel %vm769, %v736, 0
        %v816 = vsel %vm769, %v737, 0
        %v819 = vsel %vm769, %v738, 0
        %v822 = vsel %vm769, %v739, 0
        %v825 = vsel %vm769, %v740, 0
        %v828 = vsel %vm769, %v741, 0
        %v831 = vsel %vm769, %v742, 0
        %v834 = vsel %vm769, %v743, 0
        %v837 = vsel %vm769, %v744, 0
        %v840 = vsel %vm769, %v745, 0
        %v843 = vsel %vm769, %v746, 0
        %v846 = vsel %vm769, %v747, 0
        %v849 = vsel %vm769, %v748, 0
        %v852 = vsel %vm769, %v749, 0
        %v855 = vsel %vm769, %v750, 0
        %v858 = vsel %vm769, %v751, 0
        %v861 = vsel %vm769, %v752, 0
        %v864 = vsel %vm769, %v753, 0
        %v867 = vsel %vm769, %v754, 0
        %v870 = vsel %vm769, %v755, 0
        %v873 = vsel %vm769, %v756, 0
        %v876 = vsel %vm769, %v757, 0
        %vm878 = vcmask 1043456
        %vm879 = vcmask 1044480
        %v880 = vsel %vm878, 4294967295, 65535
        %v881 = vsel %vm879, %v880, 0
        %v883 = vand.u32 %v767, %v881
        %885 = vmatpush.bf16.msra.mxu0 0
        %886 = vmatpush.bf16.msra.mxu0 0
        %887 = vmatpush.bf16.msra.mxu0 0
        %888 = vmatpush.bf16.msra.mxu0 0
        %889 = vmatpush.bf16.msra.mxu0 0
        %890 = vmatpush.bf16.msra.mxu0 0
        %891 = vmatpush.bf16.msra.mxu0 %v883
        %892 = vmatpush.bf16.msra.mxu0 %v766
        %893 = vmatmul.bf16.gmra.mxu0 %v771
        %v894 = vpop.f32.mrf.mxu0
        %v895 = vadd.f32 0.0, %v894
        %v896 = vpop.f32.mrf.mxu0
        %v897 = vadd.f32 0.0, %v896
        %898 = vmatmul.bf16.gmra.mxu0 %v774
        %v899 = vpop.f32.mrf.mxu0
        %v900 = vadd.f32 0.0, %v899
        %v901 = vpop.f32.mrf.mxu0
        %v902 = vadd.f32 0.0, %v901
        %903 = vmatmul.bf16.gmra.mxu0 %v777
        %v904 = vpop.f32.mrf.mxu0
        %v905 = vadd.f32 0.0, %v904
        %v906 = vpop.f32.mrf.mxu0
        %v907 = vadd.f32 0.0, %v906
        %908 = vmatmul.bf16.gmra.mxu0 %v780
        %v909 = vpop.f32.mrf.mxu0
        %v910 = vadd.f32 0.0, %v909
        %v911 = vpop.f32.mrf.mxu0
        %v912 = vadd.f32 0.0, %v911
        %913 = vmatmul.bf16.gmra.mxu0 %v783
        %v914 = vpop.f32.mrf.mxu0
        %v915 = vadd.f32 0.0, %v914
        %v916 = vpop.f32.mrf.mxu0
        %v917 = vadd.f32 0.0, %v916
        %918 = vmatmul.bf16.gmra.mxu0 %v786
        %v919 = vpop.f32.mrf.mxu0
        %v920 = vadd.f32 0.0, %v919
        %v921 = vpop.f32.mrf.mxu0
        %v922 = vadd.f32 0.0, %v921
        %923 = vmatmul.bf16.gmra.mxu0 %v789
        %v924 = vpop.f32.mrf.mxu0
        %v925 = vadd.f32 0.0, %v924
        %v926 = vpop.f32.mrf.mxu0
        %v927 = vadd.f32 0.0, %v926
        %928 = vmatmul.bf16.gmra.mxu0 %v792
        %v929 = vpop.f32.mrf.mxu0
        %v930 = vadd.f32 0.0, %v929
        %v931 = vpop.f32.mrf.mxu0
        %v932 = vadd.f32 0.0, %v931
        %933 = vmatmul.bf16.gmra.mxu0 %v795
        %v934 = vpop.f32.mrf.mxu0
        %v935 = vadd.f32 0.0, %v934
        %v936 = vpop.f32.mrf.mxu0
        %v937 = vadd.f32 0.0, %v936
        %938 = vmatmul.bf16.gmra.mxu0 %v798
        %v939 = vpop.f32.mrf.mxu0
        %v940 = vadd.f32 0.0, %v939
        %v941 = vpop.f32.mrf.mxu0
        %v942 = vadd.f32 0.0, %v941
        %943 = vmatmul.bf16.gmra.mxu0 %v801
        %v944 = vpop.f32.mrf.mxu0
        %v945 = vadd.f32 0.0, %v944
        %v946 = vpop.f32.mrf.mxu0
        %v947 = vadd.f32 0.0, %v946
        %948 = vmatmul.bf16.gmra.mxu0 %v804
        %v949 = vpop.f32.mrf.mxu0
        %v950 = vadd.f32 0.0, %v949
        %v951 = vpop.f32.mrf.mxu0
        %v952 = vadd.f32 0.0, %v951
        %953 = vmatmul.bf16.gmra.mxu0 %v807
        %v954 = vpop.f32.mrf.mxu0
        %v955 = vadd.f32 0.0, %v954
        %v956 = vpop.f32.mrf.mxu0
        %v957 = vadd.f32 0.0, %v956
        %958 = vmatmul.bf16.gmra.mxu0 %v810
        %v959 = vpop.f32.mrf.mxu0
        %v960 = vadd.f32 0.0, %v959
        %v961 = vpop.f32.mrf.mxu0
        %v962 = vadd.f32 0.0, %v961
        %963 = vmatmul.bf16.gmra.mxu0 %v813
        %v964 = vpop.f32.mrf.mxu0
        %v965 = vadd.f32 0.0, %v964
        %v966 = vpop.f32.mrf.mxu0
        %v967 = vadd.f32 0.0, %v966
        %968 = vmatmul.bf16.gmra.mxu0 %v816
        %v969 = vpop.f32.mrf.mxu0
        %v970 = vadd.f32 0.0, %v969
        %v971 = vpop.f32.mrf.mxu0
        %v972 = vadd.f32 0.0, %v971
        %973 = vmatmul.bf16.gmra.mxu0 %v819
        %v974 = vpop.f32.mrf.mxu0
        %v975 = vadd.f32 0.0, %v974
        %v976 = vpop.f32.mrf.mxu0
        %v977 = vadd.f32 0.0, %v976
        %978 = vmatmul.bf16.gmra.mxu0 %v822
        %v979 = vpop.f32.mrf.mxu0
        %v980 = vadd.f32 0.0, %v979
        %v981 = vpop.f32.mrf.mxu0
        %v982 = vadd.f32 0.0, %v981
        %983 = vmatmul.bf16.gmra.mxu0 %v825
        %v984 = vpop.f32.mrf.mxu0
        %v985 = vadd.f32 0.0, %v984
        %v986 = vpop.f32.mrf.mxu0
        %v987 = vadd.f32 0.0, %v986
        %988 = vmatmul.bf16.gmra.mxu0 %v828
        %v989 = vpop.f32.mrf.mxu0
        %v990 = vadd.f32 0.0, %v989
        %v991 = vpop.f32.mrf.mxu0
        %v992 = vadd.f32 0.0, %v991
        %993 = vmatmul.bf16.gmra.mxu0 %v831
        %v994 = vpop.f32.mrf.mxu0
        %v995 = vadd.f32 0.0, %v994
        %v996 = vpop.f32.mrf.mxu0
        %v997 = vadd.f32 0.0, %v996
        %998 = vmatmul.bf16.gmra.mxu0 %v834
        %v999 = vpop.f32.mrf.mxu0
        %v1000 = vadd.f32 0.0, %v999
        %v1001 = vpop.f32.mrf.mxu0
        %v1002 = vadd.f32 0.0, %v1001
        %1003 = vmatmul.bf16.gmra.mxu0 %v837
        %v1004 = vpop.f32.mrf.mxu0
        %v1005 = vadd.f32 0.0, %v1004
        %v1006 = vpop.f32.mrf.mxu0
        %v1007 = vadd.f32 0.0, %v1006
        %1008 = vmatmul.bf16.gmra.mxu0 %v840
        %v1009 = vpop.f32.mrf.mxu0
        %v1010 = vadd.f32 0.0, %v1009
        %v1011 = vpop.f32.mrf.mxu0
        %v1012 = vadd.f32 0.0, %v1011
        %1013 = vmatmul.bf16.gmra.mxu0 %v843
        %v1014 = vpop.f32.mrf.mxu0
        %v1015 = vadd.f32 0.0, %v1014
        %v1016 = vpop.f32.mrf.mxu0
        %v1017 = vadd.f32 0.0, %v1016
        %1018 = vmatmul.bf16.gmra.mxu0 %v846
        %v1019 = vpop.f32.mrf.mxu0
        %v1020 = vadd.f32 0.0, %v1019
        %v1021 = vpop.f32.mrf.mxu0
        %v1022 = vadd.f32 0.0, %v1021
        %1023 = vmatmul.bf16.gmra.mxu0 %v849
        %v1024 = vpop.f32.mrf.mxu0
        %v1025 = vadd.f32 0.0, %v1024
        %v1026 = vpop.f32.mrf.mxu0
        %v1027 = vadd.f32 0.0, %v1026
        %1028 = vmatmul.bf16.gmra.mxu0 %v852
        %v1029 = vpop.f32.mrf.mxu0
        %v1030 = vadd.f32 0.0, %v1029
        %v1031 = vpop.f32.mrf.mxu0
        %v1032 = vadd.f32 0.0, %v1031
        %1033 = vmatmul.bf16.gmra.mxu0 %v855
        %v1034 = vpop.f32.mrf.mxu0
        %v1035 = vadd.f32 0.0, %v1034
        %v1036 = vpop.f32.mrf.mxu0
        %v1037 = vadd.f32 0.0, %v1036
        %1038 = vmatmul.bf16.gmra.mxu0 %v858
        %v1039 = vpop.f32.mrf.mxu0
        %v1040 = vadd.f32 0.0, %v1039
        %v1041 = vpop.f32.mrf.mxu0
        %v1042 = vadd.f32 0.0, %v1041
        %1043 = vmatmul.bf16.gmra.mxu0 %v861
        %v1044 = vpop.f32.mrf.mxu0
        %v1045 = vadd.f32 0.0, %v1044
        %v1046 = vpop.f32.mrf.mxu0
        %v1047 = vadd.f32 0.0, %v1046
        %1048 = vmatmul.bf16.gmra.mxu0 %v864
        %v1049 = vpop.f32.mrf.mxu0
        %v1050 = vadd.f32 0.0, %v1049
        %v1051 = vpop.f32.mrf.mxu0
        %v1052 = vadd.f32 0.0, %v1051
        %1053 = vmatmul.bf16.gmra.mxu0 %v867
        %v1054 = vpop.f32.mrf.mxu0
        %v1055 = vadd.f32 0.0, %v1054
        %v1056 = vpop.f32.mrf.mxu0
        %v1057 = vadd.f32 0.0, %v1056
        %1058 = vmatmul.bf16.gmra.mxu0 %v870
        %v1059 = vpop.f32.mrf.mxu0
        %v1060 = vadd.f32 0.0, %v1059
        %v1061 = vpop.f32.mrf.mxu0
        %v1062 = vadd.f32 0.0, %v1061
        %1063 = vmatmul.bf16.gmra.mxu0 %v873
        %v1064 = vpop.f32.mrf.mxu0
        %v1065 = vadd.f32 0.0, %v1064
        %v1066 = vpop.f32.mrf.mxu0
        %v1067 = vadd.f32 0.0, %v1066
        %1068 = vmatmul.bf16.gmra.mxu0 %v876
        %v1069 = vpop.f32.mrf.mxu0
        %v1070 = vadd.f32 0.0, %v1069
        %v1071 = vpop.f32.mrf.mxu0
        %v1072 = vadd.f32 0.0, %v1071
        %1073 = vdwg.mxu0
        %v1074 = vmax.f32 %v895, %v940
        %v1075 = vmax.f32 %v897, %v942
        %v1076 = vmax.f32 %v900, %v945
        %v1077 = vmax.f32 %v902, %v947
        %v1078 = vmax.f32 %v905, %v950
        %v1079 = vmax.f32 %v907, %v952
        %v1080 = vmax.f32 %v910, %v955
        %v1081 = vmax.f32 %v912, %v957
        %v1082 = vmax.f32 %v915, %v960
        %v1083 = vmax.f32 %v917, %v962
        %v1084 = vmax.f32 %v920, %v965
        %v1085 = vmax.f32 %v922, %v967
        %v1086 = vmax.f32 %v925, %v970
        %v1087 = vmax.f32 %v927, %v972
        %v1088 = vmax.f32 %v930, %v975
        %v1089 = vmax.f32 %v932, %v977
        %v1090 = vmax.f32 %v935, %v980
        %v1091 = vmax.f32 %v937, %v982
        %v1092 = vmax.f32 %v985, %v1030
        %v1093 = vmax.f32 %v987, %v1032
        %v1094 = vmax.f32 %v990, %v1035
        %v1095 = vmax.f32 %v992, %v1037
        %v1096 = vmax.f32 %v995, %v1040
        %v1097 = vmax.f32 %v997, %v1042
        %v1098 = vmax.f32 %v1000, %v1045
        %v1099 = vmax.f32 %v1002, %v1047
        %v1100 = vmax.f32 %v1005, %v1050
        %v1101 = vmax.f32 %v1007, %v1052
        %v1102 = vmax.f32 %v1010, %v1055
        %v1103 = vmax.f32 %v1012, %v1057
        %v1104 = vmax.f32 %v1015, %v1060
        %v1105 = vmax.f32 %v1017, %v1062
        %v1106 = vmax.f32 %v1020, %v1065
        %v1107 = vmax.f32 %v1022, %v1067
        %v1108 = vmax.f32 %v1025, %v1070
        %v1109 = vmax.f32 %v1027, %v1072
        %v1110 = vmax.f32 %v1074, %v1092
        %v1111 = vmax.f32 %v1075, %v1093
        %v1112 = vmax.f32 %v1076, %v1094
        %v1113 = vmax.f32 %v1077, %v1095
        %v1114 = vmax.f32 %v1078, %v1096
        %v1115 = vmax.f32 %v1079, %v1097
        %v1116 = vmax.f32 %v1080, %v1098
        %v1117 = vmax.f32 %v1081, %v1099
        %v1118 = vmax.f32 %v1082, %v1100
        %v1119 = vmax.f32 %v1083, %v1101
        %v1120 = vmax.f32 %v1084, %v1102
        %v1121 = vmax.f32 %v1085, %v1103
        %v1122 = vmax.f32 %v1086, %v1104
        %v1123 = vmax.f32 %v1087, %v1105
        %v1124 = vmax.f32 %v1088, %v1106
        %v1125 = vmax.f32 %v1089, %v1107
        %v1126 = vmax.f32 %v1090, %v1108
        %v1127 = vmax.f32 %v1091, %v1109
        %v1128 = vmax.f32 %v1110, 0.0
        %v1129 = vmax.f32 %v1111, 0.0
        %v1130 = vmax.f32 %v1112, 0.0
        %v1131 = vmax.f32 %v1113, 0.0
        %v1132 = vmax.f32 %v1114, 0.0
        %v1133 = vmax.f32 %v1115, 0.0
        %v1134 = vmax.f32 %v1116, 0.0
        %v1135 = vmax.f32 %v1117, 0.0
        %v1136 = vmax.f32 %v1118, 0.0
        %v1137 = vmax.f32 %v1119, 0.0
        %v1138 = vmax.f32 %v1120, 0.0
        %v1139 = vmax.f32 %v1121, 0.0
        %v1140 = vmax.f32 %v1122, 0.0
        %v1141 = vmax.f32 %v1123, 0.0
        %v1142 = vmax.f32 %v1124, 0.0
        %v1143 = vmax.f32 %v1125, 0.0
        %v1144 = vmax.f32 %v1126, 0.0
        %v1145 = vmax.f32 %v1127, 0.0
        %v1146 = vld [vmem:[%s2] sm:$0x1]
        %v1147 = vsub.f32 0.0, %v1146
        %v1148 = vmul.f32 %v1147, 1.442695
        %v1149 = vpow.pop %v1148
        %v1150 = vadd.f32 %v1149, 1.0
        %v1151 = vrcp.pop %v1150
        %v1152 = vmul.f32 %v1150, %v1151
        %v1153 = vsub.f32 1.0, %v1152
        %v1154 = vmul.f32 %v1151, %v1153
        %v1155 = vadd.f32 %v1151, %v1154
        %vm1156 = vweird.f32 %v1150
        %vm1157 = vweird.f32 %v1151
        %vm1158 = vmor %vm1156, %vm1157
        %v1159 = vsel %vm1158, %v1151, %v1155
        %v1160 = vand.u32 2147483647, %v1150
        %vm1161 = vcmp.eq.f32.partialorder %v1160, 8.507059e+37
        %v1162 = vand.u32 %v1150, 2147483648
        %v1163 = vor.u32 1.1754944e-38, %v1162
        %v1164 = vsel %vm1161, %v1163, %v1159
        %v1165 = vmul.f32 1.0, %v1164
        %v1166 = vmul.f32 %v1165, 1.2
        %v1167 = vadd.f32 %v1166, -0.1
        %v1168 = vmax.f32 %v1167, 0.0
        %v1169 = vmin.f32 %v1168, 1.0
        %v1171 = vperm.slane %v1169, 0
        %v1173 = vmul.f32 %v1128, %v1171
        %v1174 = vmul.f32 %v1129, %v1171
        %v1175 = vmul.f32 %v1130, %v1171
        %v1176 = vmul.f32 %v1131, %v1171
        %v1177 = vmul.f32 %v1132, %v1171
        %v1178 = vmul.f32 %v1133, %v1171
        %v1179 = vmul.f32 %v1134, %v1171
        %v1180 = vmul.f32 %v1135, %v1171
        %v1181 = vmul.f32 %v1136, %v1171
        %v1182 = vmul.f32 %v1137, %v1171
        %v1183 = vmul.f32 %v1138, %v1171
        %v1184 = vmul.f32 %v1139, %v1171
        %v1185 = vmul.f32 %v1140, %v1171
        %v1186 = vmul.f32 %v1141, %v1171
        %v1187 = vmul.f32 %v1142, %v1171
        %v1188 = vmul.f32 %v1143, %v1171
        %v1189 = vmul.f32 %v1144, %v1171
        %v1190 = vmul.f32 %v1145, %v1171
        %v1191 = vpack.c.bf16 %v1173, %v1173
        %v1192 = vpack.c.bf16 %v1174, %v1174
        %v1193 = vpack.c.bf16 %v1175, %v1175
        %v1194 = vpack.c.bf16 %v1176, %v1176
        %v1195 = vpack.c.bf16 %v1177, %v1177
        %v1196 = vpack.c.bf16 %v1178, %v1178
        %v1197 = vpack.c.bf16 %v1179, %v1179
        %v1198 = vpack.c.bf16 %v1180, %v1180
        %v1199 = vpack.c.bf16 %v1181, %v1181
        %v1200 = vpack.c.bf16 %v1182, %v1182
        %v1201 = vpack.c.bf16 %v1183, %v1183
        %v1202 = vpack.c.bf16 %v1184, %v1184
        %v1203 = vpack.c.bf16 %v1185, %v1185
        %v1204 = vpack.c.bf16 %v1186, %v1186
        %v1205 = vpack.c.bf16 %v1187, %v1187
        %v1206 = vpack.c.bf16 %v1188, %v1188
        %v1207 = vpack.c.bf16 %v1189, %v1189
        %v1208 = vpack.c.bf16 %v1190, %v1190
        %vm1209 = vcmask 257024
        %1210 = vst.msk [vmem:[%s499] sm:$0xf] %vm1209, %v1191
        %1211 = vst.msk [vmem:[%s499 + $0x4] sm:$0xf] %vm1209, %v1192
        %1212 = vst.msk [vmem:[%s499 + $0x8] sm:$0xf] %vm1209, %v1193
        %1213 = vst.msk [vmem:[%s499 + $0xc] sm:$0xf] %vm1209, %v1194
        %1214 = vst.msk [vmem:[%s499 + $0x10] sm:$0xf] %vm1209, %v1195
        %1215 = vst.msk [vmem:[%s499 + $0x14] sm:$0xf] %vm1209, %v1196
        %1216 = vst.msk [vmem:[%s499 + $0x18] sm:$0xf] %vm1209, %v1197
        %1217 = vst.msk [vmem:[%s499 + $0x1c] sm:$0xf] %vm1209, %v1198
        %1218 = vst.msk [vmem:[%s499 + $0x20] sm:$0xf] %vm1209, %v1199
        %1219 = vst.msk [vmem:[%s499 + $0x24] sm:$0xf] %vm1209, %v1200
        %1220 = vst.msk [vmem:[%s499 + $0x28] sm:$0xf] %vm1209, %v1201
        %1221 = vst.msk [vmem:[%s499 + $0x2c] sm:$0xf] %vm1209, %v1202
        %1222 = vst.msk [vmem:[%s499 + $0x30] sm:$0xf] %vm1209, %v1203
        %1223 = vst.msk [vmem:[%s499 + $0x34] sm:$0xf] %vm1209, %v1204
        %1224 = vst.msk [vmem:[%s499 + $0x38] sm:$0xf] %vm1209, %v1205
        %1225 = vst.msk [vmem:[%s499 + $0x3c] sm:$0xf] %vm1209, %v1206
        %1226 = vst.msk [vmem:[%s499 + $0x40] sm:$0xf] %vm1209, %v1207
        %1227 = vst.msk [vmem:[%s499 + $0x44] sm:$0xf] %vm1209, %v1208
        %s1228 = smul.u32 18, %s14
        %p1229 = scmp.lt.s32.totalorder %s1228, 35
        %s1230 = scalar_select %p1229, %s1228, 35
        %s1231 = smul.addr %s1230, 4
        %s1232 = scalar_lea.vmem %s3, %s1231
        // Predicated region
        $region74: #{l0_model_cnn_forward.3} parent=68 // pred_check
          %p1233 = pneg %p100
        $region75: #{l0_model_cnn_forward.3} parent=68 // pred_check_branch
          %1235 = sbr.rel (%p1233) target = $region77
        $region76: #{l0_model_cnn_forward.3} parent=68 // pred_region
          %s1236 = smul.u32 18, %s14
        $region77: #{l0_model_cnn_forward.3} parent=68 // pred_fallthru
          _
      $region69: #{l0_model_cnn_forward.3} parent=5 // pred_fallthru
        _
      %p1237 = scmp.le.s32.totalorder 2, %s9
      // Predicated region
      $region78: #{l0_model_cnn_forward.3} parent=5 // pred_check
        %p1238 = pneg %p1237
      $region79: #{l0_model_cnn_forward.3} parent=5 // pred_check_branch
        %1240 = sbr.rel (%p1238) target = $region81
      $region80: #{l0_model_cnn_forward.3} parent=5 // pred_region
        %s1241 = ssub.s32 %s9, 2
        // Predicated region
        $region82: #{l0_model_cnn_forward.3} parent=80 // pred_check
          %p1242 = pneg %p106
        $region83: #{l0_model_cnn_forward.3} parent=80 // pred_check_branch
          %1244 = sbr.rel (%p1242) target = $region85
        $region84: #{l0_model_cnn_forward.3} parent=80 // pred_region
          %s1245 = smul.u32 18, %s15
          %p1246 = scmp.lt.s32.totalorder %s1245, 35
          %s1247 = scalar_select %p1246, %s1245, 35
          %s1248 = smul.addr %s1247, 4
          %s1249 = scalar_lea.vmem %s3, %s1248
        $region85: #{l0_model_cnn_forward.3} parent=80 // pred_fallthru
          _
      $region81: #{l0_model_cnn_forward.3} parent=5 // pred_fallthru
        _
    $region6: #{l0_model_cnn_forward.3} parent=1 // loop_footer
      %s13 = sadd.s32 1, %s9
    $region7: #{l0_model_cnn_forward.3} parent=1 // loop_footer_branch
      %8 = sbr.rel target = $region3
    $region8: #{l0_model_cnn_forward.3} parent=1 // loop_exit
      _

// kernel: l0_model_cnn_forward.4
$region0: #{l0_model_cnn_forward.4}
  #allocation0 [shape = 'u32[]', space=smem, size = 0x4, offset = 0x4, fixed_abs, tag = 'smem constant byte address 0x4 - core index']
  #allocation1 [shape = 'u32[72,128]{1,0:T(1,128)}', space=vmem, size = 0x9000, scoped, tag = 'internal scratch']
  %s0 = inlined_call_operand.vmem [shape: bf16[4,32,800], index: 0, kind: input, shape index: {}]
  %s1 = inlined_call_operand.vmem [shape: bf16[800,64], index: 1, kind: input, shape index: {}]
  %s2 = inlined_call_operand.vmem [shape: f32[1,64], index: 2, kind: input, shape index: {}]
  %s3 = inlined_call_operand.vmem [shape: bf16[32,64], index: 3, kind: output, shape index: {}]
  %s4 = sld [smem:[#allocation0]]
  $region22: #{l0_model_cnn_forward.4} parent=0
    _
  %s6 = ssub.s32 1, %s4
  %s7 = scalar_select 0, %s6, %s4
  // Predicated region
  $region2: #{l0_model_cnn_forward.4} parent=0 // pred_check
    _
  $region3: #{l0_model_cnn_forward.4} parent=0 // pred_check_branch
    %9 = sbr.rel (0) target = $region5
  $region4: #{l0_model_cnn_forward.4} parent=0 // pred_region
    _
  $region5: #{l0_model_cnn_forward.4} parent=0 // pred_fallthru
    _
  // Predicated region
  $region6: #{l0_model_cnn_forward.4} parent=0 // pred_check
    _
  $region7: #{l0_model_cnn_forward.4} parent=0 // pred_check_branch
    %11 = sbr.rel (0) target = $region9
  $region8: #{l0_model_cnn_forward.4} parent=0 // pred_region
    _
  $region9: #{l0_model_cnn_forward.4} parent=0 // pred_fallthru
    _
  // Predicated region
  $region10: #{l0_model_cnn_forward.4} parent=0 // pred_check
    _
  $region11: #{l0_model_cnn_forward.4} parent=0 // pred_check_branch
    %13 = sbr.rel (0) target = $region13
  $region12: #{l0_model_cnn_forward.4} parent=0 // pred_region
    _
  $region13: #{l0_model_cnn_forward.4} parent=0 // pred_fallthru
    _
  %v15 = vld [vmem:[%s0] sm:$0xff]
  %v16 = vld [vmem:[%s0 + $0x8] sm:$0xff]
  %v17 = vld [vmem:[%s0 + $0x10] sm:$0xff]
  %v18 = vld [vmem:[%s0 + $0x18] sm:$0xf]
  %v19 = vld [vmem:[%s0 + $0x1c] sm:$0xff]
  %v20 = vld [vmem:[%s0 + $0x24] sm:$0xff]
  %v21 = vld [vmem:[%s0 + $0x2c] sm:$0xff]
  %v22 = vld [vmem:[%s0 + $0x34] sm:$0xf]
  %v23 = vld [vmem:[%s0 + $0x38] sm:$0xff]
  %v24 = vld [vmem:[%s0 + $0x40] sm:$0xff]
  %v25 = vld [vmem:[%s0 + $0x48] sm:$0xff]
  %v26 = vld [vmem:[%s0 + $0x50] sm:$0xf]
  %v27 = vld [vmem:[%s0 + $0x54] sm:$0xff]
  %v28 = vld [vmem:[%s0 + $0x5c] sm:$0xff]
  %v29 = vld [vmem:[%s0 + $0x64] sm:$0xff]
  %v30 = vld [vmem:[%s0 + $0x6c] sm:$0xf]
  %v31 = vld [vmem:[%s0 + $0x70] sm:$0xff]
  %v32 = vld [vmem:[%s0 + $0x78] sm:$0xff]
  %v33 = vld [vmem:[%s0 + $0x80] sm:$0xff]
  %v34 = vld [vmem:[%s0 + $0x88] sm:$0xf]
  %v35 = vld [vmem:[%s0 + $0x8c] sm:$0xff]
  %v36 = vld [vmem:[%s0 + $0x94] sm:$0xff]
  %v37 = vld [vmem:[%s0 + $0x9c] sm:$0xff]
  %v38 = vld [vmem:[%s0 + $0xa4] sm:$0xf]
  %v39 = vld [vmem:[%s0 + $0xa8] sm:$0xff]
  %v40 = vld [vmem:[%s0 + $0xb0] sm:$0xff]
  %v41 = vld [vmem:[%s0 + $0xb8] sm:$0xff]
  %v42 = vld [vmem:[%s0 + $0xc0] sm:$0xf]
  %v43 = vld [vmem:[%s0 + $0xc4] sm:$0xff]
  %v44 = vld [vmem:[%s0 + $0xcc] sm:$0xff]
  %v45 = vld [vmem:[%s0 + $0xd4] sm:$0xff]
  %v46 = vld [vmem:[%s0 + $0xdc] sm:$0xf]
  %v47 = vld [vmem:[%s0 + $0xe0] sm:$0xff]
  %v48 = vld [vmem:[%s0 + $0xe8] sm:$0xff]
  %v49 = vld [vmem:[%s0 + $0xf0] sm:$0xff]
  %v50 = vld [vmem:[%s0 + $0xf8] sm:$0xf]
  %v51 = vld [vmem:[%s0 + $0xfc] sm:$0xff]
  %v52 = vld [vmem:[%s0 + $0x104] sm:$0xff]
  %v53 = vld [vmem:[%s0 + $0x10c] sm:$0xff]
  %v54 = vld [vmem:[%s0 + $0x114] sm:$0xf]
  %v55 = vld [vmem:[%s0 + $0x118] sm:$0xff]
  %v56 = vld [vmem:[%s0 + $0x120] sm:$0xff]
  %v57 = vld [vmem:[%s0 + $0x128] sm:$0xff]
  %v58 = vld [vmem:[%s0 + $0x130] sm:$0xf]
  %v59 = vld [vmem:[%s0 + $0x134] sm:$0xff]
  %v60 = vld [vmem:[%s0 + $0x13c] sm:$0xff]
  %v61 = vld [vmem:[%s0 + $0x144] sm:$0xff]
  %v62 = vld [vmem:[%s0 + $0x14c] sm:$0xf]
  %v63 = vld [vmem:[%s0 + $0x150] sm:$0xff]
  %v64 = vld [vmem:[%s0 + $0x158] sm:$0xff]
  %v65 = vld [vmem:[%s0 + $0x160] sm:$0xff]
  %v66 = vld [vmem:[%s0 + $0x168] sm:$0xf]
  %v67 = vld [vmem:[%s0 + $0x16c] sm:$0xff]
  %v68 = vld [vmem:[%s0 + $0x174] sm:$0xff]
  %v69 = vld [vmem:[%s0 + $0x17c] sm:$0xff]
  %v70 = vld [vmem:[%s0 + $0x184] sm:$0xf]
  %v71 = vld [vmem:[%s0 + $0x188] sm:$0xff]
  %v72 = vld [vmem:[%s0 + $0x190] sm:$0xff]
  %v73 = vld [vmem:[%s0 + $0x198] sm:$0xff]
  %v74 = vld [vmem:[%s0 + $0x1a0] sm:$0xf]
  %v75 = vld [vmem:[%s0 + $0x1a4] sm:$0xff]
  %v76 = vld [vmem:[%s0 + $0x1ac] sm:$0xff]
  %v77 = vld [vmem:[%s0 + $0x1b4] sm:$0xff]
  %v78 = vld [vmem:[%s0 + $0x1bc] sm:$0xf]
  %v79 = vld [vmem:[%s1] sm:$0xf]
  %v80 = vld [vmem:[%s1 + $0x4] sm:$0xf]
  %v81 = vld [vmem:[%s1 + $0x8] sm:$0xf]
  %v82 = vld [vmem:[%s1 + $0xc] sm:$0xf]
  %v83 = vld [vmem:[%s1 + $0x10] sm:$0xf]
  %v84 = vld [vmem:[%s1 + $0x14] sm:$0xf]
  %v85 = vld [vmem:[%s1 + $0x18] sm:$0xf]
  %v86 = vld [vmem:[%s1 + $0x1c] sm:$0xf]
  %v87 = vld [vmem:[%s1 + $0x20] sm:$0xf]
  %v88 = vld [vmem:[%s1 + $0x24] sm:$0xf]
  %v89 = vld [vmem:[%s1 + $0x28] sm:$0xf]
  %v90 = vld [vmem:[%s1 + $0x2c] sm:$0xf]
  %v91 = vld [vmem:[%s1 + $0x30] sm:$0xf]
  %v92 = vld [vmem:[%s1 + $0x34] sm:$0xf]
  %v93 = vld [vmem:[%s1 + $0x38] sm:$0xf]
  %v94 = vld [vmem:[%s1 + $0x3c] sm:$0xf]
  %v95 = vld [vmem:[%s1 + $0x40] sm:$0xf]
  %v96 = vld [vmem:[%s1 + $0x44] sm:$0xf]
  %v97 = vld [vmem:[%s1 + $0x48] sm:$0xf]
  %v98 = vld [vmem:[%s1 + $0x4c] sm:$0xf]
  %v99 = vld [vmem:[%s1 + $0x50] sm:$0xf]
  %v100 = vld [vmem:[%s1 + $0x54] sm:$0xf]
  %v101 = vld [vmem:[%s1 + $0x58] sm:$0xf]
  %v102 = vld [vmem:[%s1 + $0x5c] sm:$0xf]
  %v103 = vld [vmem:[%s1 + $0x60] sm:$0xf]
  %v104 = vld [vmem:[%s1 + $0x64] sm:$0xf]
  %v105 = vld [vmem:[%s1 + $0x68] sm:$0xf]
  %v106 = vld [vmem:[%s1 + $0x6c] sm:$0xf]
  %v107 = vld [vmem:[%s1 + $0x70] sm:$0xf]
  %v108 = vld [vmem:[%s1 + $0x74] sm:$0xf]
  %v109 = vld [vmem:[%s1 + $0x78] sm:$0xf]
  %v110 = vld [vmem:[%s1 + $0x7c] sm:$0xf]
  %v111 = vld [vmem:[%s1 + $0x80] sm:$0xf]
  %v112 = vld [vmem:[%s1 + $0x84] sm:$0xf]
  %v113 = vld [vmem:[%s1 + $0x88] sm:$0xf]
  %v114 = vld [vmem:[%s1 + $0x8c] sm:$0xf]
  %v115 = vld [vmem:[%s1 + $0x90] sm:$0xf]
  %v116 = vld [vmem:[%s1 + $0x94] sm:$0xf]
  %v117 = vld [vmem:[%s1 + $0x98] sm:$0xf]
  %v118 = vld [vmem:[%s1 + $0x9c] sm:$0xf]
  %v119 = vld [vmem:[%s1 + $0xa0] sm:$0xf]
  %v120 = vld [vmem:[%s1 + $0xa4] sm:$0xf]
  %v121 = vld [vmem:[%s1 + $0xa8] sm:$0xf]
  %v122 = vld [vmem:[%s1 + $0xac] sm:$0xf]
  %v123 = vld [vmem:[%s1 + $0xb0] sm:$0xf]
  %v124 = vld [vmem:[%s1 + $0xb4] sm:$0xf]
  %v125 = vld [vmem:[%s1 + $0xb8] sm:$0xf]
  %v126 = vld [vmem:[%s1 + $0xbc] sm:$0xf]
  %v127 = vld [vmem:[%s1 + $0xc0] sm:$0xf]
  %v128 = vld [vmem:[%s1 + $0xc4] sm:$0xf]
  %v129 = vld [vmem:[%s1 + $0xc8] sm:$0xf]
  %v130 = vld [vmem:[%s1 + $0xcc] sm:$0xf]
  %v131 = vld [vmem:[%s1 + $0xd0] sm:$0xf]
  %v132 = vld [vmem:[%s1 + $0xd4] sm:$0xf]
  %v133 = vld [vmem:[%s1 + $0xd8] sm:$0xf]
  %v134 = vld [vmem:[%s1 + $0xdc] sm:$0xf]
  %v135 = vld [vmem:[%s1 + $0xe0] sm:$0xf]
  %v136 = vld [vmem:[%s1 + $0xe4] sm:$0xf]
  %v137 = vld [vmem:[%s1 + $0xe8] sm:$0xf]
  %v138 = vld [vmem:[%s1 + $0xec] sm:$0xf]
  %v139 = vld [vmem:[%s1 + $0xf0] sm:$0xf]
  %v140 = vld [vmem:[%s1 + $0xf4] sm:$0xf]
  %v141 = vld [vmem:[%s1 + $0xf8] sm:$0xf]
  %v142 = vld [vmem:[%s1 + $0xfc] sm:$0xf]
  %v143 = vld [vmem:[%s1 + $0x100] sm:$0xf]
  %v144 = vld [vmem:[%s1 + $0x104] sm:$0xf]
  %v145 = vld [vmem:[%s1 + $0x108] sm:$0xf]
  %v146 = vld [vmem:[%s1 + $0x10c] sm:$0xf]
  %v147 = vld [vmem:[%s1 + $0x110] sm:$0xf]
  %v148 = vld [vmem:[%s1 + $0x114] sm:$0xf]
  %v149 = vld [vmem:[%s1 + $0x118] sm:$0xf]
  %v150 = vld [vmem:[%s1 + $0x11c] sm:$0xf]
  %v151 = vld [vmem:[%s1 + $0x120] sm:$0xf]
  %v152 = vld [vmem:[%s1 + $0x124] sm:$0xf]
  %v153 = vld [vmem:[%s1 + $0x128] sm:$0xf]
  %v154 = vld [vmem:[%s1 + $0x12c] sm:$0xf]
  %v155 = vld [vmem:[%s1 + $0x130] sm:$0xf]
  %v156 = vld [vmem:[%s1 + $0x134] sm:$0xf]
  %v157 = vld [vmem:[%s1 + $0x138] sm:$0xf]
  %v158 = vld [vmem:[%s1 + $0x13c] sm:$0xf]
  %v159 = vld [vmem:[%s1 + $0x140] sm:$0xf]
  %v160 = vld [vmem:[%s1 + $0x144] sm:$0xf]
  %v161 = vld [vmem:[%s1 + $0x148] sm:$0xf]
  %v162 = vld [vmem:[%s1 + $0x14c] sm:$0xf]
  %v163 = vld [vmem:[%s1 + $0x150] sm:$0xf]
  %v164 = vld [vmem:[%s1 + $0x154] sm:$0xf]
  %v165 = vld [vmem:[%s1 + $0x158] sm:$0xf]
  %v166 = vld [vmem:[%s1 + $0x15c] sm:$0xf]
  %v167 = vld [vmem:[%s1 + $0x160] sm:$0xf]
  %v168 = vld [vmem:[%s1 + $0x164] sm:$0xf]
  %v169 = vld [vmem:[%s1 + $0x168] sm:$0xf]
  %v170 = vld [vmem:[%s1 + $0x16c] sm:$0xf]
  %v171 = vld [vmem:[%s1 + $0x170] sm:$0xf]
  %v172 = vld [vmem:[%s1 + $0x174] sm:$0xf]
  %v173 = vld [vmem:[%s1 + $0x178] sm:$0xf]
  %v174 = vld [vmem:[%s1 + $0x17c] sm:$0xf]
  %v175 = vld [vmem:[%s1 + $0x180] sm:$0xf]
  %v176 = vld [vmem:[%s1 + $0x184] sm:$0xf]
  %v177 = vld [vmem:[%s1 + $0x188] sm:$0xf]
  %v178 = vld [vmem:[%s1 + $0x18c] sm:$0xf]
  %v243 = vunpack.c.l.b16 %v15
  %v244 = vunpack.c.h.b16 %v15
  %v245 = vunpack.c.l.b16 %v16
  %v246 = vunpack.c.h.b16 %v16
  %v247 = vunpack.c.l.b16 %v17
  %v248 = vunpack.c.h.b16 %v17
  %v249 = vunpack.c.l.b16 %v18
  %v250 = vunpack.c.l.b16 %v19
  %v251 = vunpack.c.h.b16 %v19
  %v252 = vunpack.c.l.b16 %v20
  %v253 = vunpack.c.h.b16 %v20
  %v254 = vunpack.c.l.b16 %v21
  %v255 = vunpack.c.h.b16 %v21
  %v256 = vunpack.c.l.b16 %v22
  %v257 = vunpack.c.l.b16 %v23
  %v258 = vunpack.c.h.b16 %v23
  %v259 = vunpack.c.l.b16 %v24
  %v260 = vunpack.c.h.b16 %v24
  %v261 = vunpack.c.l.b16 %v25
  %v262 = vunpack.c.h.b16 %v25
  %v263 = vunpack.c.l.b16 %v26
  %v264 = vunpack.c.l.b16 %v27
  %v265 = vunpack.c.h.b16 %v27
  %v266 = vunpack.c.l.b16 %v28
  %v267 = vunpack.c.h.b16 %v28
  %v268 = vunpack.c.l.b16 %v29
  %v269 = vunpack.c.h.b16 %v29
  %v270 = vunpack.c.l.b16 %v30
  %v271 = vunpack.c.l.b16 %v31
  %v272 = vunpack.c.h.b16 %v31
  %v273 = vunpack.c.l.b16 %v32
  %v274 = vunpack.c.h.b16 %v32
  %v275 = vunpack.c.l.b16 %v33
  %v276 = vunpack.c.h.b16 %v33
  %v277 = vunpack.c.l.b16 %v34
  %v278 = vunpack.c.l.b16 %v35
  %v279 = vunpack.c.h.b16 %v35
  %v280 = vunpack.c.l.b16 %v36
  %v281 = vunpack.c.h.b16 %v36
  %v282 = vunpack.c.l.b16 %v37
  %v283 = vunpack.c.h.b16 %v37
  %v284 = vunpack.c.l.b16 %v38
  %v285 = vunpack.c.l.b16 %v39
  %v286 = vunpack.c.h.b16 %v39
  %v287 = vunpack.c.l.b16 %v40
  %v288 = vunpack.c.h.b16 %v40
  %v289 = vunpack.c.l.b16 %v41
  %v290 = vunpack.c.h.b16 %v41
  %v291 = vunpack.c.l.b16 %v42
  %v292 = vunpack.c.l.b16 %v43
  %v293 = vunpack.c.h.b16 %v43
  %v294 = vunpack.c.l.b16 %v44
  %v295 = vunpack.c.h.b16 %v44
  %v296 = vunpack.c.l.b16 %v45
  %v297 = vunpack.c.h.b16 %v45
  %v298 = vunpack.c.l.b16 %v46
  %v299 = vunpack.c.l.b16 %v47
  %v300 = vunpack.c.h.b16 %v47
  %v301 = vunpack.c.l.b16 %v48
  %v302 = vunpack.c.h.b16 %v48
  %v303 = vunpack.c.l.b16 %v49
  %v304 = vunpack.c.h.b16 %v49
  %v305 = vunpack.c.l.b16 %v50
  %v306 = vunpack.c.l.b16 %v51
  %v307 = vunpack.c.h.b16 %v51
  %v308 = vunpack.c.l.b16 %v52
  %v309 = vunpack.c.h.b16 %v52
  %v310 = vunpack.c.l.b16 %v53
  %v311 = vunpack.c.h.b16 %v53
  %v312 = vunpack.c.l.b16 %v54
  %v313 = vunpack.c.l.b16 %v55
  %v314 = vunpack.c.h.b16 %v55
  %v315 = vunpack.c.l.b16 %v56
  %v316 = vunpack.c.h.b16 %v56
  %v317 = vunpack.c.l.b16 %v57
  %v318 = vunpack.c.h.b16 %v57
  %v319 = vunpack.c.l.b16 %v58
  %v320 = vunpack.c.l.b16 %v59
  %v321 = vunpack.c.h.b16 %v59
  %v322 = vunpack.c.l.b16 %v60
  %v323 = vunpack.c.h.b16 %v60
  %v324 = vunpack.c.l.b16 %v61
  %v325 = vunpack.c.h.b16 %v61
  %v326 = vunpack.c.l.b16 %v62
  %v327 = vunpack.c.l.b16 %v63
  %v328 = vunpack.c.h.b16 %v63
  %v329 = vunpack.c.l.b16 %v64
  %v330 = vunpack.c.h.b16 %v64
  %v331 = vunpack.c.l.b16 %v65
  %v332 = vunpack.c.h.b16 %v65
  %v333 = vunpack.c.l.b16 %v66
  %v334 = vunpack.c.l.b16 %v67
  %v335 = vunpack.c.h.b16 %v67
  %v336 = vunpack.c.l.b16 %v68
  %v337 = vunpack.c.h.b16 %v68
  %v338 = vunpack.c.l.b16 %v69
  %v339 = vunpack.c.h.b16 %v69
  %v340 = vunpack.c.l.b16 %v70
  %v341 = vunpack.c.l.b16 %v71
  %v342 = vunpack.c.h.b16 %v71
  %v343 = vunpack.c.l.b16 %v72
  %v344 = vunpack.c.h.b16 %v72
  %v345 = vunpack.c.l.b16 %v73
  %v346 = vunpack.c.h.b16 %v73
  %v347 = vunpack.c.l.b16 %v74
  %v348 = vunpack.c.l.b16 %v75
  %v349 = vunpack.c.h.b16 %v75
  %v350 = vunpack.c.l.b16 %v76
  %v351 = vunpack.c.h.b16 %v76
  %v352 = vunpack.c.l.b16 %v77
  %v353 = vunpack.c.h.b16 %v77
  %v354 = vunpack.c.l.b16 %v78
  %v355 = vpack.c.b16 %v250, %v243
  %v356 = vpack.c.b16 %v251, %v244
  %v357 = vpack.c.b16 %v252, %v245
  %v358 = vpack.c.b16 %v253, %v246
  %v359 = vpack.c.b16 %v254, %v247
  %v360 = vpack.c.b16 %v255, %v248
  %v361 = vpack.c.b16 %v256, %v249
  %v362 = vpack.c.b16 %v264, %v257
  %v363 = vpack.c.b16 %v265, %v258
  %v364 = vpack.c.b16 %v266, %v259
  %v365 = vpack.c.b16 %v267, %v260
  %v366 = vpack.c.b16 %v268, %v261
  %v367 = vpack.c.b16 %v269, %v262
  %v368 = vpack.c.b16 %v270, %v263
  %v369 = vpack.c.b16 %v278, %v271
  %v370 = vpack.c.b16 %v279, %v272
  %v371 = vpack.c.b16 %v280, %v273
  %v372 = vpack.c.b16 %v281, %v274
  %v373 = vpack.c.b16 %v282, %v275
  %v374 = vpack.c.b16 %v283, %v276
  %v375 = vpack.c.b16 %v284, %v277
  %v376 = vpack.c.b16 %v292, %v285
  %v377 = vpack.c.b16 %v293, %v286
  %v378 = vpack.c.b16 %v294, %v287
  %v379 = vpack.c.b16 %v295, %v288
  %v380 = vpack.c.b16 %v296, %v289
  %v381 = vpack.c.b16 %v297, %v290
  %v382 = vpack.c.b16 %v298, %v291
  %v383 = vpack.c.b16 %v306, %v299
  %v384 = vpack.c.b16 %v307, %v300
  %v385 = vpack.c.b16 %v308, %v301
  %v386 = vpack.c.b16 %v309, %v302
  %v387 = vpack.c.b16 %v310, %v303
  %v388 = vpack.c.b16 %v311, %v304
  %v389 = vpack.c.b16 %v312, %v305
  %v390 = vpack.c.b16 %v320, %v313
  %v391 = vpack.c.b16 %v321, %v314
  %v392 = vpack.c.b16 %v322, %v315
  %v393 = vpack.c.b16 %v323, %v316
  %v394 = vpack.c.b16 %v324, %v317
  %v395 = vpack.c.b16 %v325, %v318
  %v396 = vpack.c.b16 %v326, %v319
  %v397 = vpack.c.b16 %v334, %v327
  %v398 = vpack.c.b16 %v335, %v328
  %v399 = vpack.c.b16 %v336, %v329
  %v400 = vpack.c.b16 %v337, %v330
  %v401 = vpack.c.b16 %v338, %v331
  %v402 = vpack.c.b16 %v339, %v332
  %v403 = vpack.c.b16 %v340, %v333
  %v404 = vpack.c.b16 %v348, %v341
  %v405 = vpack.c.b16 %v349, %v342
  %v406 = vpack.c.b16 %v350, %v343
  %v407 = vpack.c.b16 %v351, %v344
  %v408 = vpack.c.b16 %v352, %v345
  %v409 = vpack.c.b16 %v353, %v346
  %v410 = vpack.c.b16 %v354, %v347
  %v559 = vunpack.c.l.b16 %v79
  %v560 = vunpack.c.l.b16 %v80
  %v561 = vunpack.c.l.b16 %v81
  %v562 = vunpack.c.l.b16 %v82
  %v563 = vunpack.c.l.b16 %v83
  %v564 = vunpack.c.l.b16 %v84
  %v565 = vunpack.c.l.b16 %v85
  %v566 = vunpack.c.l.b16 %v86
  %v567 = vunpack.c.l.b16 %v87
  %v568 = vunpack.c.l.b16 %v88
  %v569 = vunpack.c.l.b16 %v89
  %v570 = vunpack.c.l.b16 %v90
  %v571 = vunpack.c.l.b16 %v91
  %v572 = vunpack.c.l.b16 %v92
  %v573 = vunpack.c.l.b16 %v93
  %v574 = vunpack.c.l.b16 %v94
  %v575 = vunpack.c.l.b16 %v95
  %v576 = vunpack.c.l.b16 %v96
  %v577 = vunpack.c.l.b16 %v97
  %v578 = vunpack.c.l.b16 %v98
  %v579 = vunpack.c.l.b16 %v99
  %v580 = vunpack.c.l.b16 %v100
  %v581 = vunpack.c.l.b16 %v101
  %v582 = vunpack.c.l.b16 %v102
  %v583 = vunpack.c.l.b16 %v103
  %v584 = vunpack.c.l.b16 %v104
  %v585 = vunpack.c.l.b16 %v105
  %v586 = vunpack.c.l.b16 %v106
  %v587 = vunpack.c.l.b16 %v107
  %v588 = vunpack.c.l.b16 %v108
  %v589 = vunpack.c.l.b16 %v109
  %v590 = vunpack.c.l.b16 %v110
  %v591 = vunpack.c.l.b16 %v111
  %v592 = vunpack.c.l.b16 %v112
  %v593 = vunpack.c.l.b16 %v113
  %v594 = vunpack.c.l.b16 %v114
  %v595 = vunpack.c.l.b16 %v115
  %v596 = vunpack.c.l.b16 %v116
  %v597 = vunpack.c.l.b16 %v117
  %v598 = vunpack.c.l.b16 %v118
  %v599 = vunpack.c.l.b16 %v119
  %v600 = vunpack.c.l.b16 %v120
  %v601 = vunpack.c.l.b16 %v121
  %v602 = vunpack.c.l.b16 %v122
  %v603 = vunpack.c.l.b16 %v123
  %v604 = vunpack.c.l.b16 %v124
  %v605 = vunpack.c.l.b16 %v125
  %v606 = vunpack.c.l.b16 %v126
  %v607 = vunpack.c.l.b16 %v127
  %v608 = vunpack.c.l.b16 %v128
  %v609 = vunpack.c.l.b16 %v129
  %v610 = vunpack.c.l.b16 %v130
  %v611 = vunpack.c.l.b16 %v131
  %v612 = vunpack.c.l.b16 %v132
  %v613 = vunpack.c.l.b16 %v133
  %v614 = vunpack.c.l.b16 %v134
  %v615 = vunpack.c.l.b16 %v135
  %v616 = vunpack.c.l.b16 %v136
  %v617 = vunpack.c.l.b16 %v137
  %v618 = vunpack.c.l.b16 %v138
  %v619 = vunpack.c.l.b16 %v139
  %v620 = vunpack.c.l.b16 %v140
  %v621 = vunpack.c.l.b16 %v141
  %v622 = vunpack.c.l.b16 %v142
  %v623 = vunpack.c.l.b16 %v143
  %v624 = vunpack.c.l.b16 %v144
  %v625 = vunpack.c.l.b16 %v145
  %v626 = vunpack.c.l.b16 %v146
  %v627 = vunpack.c.l.b16 %v147
  %v628 = vunpack.c.l.b16 %v148
  %v629 = vunpack.c.l.b16 %v149
  %v630 = vunpack.c.l.b16 %v150
  %v631 = vunpack.c.l.b16 %v151
  %v632 = vunpack.c.l.b16 %v152
  %v633 = vunpack.c.l.b16 %v153
  %v634 = vunpack.c.l.b16 %v154
  %v635 = vunpack.c.l.b16 %v155
  %v636 = vunpack.c.l.b16 %v156
  %v637 = vunpack.c.l.b16 %v157
  %v638 = vunpack.c.l.b16 %v158
  %v639 = vunpack.c.l.b16 %v159
  %v640 = vunpack.c.l.b16 %v160
  %v641 = vunpack.c.l.b16 %v161
  %v642 = vunpack.c.l.b16 %v162
  %v643 = vunpack.c.l.b16 %v163
  %v644 = vunpack.c.l.b16 %v164
  %v645 = vunpack.c.l.b16 %v165
  %v646 = vunpack.c.l.b16 %v166
  %v647 = vunpack.c.l.b16 %v167
  %v648 = vunpack.c.l.b16 %v168
  %v649 = vunpack.c.l.b16 %v169
  %v650 = vunpack.c.l.b16 %v170
  %v651 = vunpack.c.l.b16 %v171
  %v652 = vunpack.c.l.b16 %v172
  %v653 = vunpack.c.l.b16 %v173
  %v654 = vunpack.c.l.b16 %v174
  %v655 = vunpack.c.l.b16 %v175
  %v656 = vunpack.c.l.b16 %v176
  %v657 = vunpack.c.l.b16 %v177
  %v658 = vunpack.c.l.b16 %v178
  %v659 = vpack.c.b16 %v560, %v559
  %v660 = vpack.c.b16 %v562, %v561
  %v661 = vpack.c.b16 %v564, %v563
  %v662 = vpack.c.b16 %v566, %v565
  %v663 = vpack.c.b16 %v568, %v567
  %v664 = vpack.c.b16 %v570, %v569
  %v665 = vpack.c.b16 %v572, %v571
  %v666 = vpack.c.b16 %v574, %v573
  %v667 = vpack.c.b16 %v576, %v575
  %v668 = vpack.c.b16 %v578, %v577
  %v669 = vpack.c.b16 %v580, %v579
  %v670 = vpack.c.b16 %v582, %v581
  %v671 = vpack.c.b16 %v584, %v583
  %v672 = vpack.c.b16 %v586, %v585
  %v673 = vpack.c.b16 %v588, %v587
  %v674 = vpack.c.b16 %v590, %v589
  %v675 = vpack.c.b16 %v592, %v591
  %v676 = vpack.c.b16 %v594, %v593
  %v677 = vpack.c.b16 %v596, %v595
  %v678 = vpack.c.b16 %v598, %v597
  %v679 = vpack.c.b16 %v600, %v599
  %v680 = vpack.c.b16 %v602, %v601
  %v681 = vpack.c.b16 %v604, %v603
  %v682 = vpack.c.b16 %v606, %v605
  %v683 = vpack.c.b16 %v608, %v607
  %v684 = vpack.c.b16 %v610, %v609
  %v685 = vpack.c.b16 %v612, %v611
  %v686 = vpack.c.b16 %v614, %v613
  %v687 = vpack.c.b16 %v616, %v615
  %v688 = vpack.c.b16 %v618, %v617
  %v689 = vpack.c.b16 %v620, %v619
  %v690 = vpack.c.b16 %v622, %v621
  %v691 = vpack.c.b16 %v624, %v623
  %v692 = vpack.c.b16 %v626, %v625
  %v693 = vpack.c.b16 %v628, %v627
  %v694 = vpack.c.b16 %v630, %v629
  %v695 = vpack.c.b16 %v632, %v631
  %v696 = vpack.c.b16 %v634, %v633
  %v697 = vpack.c.b16 %v636, %v635
  %v698 = vpack.c.b16 %v638, %v637
  %v699 = vpack.c.b16 %v640, %v639
  %v700 = vpack.c.b16 %v642, %v641
  %v701 = vpack.c.b16 %v644, %v643
  %v702 = vpack.c.b16 %v646, %v645
  %v703 = vpack.c.b16 %v648, %v647
  %v704 = vpack.c.b16 %v650, %v649
  %v705 = vpack.c.b16 %v652, %v651
  %v706 = vpack.c.b16 %v654, %v653
  %v707 = vpack.c.b16 %v656, %v655
  %v708 = vpack.c.b16 %v658, %v657
  %vm759 = vcmask 261120
  %v761 = vsel %vm759, %v361, 0
  %v764 = vsel %vm759, %v368, 0
  %v767 = vsel %vm759, %v375, 0
  %v770 = vsel %vm759, %v382, 0
  %v773 = vsel %vm759, %v389, 0
  %v776 = vsel %vm759, %v396, 0
  %v779 = vsel %vm759, %v403, 0
  %v782 = vsel %vm759, %v410, 0
  %784 = vmatpush.bf16.msra.mxu0 %v666
  %785 = vmatpush.bf16.msra.mxu0 %v665
  %786 = vmatpush.bf16.msra.mxu0 %v664
  %787 = vmatpush.bf16.msra.mxu0 %v663
  %788 = vmatpush.bf16.msra.mxu0 %v662
  %789 = vmatpush.bf16.msra.mxu0 %v661
  %790 = vmatpush.bf16.msra.mxu0 %v660
  %791 = vmatpush.bf16.msra.mxu0 %v659
  %792 = vmatmul.bf16.gmra.mxu0 %v355
  %v793 = vpop.f32.mrf.mxu0
  %v794 = vadd.f32 0.0, %v793
  %v795 = vpop.f32.mrf.mxu0
  %v796 = vadd.f32 0.0, %v795
  %797 = vmatmul.bf16.gmra.mxu0 %v362
  %v798 = vpop.f32.mrf.mxu0
  %v799 = vadd.f32 0.0, %v798
  %v800 = vpop.f32.mrf.mxu0
  %v801 = vadd.f32 0.0, %v800
  %802 = vmatmul.bf16.gmra.mxu0 %v369
  %v803 = vpop.f32.mrf.mxu0
  %v804 = vadd.f32 0.0, %v803
  %v805 = vpop.f32.mrf.mxu0
  %v806 = vadd.f32 0.0, %v805
  %807 = vmatmul.bf16.gmra.mxu0 %v376
  %v808 = vpop.f32.mrf.mxu0
  %v809 = vadd.f32 0.0, %v808
  %v810 = vpop.f32.mrf.mxu0
  %v811 = vadd.f32 0.0, %v810
  %812 = vmatmul.bf16.gmra.mxu0 %v383
  %v813 = vpop.f32.mrf.mxu0
  %v814 = vadd.f32 0.0, %v813
  %v815 = vpop.f32.mrf.mxu0
  %v816 = vadd.f32 0.0, %v815
  %817 = vmatmul.bf16.gmra.mxu0 %v390
  %v818 = vpop.f32.mrf.mxu0
  %v819 = vadd.f32 0.0, %v818
  %v820 = vpop.f32.mrf.mxu0
  %v821 = vadd.f32 0.0, %v820
  %822 = vmatmul.bf16.gmra.mxu0 %v397
  %v823 = vpop.f32.mrf.mxu0
  %v824 = vadd.f32 0.0, %v823
  %v825 = vpop.f32.mrf.mxu0
  %v826 = vadd.f32 0.0, %v825
  %827 = vmatmul.bf16.gmra.mxu0 %v404
  %v828 = vpop.f32.mrf.mxu0
  %v829 = vadd.f32 0.0, %v828
  %v830 = vpop.f32.mrf.mxu0
  %v831 = vadd.f32 0.0, %v830
  %832 = vdwg.mxu0
  %833 = vmatpush.bf16.msra.mxu0 %v674
  %834 = vmatpush.bf16.msra.mxu0 %v673
  %835 = vmatpush.bf16.msra.mxu0 %v672
  %836 = vmatpush.bf16.msra.mxu0 %v671
  %837 = vmatpush.bf16.msra.mxu0 %v670
  %838 = vmatpush.bf16.msra.mxu0 %v669
  %839 = vmatpush.bf16.msra.mxu0 %v668
  %840 = vmatpush.bf16.msra.mxu0 %v667
  %841 = vmatmul.bf16.gmra.mxu0 %v356
  %v842 = vpop.f32.mrf.mxu0
  %v843 = vadd.f32 %v794, %v842
  %v844 = vpop.f32.mrf.mxu0
  %v845 = vadd.f32 %v796, %v844
  %846 = vmatmul.bf16.gmra.mxu0 %v363
  %v847 = vpop.f32.mrf.mxu0
  %v848 = vadd.f32 %v799, %v847
  %v849 = vpop.f32.mrf.mxu0
  %v850 = vadd.f32 %v801, %v849
  %851 = vmatmul.bf16.gmra.mxu0 %v370
  %v852 = vpop.f32.mrf.mxu0
  %v853 = vadd.f32 %v804, %v852
  %v854 = vpop.f32.mrf.mxu0
  %v855 = vadd.f32 %v806, %v854
  %856 = vmatmul.bf16.gmra.mxu0 %v377
  %v857 = vpop.f32.mrf.mxu0
  %v858 = vadd.f32 %v809, %v857
  %v859 = vpop.f32.mrf.mxu0
  %v860 = vadd.f32 %v811, %v859
  %861 = vmatmul.bf16.gmra.mxu0 %v384
  %v862 = vpop.f32.mrf.mxu0
  %v863 = vadd.f32 %v814, %v862
  %v864 = vpop.f32.mrf.mxu0
  %v865 = vadd.f32 %v816, %v864
  %866 = vmatmul.bf16.gmra.mxu0 %v391
  %v867 = vpop.f32.mrf.mxu0
  %v868 = vadd.f32 %v819, %v867
  %v869 = vpop.f32.mrf.mxu0
  %v870 = vadd.f32 %v821, %v869
  %871 = vmatmul.bf16.gmra.mxu0 %v398
  %v872 = vpop.f32.mrf.mxu0
  %v873 = vadd.f32 %v824, %v872
  %v874 = vpop.f32.mrf.mxu0
  %v875 = vadd.f32 %v826, %v874
  %876 = vmatmul.bf16.gmra.mxu0 %v405
  %v877 = vpop.f32.mrf.mxu0
  %v878 = vadd.f32 %v829, %v877
  %v879 = vpop.f32.mrf.mxu0
  %v880 = vadd.f32 %v831, %v879
  %881 = vdwg.mxu0
  %882 = vmatpush.bf16.msra.mxu0 %v682
  %883 = vmatpush.bf16.msra.mxu0 %v681
  %884 = vmatpush.bf16.msra.mxu0 %v680
  %885 = vmatpush.bf16.msra.mxu0 %v679
  %886 = vmatpush.bf16.msra.mxu0 %v678
  %887 = vmatpush.bf16.msra.mxu0 %v677
  %888 = vmatpush.bf16.msra.mxu0 %v676
  %889 = vmatpush.bf16.msra.mxu0 %v675
  %890 = vmatmul.bf16.gmra.mxu0 %v357
  %v891 = vpop.f32.mrf.mxu0
  %v892 = vadd.f32 %v843, %v891
  %v893 = vpop.f32.mrf.mxu0
  %v894 = vadd.f32 %v845, %v893
  %895 = vmatmul.bf16.gmra.mxu0 %v364
  %v896 = vpop.f32.mrf.mxu0
  %v897 = vadd.f32 %v848, %v896
  %v898 = vpop.f32.mrf.mxu0
  %v899 = vadd.f32 %v850, %v898
  %900 = vmatmul.bf16.gmra.mxu0 %v371
  %v901 = vpop.f32.mrf.mxu0
  %v902 = vadd.f32 %v853, %v901
  %v903 = vpop.f32.mrf.mxu0
  %v904 = vadd.f32 %v855, %v903
  %905 = vmatmul.bf16.gmra.mxu0 %v378
  %v906 = vpop.f32.mrf.mxu0
  %v907 = vadd.f32 %v858, %v906
  %v908 = vpop.f32.mrf.mxu0
  %v909 = vadd.f32 %v860, %v908
  %910 = vmatmul.bf16.gmra.mxu0 %v385
  %v911 = vpop.f32.mrf.mxu0
  %v912 = vadd.f32 %v863, %v911
  %v913 = vpop.f32.mrf.mxu0
  %v914 = vadd.f32 %v865, %v913
  %915 = vmatmul.bf16.gmra.mxu0 %v392
  %v916 = vpop.f32.mrf.mxu0
  %v917 = vadd.f32 %v868, %v916
  %v918 = vpop.f32.mrf.mxu0
  %v919 = vadd.f32 %v870, %v918
  %920 = vmatmul.bf16.gmra.mxu0 %v399
  %v921 = vpop.f32.mrf.mxu0
  %v922 = vadd.f32 %v873, %v921
  %v923 = vpop.f32.mrf.mxu0
  %v924 = vadd.f32 %v875, %v923
  %925 = vmatmul.bf16.gmra.mxu0 %v406
  %v926 = vpop.f32.mrf.mxu0
  %v927 = vadd.f32 %v878, %v926
  %v928 = vpop.f32.mrf.mxu0
  %v929 = vadd.f32 %v880, %v928
  %930 = vdwg.mxu0
  %931 = vmatpush.bf16.msra.mxu0 %v690
  %932 = vmatpush.bf16.msra.mxu0 %v689
  %933 = vmatpush.bf16.msra.mxu0 %v688
  %934 = vmatpush.bf16.msra.mxu0 %v687
  %935 = vmatpush.bf16.msra.mxu0 %v686
  %936 = vmatpush.bf16.msra.mxu0 %v685
  %937 = vmatpush.bf16.msra.mxu0 %v684
  %938 = vmatpush.bf16.msra.mxu0 %v683
  %939 = vmatmul.bf16.gmra.mxu0 %v358
  %v940 = vpop.f32.mrf.mxu0
  %v941 = vadd.f32 %v892, %v940
  %v942 = vpop.f32.mrf.mxu0
  %v943 = vadd.f32 %v894, %v942
  %944 = vmatmul.bf16.gmra.mxu0 %v365
  %v945 = vpop.f32.mrf.mxu0
  %v946 = vadd.f32 %v897, %v945
  %v947 = vpop.f32.mrf.mxu0
  %v948 = vadd.f32 %v899, %v947
  %949 = vmatmul.bf16.gmra.mxu0 %v372
  %v950 = vpop.f32.mrf.mxu0
  %v951 = vadd.f32 %v902, %v950
  %v952 = vpop.f32.mrf.mxu0
  %v953 = vadd.f32 %v904, %v952
  %954 = vmatmul.bf16.gmra.mxu0 %v379
  %v955 = vpop.f32.mrf.mxu0
  %v956 = vadd.f32 %v907, %v955
  %v957 = vpop.f32.mrf.mxu0
  %v958 = vadd.f32 %v909, %v957
  %959 = vmatmul.bf16.gmra.mxu0 %v386
  %v960 = vpop.f32.mrf.mxu0
  %v961 = vadd.f32 %v912, %v960
  %v962 = vpop.f32.mrf.mxu0
  %v963 = vadd.f32 %v914, %v962
  %964 = vmatmul.bf16.gmra.mxu0 %v393
  %v965 = vpop.f32.mrf.mxu0
  %v966 = vadd.f32 %v917, %v965
  %v967 = vpop.f32.mrf.mxu0
  %v968 = vadd.f32 %v919, %v967
  %969 = vmatmul.bf16.gmra.mxu0 %v400
  %v970 = vpop.f32.mrf.mxu0
  %v971 = vadd.f32 %v922, %v970
  %v972 = vpop.f32.mrf.mxu0
  %v973 = vadd.f32 %v924, %v972
  %974 = vmatmul.bf16.gmra.mxu0 %v407
  %v975 = vpop.f32.mrf.mxu0
  %v976 = vadd.f32 %v927, %v975
  %v977 = vpop.f32.mrf.mxu0
  %v978 = vadd.f32 %v929, %v977
  %979 = vdwg.mxu0
  %980 = vmatpush.bf16.msra.mxu0 %v698
  %981 = vmatpush.bf16.msra.mxu0 %v697
  %982 = vmatpush.bf16.msra.mxu0 %v696
  %983 = vmatpush.bf16.msra.mxu0 %v695
  %984 = vmatpush.bf16.msra.mxu0 %v694
  %985 = vmatpush.bf16.msra.mxu0 %v693
  %986 = vmatpush.bf16.msra.mxu0 %v692
  %987 = vmatpush.bf16.msra.mxu0 %v691
  %988 = vmatmul.bf16.gmra.mxu0 %v359
  %v989 = vpop.f32.mrf.mxu0
  %v990 = vadd.f32 %v941, %v989
  %v991 = vpop.f32.mrf.mxu0
  %v992 = vadd.f32 %v943, %v991
  %993 = vmatmul.bf16.gmra.mxu0 %v366
  %v994 = vpop.f32.mrf.mxu0
  %v995 = vadd.f32 %v946, %v994
  %v996 = vpop.f32.mrf.mxu0
  %v997 = vadd.f32 %v948, %v996
  %998 = vmatmul.bf16.gmra.mxu0 %v373
  %v999 = vpop.f32.mrf.mxu0
  %v1000 = vadd.f32 %v951, %v999
  %v1001 = vpop.f32.mrf.mxu0
  %v1002 = vadd.f32 %v953, %v1001
  %1003 = vmatmul.bf16.gmra.mxu0 %v380
  %v1004 = vpop.f32.mrf.mxu0
  %v1005 = vadd.f32 %v956, %v1004
  %v1006 = vpop.f32.mrf.mxu0
  %v1007 = vadd.f32 %v958, %v1006
  %1008 = vmatmul.bf16.gmra.mxu0 %v387
  %v1009 = vpop.f32.mrf.mxu0
  %v1010 = vadd.f32 %v961, %v1009
  %v1011 = vpop.f32.mrf.mxu0
  %v1012 = vadd.f32 %v963, %v1011
  %1013 = vmatmul.bf16.gmra.mxu0 %v394
  %v1014 = vpop.f32.mrf.mxu0
  %v1015 = vadd.f32 %v966, %v1014
  %v1016 = vpop.f32.mrf.mxu0
  %v1017 = vadd.f32 %v968, %v1016
  %1018 = vmatmul.bf16.gmra.mxu0 %v401
  %v1019 = vpop.f32.mrf.mxu0
  %v1020 = vadd.f32 %v971, %v1019
  %v1021 = vpop.f32.mrf.mxu0
  %v1022 = vadd.f32 %v973, %v1021
  %1023 = vmatmul.bf16.gmra.mxu0 %v408
  %v1024 = vpop.f32.mrf.mxu0
  %v1025 = vadd.f32 %v976, %v1024
  %v1026 = vpop.f32.mrf.mxu0
  %v1027 = vadd.f32 %v978, %v1026
  %1028 = vdwg.mxu0
  %1029 = vmatpush.bf16.msra.mxu0 %v706
  %1030 = vmatpush.bf16.msra.mxu0 %v705
  %1031 = vmatpush.bf16.msra.mxu0 %v704
  %1032 = vmatpush.bf16.msra.mxu0 %v703
  %1033 = vmatpush.bf16.msra.mxu0 %v702
  %1034 = vmatpush.bf16.msra.mxu0 %v701
  %1035 = vmatpush.bf16.msra.mxu0 %v700
  %1036 = vmatpush.bf16.msra.mxu0 %v699
  %1037 = vmatmul.bf16.gmra.mxu0 %v360
  %v1038 = vpop.f32.mrf.mxu0
  %v1039 = vadd.f32 %v990, %v1038
  %v1040 = vpop.f32.mrf.mxu0
  %v1041 = vadd.f32 %v992, %v1040
  %1042 = vmatmul.bf16.gmra.mxu0 %v367
  %v1043 = vpop.f32.mrf.mxu0
  %v1044 = vadd.f32 %v995, %v1043
  %v1045 = vpop.f32.mrf.mxu0
  %v1046 = vadd.f32 %v997, %v1045
  %1047 = vmatmul.bf16.gmra.mxu0 %v374
  %v1048 = vpop.f32.mrf.mxu0
  %v1049 = vadd.f32 %v1000, %v1048
  %v1050 = vpop.f32.mrf.mxu0
  %v1051 = vadd.f32 %v1002, %v1050
  %1052 = vmatmul.bf16.gmra.mxu0 %v381
  %v1053 = vpop.f32.mrf.mxu0
  %v1054 = vadd.f32 %v1005, %v1053
  %v1055 = vpop.f32.mrf.mxu0
  %v1056 = vadd.f32 %v1007, %v1055
  %1057 = vmatmul.bf16.gmra.mxu0 %v388
  %v1058 = vpop.f32.mrf.mxu0
  %v1059 = vadd.f32 %v1010, %v1058
  %v1060 = vpop.f32.mrf.mxu0
  %v1061 = vadd.f32 %v1012, %v1060
  %1062 = vmatmul.bf16.gmra.mxu0 %v395
  %v1063 = vpop.f32.mrf.mxu0
  %v1064 = vadd.f32 %v1015, %v1063
  %v1065 = vpop.f32.mrf.mxu0
  %v1066 = vadd.f32 %v1017, %v1065
  %1067 = vmatmul.bf16.gmra.mxu0 %v402
  %v1068 = vpop.f32.mrf.mxu0
  %v1069 = vadd.f32 %v1020, %v1068
  %v1070 = vpop.f32.mrf.mxu0
  %v1071 = vadd.f32 %v1022, %v1070
  %1072 = vmatmul.bf16.gmra.mxu0 %v409
  %v1073 = vpop.f32.mrf.mxu0
  %v1074 = vadd.f32 %v1025, %v1073
  %v1075 = vpop.f32.mrf.mxu0
  %v1076 = vadd.f32 %v1027, %v1075
  %1077 = vdwg.mxu0
  %1078 = vmatpush.bf16.msra.mxu0 0
  %1079 = vmatpush.bf16.msra.mxu0 0
  %1080 = vmatpush.bf16.msra.mxu0 0
  %1081 = vmatpush.bf16.msra.mxu0 0
  %1082 = vmatpush.bf16.msra.mxu0 0
  %1083 = vmatpush.bf16.msra.mxu0 0
  %1084 = vmatpush.bf16.msra.mxu0 %v708
  %1085 = vmatpush.bf16.msra.mxu0 %v707
  %1086 = vmatmul.bf16.gmra.mxu0 %v761
  %v1087 = vpop.f32.mrf.mxu0
  %v1088 = vadd.f32 %v1039, %v1087
  %v1089 = vpop.f32.mrf.mxu0
  %v1090 = vadd.f32 %v1041, %v1089
  %1091 = vmatmul.bf16.gmra.mxu0 %v764
  %v1092 = vpop.f32.mrf.mxu0
  %v1093 = vadd.f32 %v1044, %v1092
  %v1094 = vpop.f32.mrf.mxu0
  %v1095 = vadd.f32 %v1046, %v1094
  %1096 = vmatmul.bf16.gmra.mxu0 %v767
  %v1097 = vpop.f32.mrf.mxu0
  %v1098 = vadd.f32 %v1049, %v1097
  %v1099 = vpop.f32.mrf.mxu0
  %v1100 = vadd.f32 %v1051, %v1099
  %1101 = vmatmul.bf16.gmra.mxu0 %v770
  %v1102 = vpop.f32.mrf.mxu0
  %v1103 = vadd.f32 %v1054, %v1102
  %v1104 = vpop.f32.mrf.mxu0
  %v1105 = vadd.f32 %v1056, %v1104
  %1106 = vmatmul.bf16.gmra.mxu0 %v773
  %v1107 = vpop.f32.mrf.mxu0
  %v1108 = vadd.f32 %v1059, %v1107
  %v1109 = vpop.f32.mrf.mxu0
  %v1110 = vadd.f32 %v1061, %v1109
  %1111 = vmatmul.bf16.gmra.mxu0 %v776
  %v1112 = vpop.f32.mrf.mxu0
  %v1113 = vadd.f32 %v1064, %v1112
  %v1114 = vpop.f32.mrf.mxu0
  %v1115 = vadd.f32 %v1066, %v1114
  %1116 = vmatmul.bf16.gmra.mxu0 %v779
  %v1117 = vpop.f32.mrf.mxu0
  %v1118 = vadd.f32 %v1069, %v1117
  %v1119 = vpop.f32.mrf.mxu0
  %v1120 = vadd.f32 %v1071, %v1119
  %1121 = vmatmul.bf16.gmra.mxu0 %v782
  %v1122 = vpop.f32.mrf.mxu0
  %v1123 = vadd.f32 %v1074, %v1122
  %v1124 = vpop.f32.mrf.mxu0
  %v1125 = vadd.f32 %v1076, %v1124
  %1126 = vdwg.mxu0
  %v1127 = vmax.f32 %v1088, %v1098
  %v1128 = vmax.f32 %v1090, %v1100
  %v1129 = vmax.f32 %v1093, %v1103
  %v1130 = vmax.f32 %v1095, %v1105
  %v1131 = vmax.f32 %v1108, %v1118
  %v1132 = vmax.f32 %v1110, %v1120
  %v1133 = vmax.f32 %v1113, %v1123
  %v1134 = vmax.f32 %v1115, %v1125
  %v1135 = vmax.f32 %v1127, %v1131
  %v1136 = vmax.f32 %v1128, %v1132
  %v1137 = vmax.f32 %v1129, %v1133
  %v1138 = vmax.f32 %v1130, %v1134
  %v1139 = vmax.f32 %v1135, 0.0
  %v1140 = vmax.f32 %v1136, 0.0
  %v1141 = vmax.f32 %v1137, 0.0
  %v1142 = vmax.f32 %v1138, 0.0
  %v1143 = vld [vmem:[%s2] sm:$0x1]
  %v1144 = vsub.f32 0.0, %v1143
  %v1145 = vmul.f32 %v1144, 1.442695
  %v1146 = vpow.pop %v1145
  %v1147 = vadd.f32 %v1146, 1.0
  %v1148 = vrcp.pop %v1147
  %v1149 = vmul.f32 %v1147, %v1148
  %v1150 = vsub.f32 1.0, %v1149
  %v1151 = vmul.f32 %v1148, %v1150
  %v1152 = vadd.f32 %v1148, %v1151
  %vm1153 = vweird.f32 %v1147
  %vm1154 = vweird.f32 %v1148
  %vm1155 = vmor %vm1153, %vm1154
  %v1156 = vsel %vm1155, %v1148, %v1152
  %v1157 = vand.u32 2147483647, %v1147
  %vm1158 = vcmp.eq.f32.partialorder %v1157, 8.507059e+37
  %v1159 = vand.u32 %v1147, 2147483648
  %v1160 = vor.u32 1.1754944e-38, %v1159
  %v1161 = vsel %vm1158, %v1160, %v1156
  %v1162 = vmul.f32 1.0, %v1161
  %v1163 = vmul.f32 %v1162, 1.2
  %v1164 = vadd.f32 %v1163, -0.1
  %v1165 = vmax.f32 %v1164, 0.0
  %v1166 = vmin.f32 %v1165, 1.0
  %v1168 = vperm.slane %v1166, 0
  %v1170 = vmul.f32 %v1139, %v1168
  %v1171 = vmul.f32 %v1140, %v1168
  %v1172 = vmul.f32 %v1141, %v1168
  %v1173 = vmul.f32 %v1142, %v1168
  %v1174 = vpack.c.bf16 %v1170, %v1170
  %v1175 = vpack.c.bf16 %v1171, %v1171
  %v1176 = vpack.c.bf16 %v1172, %v1172
  %v1177 = vpack.c.bf16 %v1173, %v1173
  %vm1178 = vcmask 519168
  %1179 = vst.msk [vmem:[%s3] sm:$0xf] %vm1178, %v1174
  %1180 = vst.msk [vmem:[%s3 + $0x4] sm:$0xf] %vm1178, %v1175
  %1181 = vst.msk [vmem:[%s3 + $0x8] sm:$0xf] %vm1178, %v1176
  %1182 = vst.msk [vmem:[%s3 + $0xc] sm:$0xf] %vm1178, %v1177
  // Predicated region
  $region14: #{l0_model_cnn_forward.4} parent=0 // pred_check
    _
  $region15: #{l0_model_cnn_forward.4} parent=0 // pred_check_branch
    %1184 = sbr.rel (0) target = $region17
  $region16: #{l0_model_cnn_forward.4} parent=0 // pred_region
    _
  $region17: #{l0_model_cnn_forward.4} parent=0 // pred_fallthru
    _
  // Predicated region
  $region18: #{l0_model_cnn_forward.4} parent=0 // pred_check
    _
  $region19: #{l0_model_cnn_forward.4} parent=0 // pred_check_branch
    %1186 = sbr.rel (0) target = $region21
  $region20: #{l0_model_cnn_forward.4} parent=0 // pred_region
    _
  $region21: #{l0_model_cnn_forward.4} parent=0 // pred_fallthru
    _

// kernel: l0_model_cnn_forward.5
$region0: #{l0_model_cnn_forward.5}
  #allocation0 [shape = 'u32[]', space=smem, size = 0x4, offset = 0x4, fixed_abs, tag = 'smem constant byte address 0x4 - core index']
  #allocation1 [shape = 'u32[72,128]{1,0:T(1,128)}', space=vmem, size = 0x9000, scoped, tag = 'internal scratch']
  %s0 = inlined_call_operand.vmem [shape: bf16[2,1024], index: 0, kind: input, shape index: {}]
  %s1 = inlined_call_operand.vmem [shape: f32[1,1024], index: 1, kind: input, shape index: {}]
  %s2 = inlined_call_operand.vmem [shape: bf16[1024,1000], index: 2, kind: input, shape index: {}]
  %s3 = inlined_call_operand.vmem [shape: f32[1,1000], index: 3, kind: input, shape index: {}]
  %s4 = inlined_call_operand.vmem [shape: f32[1,1000], index: 4, kind: input, shape index: {}]
  %s5 = inlined_call_operand.vmem [shape: bf16[1000,10], index: 5, kind: input, shape index: {}]
  %s6 = inlined_call_operand.vmem [shape: f32[1,10], index: 6, kind: input, shape index: {}]
  %s7 = inlined_call_operand.hbm [shape: f32[2,10], index: 7, kind: output, shape index: {}]
  %s8 = sld [smem:[#allocation0]]
  $region38: #{l0_model_cnn_forward.5} parent=0
    _
  %s10 = ssub.s32 1, %s8
  %s11 = scalar_select 0, %s10, %s8
  $region1: #{l0_model_cnn_forward.5} parent=0
    #allocation2 [shape = 'u8[1024]{0}', space=vmem, size = 0x400, scoped, tag = 'output window, operand 0, single buffered']
    #allocation3 [shape = 's32[1]{0}', space=sflag, size = 0x4, scoped, tag = 'scoped memory for l0_model_cnn_forward.5']
    %12 = vsyncpa [#allocation3], 0
    // Predicated region
    $region2: #{l0_model_cnn_forward.5} parent=1 // pred_check
      _
    $region3: #{l0_model_cnn_forward.5} parent=1 // pred_check_branch
      %14 = sbr.rel (0) target = $region5
    $region4: #{l0_model_cnn_forward.5} parent=1 // pred_region
      _
    $region5: #{l0_model_cnn_forward.5} parent=1 // pred_fallthru
      _
    // Predicated region
    $region6: #{l0_model_cnn_forward.5} parent=1 // pred_check
      _
    $region7: #{l0_model_cnn_forward.5} parent=1 // pred_check_branch
      %16 = sbr.rel (0) target = $region9
    $region8: #{l0_model_cnn_forward.5} parent=1 // pred_region
      _
    $region9: #{l0_model_cnn_forward.5} parent=1 // pred_fallthru
      _
    // Predicated region
    $region10: #{l0_model_cnn_forward.5} parent=1 // pred_check
      _
    $region11: #{l0_model_cnn_forward.5} parent=1 // pred_check_branch
      %18 = sbr.rel (0) target = $region13
    $region12: #{l0_model_cnn_forward.5} parent=1 // pred_region
      _
    $region13: #{l0_model_cnn_forward.5} parent=1 // pred_fallthru
      _
    // Predicated region
    $region14: #{l0_model_cnn_forward.5} parent=1 // pred_check
      _
    $region15: #{l0_model_cnn_forward.5} parent=1 // pred_check_branch
      %20 = sbr.rel (0) target = $region17
    $region16: #{l0_model_cnn_forward.5} parent=1 // pred_region
      _
    $region17: #{l0_model_cnn_forward.5} parent=1 // pred_fallthru
      _
    // Predicated region
    $region18: #{l0_model_cnn_forward.5} parent=1 // pred_check
      _
    $region19: #{l0_model_cnn_forward.5} parent=1 // pred_check_branch
      %22 = sbr.rel (0) target = $region21
    $region20: #{l0_model_cnn_forward.5} parent=1 // pred_region
      _
    $region21: #{l0_model_cnn_forward.5} parent=1 // pred_fallthru
      _
    // Predicated region
    $region22: #{l0_model_cnn_forward.5} parent=1 // pred_check
      _
    $region23: #{l0_model_cnn_forward.5} parent=1 // pred_check_branch
      %24 = sbr.rel (0) target = $region25
    $region24: #{l0_model_cnn_forward.5} parent=1 // pred_region
      _
    $region25: #{l0_model_cnn_forward.5} parent=1 // pred_fallthru
      _
    // Predicated region
    $region26: #{l0_model_cnn_forward.5} parent=1 // pred_check
      _
    $region27: #{l0_model_cnn_forward.5} parent=1 // pred_check_branch
      %26 = sbr.rel (0) target = $region29
    $region28: #{l0_model_cnn_forward.5} parent=1 // pred_region
      _
    $region29: #{l0_model_cnn_forward.5} parent=1 // pred_fallthru
      _
    %v28 = vld [vmem:[%s0] sm:$0xff]
    %v29 = vunpack.c.l.bf16 %v28
    %v30 = vunpack.c.h.bf16 %v28
    %v31 = vld [vmem:[%s1] sm:$0xff]
    %v32 = vsub.f32 0.0, %v31
    %v33 = vmul.f32 %v32, 1.442695
    %v34 = vpow.pop %v33
    %v35 = vadd.f32 %v34, 1.0
    %v36 = vrcp.pop %v35
    %v37 = vmul.f32 %v35, %v36
    %v38 = vsub.f32 1.0, %v37
    %v39 = vmul.f32 %v36, %v38
    %v40 = vadd.f32 %v36, %v39
    %vm41 = vweird.f32 %v35
    %vm42 = vweird.f32 %v36
    %vm43 = vmor %vm41, %vm42
    %v44 = vsel %vm43, %v36, %v40
    %v45 = vand.u32 2147483647, %v35
    %vm46 = vcmp.eq.f32.partialorder %v45, 8.507059e+37
    %v47 = vand.u32 %v35, 2147483648
    %v48 = vor.u32 1.1754944e-38, %v47
    %v49 = vsel %vm46, %v48, %v44
    %v50 = vmul.f32 1.0, %v49
    %v51 = vmul.f32 %v50, 1.2
    %v52 = vadd.f32 %v51, -0.1
    %v53 = vmax.f32 %v52, 0.0
    %v54 = vmin.f32 %v53, 1.0
    %v56 = vperm.slane %v54, 0
    %v57 = vperm.slane %v54, 1
    %v58 = vperm.slane %v54, 2
    %v59 = vperm.slane %v54, 3
    %v60 = vperm.slane %v54, 4
    %v61 = vperm.slane %v54, 5
    %v62 = vperm.slane %v54, 6
    %v63 = vperm.slane %v54, 7
    %v64 = vrot.slane %v57, 6
    %v65 = vrot.slane %v58, 4
    %v66 = vrot.slane %v59, 2
    %v67 = vrot.slane %v61, 6
    %v68 = vrot.slane %v62, 4
    %v69 = vrot.slane %v63, 2
    %vm70 = vcmask 1041408
    %v71 = vsel %vm70, %v56, %v64
    %vm72 = vcmask 1045508
    %v73 = vsel %vm72, %v65, %v66
    %vm74 = vcmask 1043456
    %v75 = vsel %vm74, %v71, %v73
    %v76 = vsel %vm70, %v60, %v67
    %v77 = vsel %vm72, %v68, %v69
    %v78 = vsel %vm74, %v76, %v77
    %v81 = vmul.f32 %v29, %v75
    %v82 = vmul.f32 %v30, %v78
    %85 = vst [vmem:[#allocation1] ss:$4 sm:$0xff] %v81
    %s86 = scalar_lea.vmem [#allocation1], 32
    %87 = vst [vmem:[%s86] ss:$4 sm:$0xff] %v82
    %v88 = vld.sshfl [vmem:[#allocation1] sm:$0xff pattern:$0x73625140]
    %v89 = vld.sshfl [vmem:[#allocation1 + $0x8] sm:$0xff pattern:$0x73625140]
    %v90 = vld.sshfl [vmem:[#allocation1 + $0x10] sm:$0xff pattern:$0x73625140]
    %v91 = vld.sshfl [vmem:[#allocation1 + $0x18] sm:$0xff pattern:$0x73625140]
    %v92 = vld.sshfl [vmem:[#allocation1 + $0x20] sm:$0xff pattern:$0x73625140]
    %v93 = vld.sshfl [vmem:[#allocation1 + $0x28] sm:$0xff pattern:$0x73625140]
    %v94 = vld.sshfl [vmem:[#allocation1 + $0x30] sm:$0xff pattern:$0x73625140]
    %v95 = vld.sshfl [vmem:[#allocation1 + $0x38] sm:$0xff pattern:$0x73625140]
    %v104 = vpack.c.bf16 %v88, %v88
    %v105 = vpack.c.bf16 %v89, %v89
    %v106 = vpack.c.bf16 %v90, %v90
    %v107 = vpack.c.bf16 %v91, %v91
    %v108 = vpack.c.bf16 %v92, %v92
    %v109 = vpack.c.bf16 %v93, %v93
    %v110 = vpack.c.bf16 %v94, %v94
    %v111 = vpack.c.bf16 %v95, %v95
    %v112 = vld [vmem:[%s2] sm:$0xff]
    %v113 = vld [vmem:[%s2 + $0x8] sm:$0xff]
    %v114 = vld [vmem:[%s2 + $0x10] sm:$0xff]
    %v115 = vld [vmem:[%s2 + $0x18] sm:$0xff]
    %v116 = vld [vmem:[%s2 + $0x20] sm:$0xff]
    %v117 = vld [vmem:[%s2 + $0x28] sm:$0xff]
    %v118 = vld [vmem:[%s2 + $0x30] sm:$0xff]
    %v119 = vld [vmem:[%s2 + $0x38] sm:$0xff]
    %v120 = vld [vmem:[%s2 + $0x40] sm:$0xff]
    %v121 = vld [vmem:[%s2 + $0x48] sm:$0xff]
    %v122 = vld [vmem:[%s2 + $0x50] sm:$0xff]
    %v123 = vld [vmem:[%s2 + $0x58] sm:$0xff]
    %v124 = vld [vmem:[%s2 + $0x60] sm:$0xff]
    %v125 = vld [vmem:[%s2 + $0x68] sm:$0xff]
    %v126 = vld [vmem:[%s2 + $0x70] sm:$0xff]
    %v127 = vld [vmem:[%s2 + $0x78] sm:$0xff]
    %v128 = vld [vmem:[%s2 + $0x80] sm:$0xff]
    %v129 = vld [vmem:[%s2 + $0x88] sm:$0xff]
    %v130 = vld [vmem:[%s2 + $0x90] sm:$0xff]
    %v131 = vld [vmem:[%s2 + $0x98] sm:$0xff]
    %v132 = vld [vmem:[%s2 + $0xa0] sm:$0xff]
    %v133 = vld [vmem:[%s2 + $0xa8] sm:$0xff]
    %v134 = vld [vmem:[%s2 + $0xb0] sm:$0xff]
    %v135 = vld [vmem:[%s2 + $0xb8] sm:$0xff]
    %v136 = vld [vmem:[%s2 + $0xc0] sm:$0xff]
    %v137 = vld [vmem:[%s2 + $0xc8] sm:$0xff]
    %v138 = vld [vmem:[%s2 + $0xd0] sm:$0xff]
    %v139 = vld [vmem:[%s2 + $0xd8] sm:$0xff]
    %v140 = vld [vmem:[%s2 + $0xe0] sm:$0xff]
    %v141 = vld [vmem:[%s2 + $0xe8] sm:$0xff]
    %v142 = vld [vmem:[%s2 + $0xf0] sm:$0xff]
    %v143 = vld [vmem:[%s2 + $0xf8] sm:$0xff]
    %v144 = vld [vmem:[%s2 + $0x100] sm:$0xff]
    %v145 = vld [vmem:[%s2 + $0x108] sm:$0xff]
    %v146 = vld [vmem:[%s2 + $0x110] sm:$0xff]
    %v147 = vld [vmem:[%s2 + $0x118] sm:$0xff]
    %v148 = vld [vmem:[%s2 + $0x120] sm:$0xff]
    %v149 = vld [vmem:[%s2 + $0x128] sm:$0xff]
    %v150 = vld [vmem:[%s2 + $0x130] sm:$0xff]
    %v151 = vld [vmem:[%s2 + $0x138] sm:$0xff]
    %v152 = vld [vmem:[%s2 + $0x140] sm:$0xff]
    %v153 = vld [vmem:[%s2 + $0x148] sm:$0xff]
    %v154 = vld [vmem:[%s2 + $0x150] sm:$0xff]
    %v155 = vld [vmem:[%s2 + $0x158] sm:$0xff]
    %v156 = vld [vmem:[%s2 + $0x160] sm:$0xff]
    %v157 = vld [vmem:[%s2 + $0x168] sm:$0xff]
    %v158 = vld [vmem:[%s2 + $0x170] sm:$0xff]
    %v159 = vld [vmem:[%s2 + $0x178] sm:$0xff]
    %v160 = vld [vmem:[%s2 + $0x180] sm:$0xff]
    %v161 = vld [vmem:[%s2 + $0x188] sm:$0xff]
    %v162 = vld [vmem:[%s2 + $0x190] sm:$0xff]
    %v163 = vld [vmem:[%s2 + $0x198] sm:$0xff]
    %v164 = vld [vmem:[%s2 + $0x1a0] sm:$0xff]
    %v165 = vld [vmem:[%s2 + $0x1a8] sm:$0xff]
    %v166 = vld [vmem:[%s2 + $0x1b0] sm:$0xff]
    %v167 = vld [vmem:[%s2 + $0x1b8] sm:$0xff]
    %v168 = vld [vmem:[%s2 + $0x1c0] sm:$0xff]
    %v169 = vld [vmem:[%s2 + $0x1c8] sm:$0xff]
    %v170 = vld [vmem:[%s2 + $0x1d0] sm:$0xff]
    %v171 = vld [vmem:[%s2 + $0x1d8] sm:$0xff]
    %v172 = vld [vmem:[%s2 + $0x1e0] sm:$0xff]
    %v173 = vld [vmem:[%s2 + $0x1e8] sm:$0xff]
    %v174 = vld [vmem:[%s2 + $0x1f0] sm:$0xff]
    %v175 = vld [vmem:[%s2 + $0x1f8] sm:$0xff]
    %v176 = vld [vmem:[%s2 + $0x200] sm:$0xff]
    %v177 = vld [vmem:[%s2 + $0x208] sm:$0xff]
    %v178 = vld [vmem:[%s2 + $0x210] sm:$0xff]
    %v179 = vld [vmem:[%s2 + $0x218] sm:$0xff]
    %v180 = vld [vmem:[%s2 + $0x220] sm:$0xff]
    %v181 = vld [vmem:[%s2 + $0x228] sm:$0xff]
    %v182 = vld [vmem:[%s2 + $0x230] sm:$0xff]
    %v183 = vld [vmem:[%s2 + $0x238] sm:$0xff]
    %v184 = vld [vmem:[%s2 + $0x240] sm:$0xff]
    %v185 = vld [vmem:[%s2 + $0x248] sm:$0xff]
    %v186 = vld [vmem:[%s2 + $0x250] sm:$0xff]
    %v187 = vld [vmem:[%s2 + $0x258] sm:$0xff]
    %v188 = vld [vmem:[%s2 + $0x260] sm:$0xff]
    %v189 = vld [vmem:[%s2 + $0x268] sm:$0xff]
    %v190 = vld [vmem:[%s2 + $0x270] sm:$0xff]
    %v191 = vld [vmem:[%s2 + $0x278] sm:$0xff]
    %v192 = vld [vmem:[%s2 + $0x280] sm:$0xff]
    %v193 = vld [vmem:[%s2 + $0x288] sm:$0xff]
    %v194 = vld [vmem:[%s2 + $0x290] sm:$0xff]
    %v195 = vld [vmem:[%s2 + $0x298] sm:$0xff]
    %v196 = vld [vmem:[%s2 + $0x2a0] sm:$0xff]
    %v197 = vld [vmem:[%s2 + $0x2a8] sm:$0xff]
    %v198 = vld [vmem:[%s2 + $0x2b0] sm:$0xff]
    %v199 = vld [vmem:[%s2 + $0x2b8] sm:$0xff]
    %v200 = vld [vmem:[%s2 + $0x2c0] sm:$0xff]
    %v201 = vld [vmem:[%s2 + $0x2c8] sm:$0xff]
    %v202 = vld [vmem:[%s2 + $0x2d0] sm:$0xff]
    %v203 = vld [vmem:[%s2 + $0x2d8] sm:$0xff]
    %v204 = vld [vmem:[%s2 + $0x2e0] sm:$0xff]
    %v205 = vld [vmem:[%s2 + $0x2e8] sm:$0xff]
    %v206 = vld [vmem:[%s2 + $0x2f0] sm:$0xff]
    %v207 = vld [vmem:[%s2 + $0x2f8] sm:$0xff]
    %v208 = vld [vmem:[%s2 + $0x300] sm:$0xff]
    %v209 = vld [vmem:[%s2 + $0x308] sm:$0xff]
    %v210 = vld [vmem:[%s2 + $0x310] sm:$0xff]
    %v211 = vld [vmem:[%s2 + $0x318] sm:$0xff]
    %v212 = vld [vmem:[%s2 + $0x320] sm:$0xff]
    %v213 = vld [vmem:[%s2 + $0x328] sm:$0xff]
    %v214 = vld [vmem:[%s2 + $0x330] sm:$0xff]
    %v215 = vld [vmem:[%s2 + $0x338] sm:$0xff]
    %v216 = vld [vmem:[%s2 + $0x340] sm:$0xff]
    %v217 = vld [vmem:[%s2 + $0x348] sm:$0xff]
    %v218 = vld [vmem:[%s2 + $0x350] sm:$0xff]
    %v219 = vld [vmem:[%s2 + $0x358] sm:$0xff]
    %v220 = vld [vmem:[%s2 + $0x360] sm:$0xff]
    %v221 = vld [vmem:[%s2 + $0x368] sm:$0xff]
    %v222 = vld [vmem:[%s2 + $0x370] sm:$0xff]
    %v223 = vld [vmem:[%s2 + $0x378] sm:$0xff]
    %v224 = vld [vmem:[%s2 + $0x380] sm:$0xff]
    %v225 = vld [vmem:[%s2 + $0x388] sm:$0xff]
    %v226 = vld [vmem:[%s2 + $0x390] sm:$0xff]
    %v227 = vld [vmem:[%s2 + $0x398] sm:$0xff]
    %v228 = vld [vmem:[%s2 + $0x3a0] sm:$0xff]
    %v229 = vld [vmem:[%s2 + $0x3a8] sm:$0xff]
    %v230 = vld [vmem:[%s2 + $0x3b0] sm:$0xff]
    %v231 = vld [vmem:[%s2 + $0x3b8] sm:$0xff]
    %v232 = vld [vmem:[%s2 + $0x3c0] sm:$0xff]
    %v233 = vld [vmem:[%s2 + $0x3c8] sm:$0xff]
    %v234 = vld [vmem:[%s2 + $0x3d0] sm:$0xff]
    %v235 = vld [vmem:[%s2 + $0x3d8] sm:$0xff]
    %v236 = vld [vmem:[%s2 + $0x3e0] sm:$0xff]
    %v237 = vld [vmem:[%s2 + $0x3e8] sm:$0xff]
    %v238 = vld [vmem:[%s2 + $0x3f0] sm:$0xff]
    %v239 = vld [vmem:[%s2 + $0x3f8] sm:$0xff]
    %v240 = vld [vmem:[%s2 + $0x400] sm:$0xff]
    %v241 = vld [vmem:[%s2 + $0x408] sm:$0xff]
    %v242 = vld [vmem:[%s2 + $0x410] sm:$0xff]
    %v243 = vld [vmem:[%s2 + $0x418] sm:$0xff]
    %v244 = vld [vmem:[%s2 + $0x420] sm:$0xff]
    %v245 = vld [vmem:[%s2 + $0x428] sm:$0xff]
    %v246 = vld [vmem:[%s2 + $0x430] sm:$0xff]
    %v247 = vld [vmem:[%s2 + $0x438] sm:$0xff]
    %v248 = vld [vmem:[%s2 + $0x440] sm:$0xff]
    %v249 = vld [vmem:[%s2 + $0x448] sm:$0xff]
    %v250 = vld [vmem:[%s2 + $0x450] sm:$0xff]
    %v251 = vld [vmem:[%s2 + $0x458] sm:$0xff]
    %v252 = vld [vmem:[%s2 + $0x460] sm:$0xff]
    %v253 = vld [vmem:[%s2 + $0x468] sm:$0xff]
    %v254 = vld [vmem:[%s2 + $0x470] sm:$0xff]
    %v255 = vld [vmem:[%s2 + $0x478] sm:$0xff]
    %v256 = vld [vmem:[%s2 + $0x480] sm:$0xff]
    %v257 = vld [vmem:[%s2 + $0x488] sm:$0xff]
    %v258 = vld [vmem:[%s2 + $0x490] sm:$0xff]
    %v259 = vld [vmem:[%s2 + $0x498] sm:$0xff]
    %v260 = vld [vmem:[%s2 + $0x4a0] sm:$0xff]
    %v261 = vld [vmem:[%s2 + $0x4a8] sm:$0xff]
    %v262 = vld [vmem:[%s2 + $0x4b0] sm:$0xff]
    %v263 = vld [vmem:[%s2 + $0x4b8] sm:$0xff]
    %v264 = vld [vmem:[%s2 + $0x4c0] sm:$0xff]
    %v265 = vld [vmem:[%s2 + $0x4c8] sm:$0xff]
    %v266 = vld [vmem:[%s2 + $0x4d0] sm:$0xff]
    %v267 = vld [vmem:[%s2 + $0x4d8] sm:$0xff]
    %v268 = vld [vmem:[%s2 + $0x4e0] sm:$0xff]
    %v269 = vld [vmem:[%s2 + $0x4e8] sm:$0xff]
    %v270 = vld [vmem:[%s2 + $0x4f0] sm:$0xff]
    %v271 = vld [vmem:[%s2 + $0x4f8] sm:$0xff]
    %v272 = vld [vmem:[%s2 + $0x500] sm:$0xff]
    %v273 = vld [vmem:[%s2 + $0x508] sm:$0xff]
    %v274 = vld [vmem:[%s2 + $0x510] sm:$0xff]
    %v275 = vld [vmem:[%s2 + $0x518] sm:$0xff]
    %v276 = vld [vmem:[%s2 + $0x520] sm:$0xff]
    %v277 = vld [vmem:[%s2 + $0x528] sm:$0xff]
    %v278 = vld [vmem:[%s2 + $0x530] sm:$0xff]
    %v279 = vld [vmem:[%s2 + $0x538] sm:$0xff]
    %v280 = vld [vmem:[%s2 + $0x540] sm:$0xff]
    %v281 = vld [vmem:[%s2 + $0x548] sm:$0xff]
    %v282 = vld [vmem:[%s2 + $0x550] sm:$0xff]
    %v283 = vld [vmem:[%s2 + $0x558] sm:$0xff]
    %v284 = vld [vmem:[%s2 + $0x560] sm:$0xff]
    %v285 = vld [vmem:[%s2 + $0x568] sm:$0xff]
    %v286 = vld [vmem:[%s2 + $0x570] sm:$0xff]
    %v287 = vld [vmem:[%s2 + $0x578] sm:$0xff]
    %v288 = vld [vmem:[%s2 + $0x580] sm:$0xff]
    %v289 = vld [vmem:[%s2 + $0x588] sm:$0xff]
    %v290 = vld [vmem:[%s2 + $0x590] sm:$0xff]
    %v291 = vld [vmem:[%s2 + $0x598] sm:$0xff]
    %v292 = vld [vmem:[%s2 + $0x5a0] sm:$0xff]
    %v293 = vld [vmem:[%s2 + $0x5a8] sm:$0xff]
    %v294 = vld [vmem:[%s2 + $0x5b0] sm:$0xff]
    %v295 = vld [vmem:[%s2 + $0x5b8] sm:$0xff]
    %v296 = vld [vmem:[%s2 + $0x5c0] sm:$0xff]
    %v297 = vld [vmem:[%s2 + $0x5c8] sm:$0xff]
    %v298 = vld [vmem:[%s2 + $0x5d0] sm:$0xff]
    %v299 = vld [vmem:[%s2 + $0x5d8] sm:$0xff]
    %v300 = vld [vmem:[%s2 + $0x5e0] sm:$0xff]
    %v301 = vld [vmem:[%s2 + $0x5e8] sm:$0xff]
    %v302 = vld [vmem:[%s2 + $0x5f0] sm:$0xff]
    %v303 = vld [vmem:[%s2 + $0x5f8] sm:$0xff]
    %v304 = vld [vmem:[%s2 + $0x600] sm:$0xff]
    %v305 = vld [vmem:[%s2 + $0x608] sm:$0xff]
    %v306 = vld [vmem:[%s2 + $0x610] sm:$0xff]
    %v307 = vld [vmem:[%s2 + $0x618] sm:$0xff]
    %v308 = vld [vmem:[%s2 + $0x620] sm:$0xff]
    %v309 = vld [vmem:[%s2 + $0x628] sm:$0xff]
    %v310 = vld [vmem:[%s2 + $0x630] sm:$0xff]
    %v311 = vld [vmem:[%s2 + $0x638] sm:$0xff]
    %v312 = vld [vmem:[%s2 + $0x640] sm:$0xff]
    %v313 = vld [vmem:[%s2 + $0x648] sm:$0xff]
    %v314 = vld [vmem:[%s2 + $0x650] sm:$0xff]
    %v315 = vld [vmem:[%s2 + $0x658] sm:$0xff]
    %v316 = vld [vmem:[%s2 + $0x660] sm:$0xff]
    %v317 = vld [vmem:[%s2 + $0x668] sm:$0xff]
    %v318 = vld [vmem:[%s2 + $0x670] sm:$0xff]
    %v319 = vld [vmem:[%s2 + $0x678] sm:$0xff]
    %v320 = vld [vmem:[%s2 + $0x680] sm:$0xff]
    %v321 = vld [vmem:[%s2 + $0x688] sm:$0xff]
    %v322 = vld [vmem:[%s2 + $0x690] sm:$0xff]
    %v323 = vld [vmem:[%s2 + $0x698] sm:$0xff]
    %v324 = vld [vmem:[%s2 + $0x6a0] sm:$0xff]
    %v325 = vld [vmem:[%s2 + $0x6a8] sm:$0xff]
    %v326 = vld [vmem:[%s2 + $0x6b0] sm:$0xff]
    %v327 = vld [vmem:[%s2 + $0x6b8] sm:$0xff]
    %v328 = vld [vmem:[%s2 + $0x6c0] sm:$0xff]
    %v329 = vld [vmem:[%s2 + $0x6c8] sm:$0xff]
    %v330 = vld [vmem:[%s2 + $0x6d0] sm:$0xff]
    %v331 = vld [vmem:[%s2 + $0x6d8] sm:$0xff]
    %v332 = vld [vmem:[%s2 + $0x6e0] sm:$0xff]
    %v333 = vld [vmem:[%s2 + $0x6e8] sm:$0xff]
    %v334 = vld [vmem:[%s2 + $0x6f0] sm:$0xff]
    %v335 = vld [vmem:[%s2 + $0x6f8] sm:$0xff]
    %v336 = vld [vmem:[%s2 + $0x700] sm:$0xff]
    %v337 = vld [vmem:[%s2 + $0x708] sm:$0xff]
    %v338 = vld [vmem:[%s2 + $0x710] sm:$0xff]
    %v339 = vld [vmem:[%s2 + $0x718] sm:$0xff]
    %v340 = vld [vmem:[%s2 + $0x720] sm:$0xff]
    %v341 = vld [vmem:[%s2 + $0x728] sm:$0xff]
    %v342 = vld [vmem:[%s2 + $0x730] sm:$0xff]
    %v343 = vld [vmem:[%s2 + $0x738] sm:$0xff]
    %v344 = vld [vmem:[%s2 + $0x740] sm:$0xff]
    %v345 = vld [vmem:[%s2 + $0x748] sm:$0xff]
    %v346 = vld [vmem:[%s2 + $0x750] sm:$0xff]
    %v347 = vld [vmem:[%s2 + $0x758] sm:$0xff]
    %v348 = vld [vmem:[%s2 + $0x760] sm:$0xff]
    %v349 = vld [vmem:[%s2 + $0x768] sm:$0xff]
    %v350 = vld [vmem:[%s2 + $0x770] sm:$0xff]
    %v351 = vld [vmem:[%s2 + $0x778] sm:$0xff]
    %v352 = vld [vmem:[%s2 + $0x780] sm:$0xff]
    %v353 = vld [vmem:[%s2 + $0x788] sm:$0xff]
    %v354 = vld [vmem:[%s2 + $0x790] sm:$0xff]
    %v355 = vld [vmem:[%s2 + $0x798] sm:$0xff]
    %v356 = vld [vmem:[%s2 + $0x7a0] sm:$0xff]
    %v357 = vld [vmem:[%s2 + $0x7a8] sm:$0xff]
    %v358 = vld [vmem:[%s2 + $0x7b0] sm:$0xff]
    %v359 = vld [vmem:[%s2 + $0x7b8] sm:$0xff]
    %v360 = vld [vmem:[%s2 + $0x7c0] sm:$0xff]
    %v361 = vld [vmem:[%s2 + $0x7c8] sm:$0xff]
    %v362 = vld [vmem:[%s2 + $0x7d0] sm:$0xff]
    %v363 = vld [vmem:[%s2 + $0x7d8] sm:$0xff]
    %v364 = vld [vmem:[%s2 + $0x7e0] sm:$0xff]
    %v365 = vld [vmem:[%s2 + $0x7e8] sm:$0xff]
    %v366 = vld [vmem:[%s2 + $0x7f0] sm:$0xff]
    %v367 = vld [vmem:[%s2 + $0x7f8] sm:$0xff]
    %v368 = vld [vmem:[%s2 + $0x800] sm:$0xff]
    %v369 = vld [vmem:[%s2 + $0x808] sm:$0xff]
    %v370 = vld [vmem:[%s2 + $0x810] sm:$0xff]
    %v371 = vld [vmem:[%s2 + $0x818] sm:$0xff]
    %v372 = vld [vmem:[%s2 + $0x820] sm:$0xff]
    %v373 = vld [vmem:[%s2 + $0x828] sm:$0xff]
    %v374 = vld [vmem:[%s2 + $0x830] sm:$0xff]
    %v375 = vld [vmem:[%s2 + $0x838] sm:$0xff]
    %v376 = vld [vmem:[%s2 + $0x840] sm:$0xff]
    %v377 = vld [vmem:[%s2 + $0x848] sm:$0xff]
    %v378 = vld [vmem:[%s2 + $0x850] sm:$0xff]
    %v379 = vld [vmem:[%s2 + $0x858] sm:$0xff]
    %v380 = vld [vmem:[%s2 + $0x860] sm:$0xff]
    %v381 = vld [vmem:[%s2 + $0x868] sm:$0xff]
    %v382 = vld [vmem:[%s2 + $0x870] sm:$0xff]
    %v383 = vld [vmem:[%s2 + $0x878] sm:$0xff]
    %v384 = vld [vmem:[%s2 + $0x880] sm:$0xff]
    %v385 = vld [vmem:[%s2 + $0x888] sm:$0xff]
    %v386 = vld [vmem:[%s2 + $0x890] sm:$0xff]
    %v387 = vld [vmem:[%s2 + $0x898] sm:$0xff]
    %v388 = vld [vmem:[%s2 + $0x8a0] sm:$0xff]
    %v389 = vld [vmem:[%s2 + $0x8a8] sm:$0xff]
    %v390 = vld [vmem:[%s2 + $0x8b0] sm:$0xff]
    %v391 = vld [vmem:[%s2 + $0x8b8] sm:$0xff]
    %v392 = vld [vmem:[%s2 + $0x8c0] sm:$0xff]
    %v393 = vld [vmem:[%s2 + $0x8c8] sm:$0xff]
    %v394 = vld [vmem:[%s2 + $0x8d0] sm:$0xff]
    %v395 = vld [vmem:[%s2 + $0x8d8] sm:$0xff]
    %v396 = vld [vmem:[%s2 + $0x8e0] sm:$0xff]
    %v397 = vld [vmem:[%s2 + $0x8e8] sm:$0xff]
    %v398 = vld [vmem:[%s2 + $0x8f0] sm:$0xff]
    %v399 = vld [vmem:[%s2 + $0x8f8] sm:$0xff]
    %v400 = vld [vmem:[%s2 + $0x900] sm:$0xff]
    %v401 = vld [vmem:[%s2 + $0x908] sm:$0xff]
    %v402 = vld [vmem:[%s2 + $0x910] sm:$0xff]
    %v403 = vld [vmem:[%s2 + $0x918] sm:$0xff]
    %v404 = vld [vmem:[%s2 + $0x920] sm:$0xff]
    %v405 = vld [vmem:[%s2 + $0x928] sm:$0xff]
    %v406 = vld [vmem:[%s2 + $0x930] sm:$0xff]
    %v407 = vld [vmem:[%s2 + $0x938] sm:$0xff]
    %v408 = vld [vmem:[%s2 + $0x940] sm:$0xff]
    %v409 = vld [vmem:[%s2 + $0x948] sm:$0xff]
    %v410 = vld [vmem:[%s2 + $0x950] sm:$0xff]
    %v411 = vld [vmem:[%s2 + $0x958] sm:$0xff]
    %v412 = vld [vmem:[%s2 + $0x960] sm:$0xff]
    %v413 = vld [vmem:[%s2 + $0x968] sm:$0xff]
    %v414 = vld [vmem:[%s2 + $0x970] sm:$0xff]
    %v415 = vld [vmem:[%s2 + $0x978] sm:$0xff]
    %v416 = vld [vmem:[%s2 + $0x980] sm:$0xff]
    %v417 = vld [vmem:[%s2 + $0x988] sm:$0xff]
    %v418 = vld [vmem:[%s2 + $0x990] sm:$0xff]
    %v419 = vld [vmem:[%s2 + $0x998] sm:$0xff]
    %v420 = vld [vmem:[%s2 + $0x9a0] sm:$0xff]
    %v421 = vld [vmem:[%s2 + $0x9a8] sm:$0xff]
    %v422 = vld [vmem:[%s2 + $0x9b0] sm:$0xff]
    %v423 = vld [vmem:[%s2 + $0x9b8] sm:$0xff]
    %v424 = vld [vmem:[%s2 + $0x9c0] sm:$0xff]
    %v425 = vld [vmem:[%s2 + $0x9c8] sm:$0xff]
    %v426 = vld [vmem:[%s2 + $0x9d0] sm:$0xff]
    %v427 = vld [vmem:[%s2 + $0x9d8] sm:$0xff]
    %v428 = vld [vmem:[%s2 + $0x9e0] sm:$0xff]
    %v429 = vld [vmem:[%s2 + $0x9e8] sm:$0xff]
    %v430 = vld [vmem:[%s2 + $0x9f0] sm:$0xff]
    %v431 = vld [vmem:[%s2 + $0x9f8] sm:$0xff]
    %v432 = vld [vmem:[%s2 + $0xa00] sm:$0xff]
    %v433 = vld [vmem:[%s2 + $0xa08] sm:$0xff]
    %v434 = vld [vmem:[%s2 + $0xa10] sm:$0xff]
    %v435 = vld [vmem:[%s2 + $0xa18] sm:$0xff]
    %v436 = vld [vmem:[%s2 + $0xa20] sm:$0xff]
    %v437 = vld [vmem:[%s2 + $0xa28] sm:$0xff]
    %v438 = vld [vmem:[%s2 + $0xa30] sm:$0xff]
    %v439 = vld [vmem:[%s2 + $0xa38] sm:$0xff]
    %v440 = vld [vmem:[%s2 + $0xa40] sm:$0xff]
    %v441 = vld [vmem:[%s2 + $0xa48] sm:$0xff]
    %v442 = vld [vmem:[%s2 + $0xa50] sm:$0xff]
    %v443 = vld [vmem:[%s2 + $0xa58] sm:$0xff]
    %v444 = vld [vmem:[%s2 + $0xa60] sm:$0xff]
    %v445 = vld [vmem:[%s2 + $0xa68] sm:$0xff]
    %v446 = vld [vmem:[%s2 + $0xa70] sm:$0xff]
    %v447 = vld [vmem:[%s2 + $0xa78] sm:$0xff]
    %v448 = vld [vmem:[%s2 + $0xa80] sm:$0xff]
    %v449 = vld [vmem:[%s2 + $0xa88] sm:$0xff]
    %v450 = vld [vmem:[%s2 + $0xa90] sm:$0xff]
    %v451 = vld [vmem:[%s2 + $0xa98] sm:$0xff]
    %v452 = vld [vmem:[%s2 + $0xaa0] sm:$0xff]
    %v453 = vld [vmem:[%s2 + $0xaa8] sm:$0xff]
    %v454 = vld [vmem:[%s2 + $0xab0] sm:$0xff]
    %v455 = vld [vmem:[%s2 + $0xab8] sm:$0xff]
    %v456 = vld [vmem:[%s2 + $0xac0] sm:$0xff]
    %v457 = vld [vmem:[%s2 + $0xac8] sm:$0xff]
    %v458 = vld [vmem:[%s2 + $0xad0] sm:$0xff]
    %v459 = vld [vmem:[%s2 + $0xad8] sm:$0xff]
    %v460 = vld [vmem:[%s2 + $0xae0] sm:$0xff]
    %v461 = vld [vmem:[%s2 + $0xae8] sm:$0xff]
    %v462 = vld [vmem:[%s2 + $0xaf0] sm:$0xff]
    %v463 = vld [vmem:[%s2 + $0xaf8] sm:$0xff]
    %v464 = vld [vmem:[%s2 + $0xb00] sm:$0xff]
    %v465 = vld [vmem:[%s2 + $0xb08] sm:$0xff]
    %v466 = vld [vmem:[%s2 + $0xb10] sm:$0xff]
    %v467 = vld [vmem:[%s2 + $0xb18] sm:$0xff]
    %v468 = vld [vmem:[%s2 + $0xb20] sm:$0xff]
    %v469 = vld [vmem:[%s2 + $0xb28] sm:$0xff]
    %v470 = vld [vmem:[%s2 + $0xb30] sm:$0xff]
    %v471 = vld [vmem:[%s2 + $0xb38] sm:$0xff]
    %v472 = vld [vmem:[%s2 + $0xb40] sm:$0xff]
    %v473 = vld [vmem:[%s2 + $0xb48] sm:$0xff]
    %v474 = vld [vmem:[%s2 + $0xb50] sm:$0xff]
    %v475 = vld [vmem:[%s2 + $0xb58] sm:$0xff]
    %v476 = vld [vmem:[%s2 + $0xb60] sm:$0xff]
    %v477 = vld [vmem:[%s2 + $0xb68] sm:$0xff]
    %v478 = vld [vmem:[%s2 + $0xb70] sm:$0xff]
    %v479 = vld [vmem:[%s2 + $0xb78] sm:$0xff]
    %v480 = vld [vmem:[%s2 + $0xb80] sm:$0xff]
    %v481 = vld [vmem:[%s2 + $0xb88] sm:$0xff]
    %v482 = vld [vmem:[%s2 + $0xb90] sm:$0xff]
    %v483 = vld [vmem:[%s2 + $0xb98] sm:$0xff]
    %v484 = vld [vmem:[%s2 + $0xba0] sm:$0xff]
    %v485 = vld [vmem:[%s2 + $0xba8] sm:$0xff]
    %v486 = vld [vmem:[%s2 + $0xbb0] sm:$0xff]
    %v487 = vld [vmem:[%s2 + $0xbb8] sm:$0xff]
    %v488 = vld [vmem:[%s2 + $0xbc0] sm:$0xff]
    %v489 = vld [vmem:[%s2 + $0xbc8] sm:$0xff]
    %v490 = vld [vmem:[%s2 + $0xbd0] sm:$0xff]
    %v491 = vld [vmem:[%s2 + $0xbd8] sm:$0xff]
    %v492 = vld [vmem:[%s2 + $0xbe0] sm:$0xff]
    %v493 = vld [vmem:[%s2 + $0xbe8] sm:$0xff]
    %v494 = vld [vmem:[%s2 + $0xbf0] sm:$0xff]
    %v495 = vld [vmem:[%s2 + $0xbf8] sm:$0xff]
    %v496 = vld [vmem:[%s2 + $0xc00] sm:$0xff]
    %v497 = vld [vmem:[%s2 + $0xc08] sm:$0xff]
    %v498 = vld [vmem:[%s2 + $0xc10] sm:$0xff]
    %v499 = vld [vmem:[%s2 + $0xc18] sm:$0xff]
    %v500 = vld [vmem:[%s2 + $0xc20] sm:$0xff]
    %v501 = vld [vmem:[%s2 + $0xc28] sm:$0xff]
    %v502 = vld [vmem:[%s2 + $0xc30] sm:$0xff]
    %v503 = vld [vmem:[%s2 + $0xc38] sm:$0xff]
    %v504 = vld [vmem:[%s2 + $0xc40] sm:$0xff]
    %v505 = vld [vmem:[%s2 + $0xc48] sm:$0xff]
    %v506 = vld [vmem:[%s2 + $0xc50] sm:$0xff]
    %v507 = vld [vmem:[%s2 + $0xc58] sm:$0xff]
    %v508 = vld [vmem:[%s2 + $0xc60] sm:$0xff]
    %v509 = vld [vmem:[%s2 + $0xc68] sm:$0xff]
    %v510 = vld [vmem:[%s2 + $0xc70] sm:$0xff]
    %v511 = vld [vmem:[%s2 + $0xc78] sm:$0xff]
    %v512 = vld [vmem:[%s2 + $0xc80] sm:$0xff]
    %v513 = vld [vmem:[%s2 + $0xc88] sm:$0xff]
    %v514 = vld [vmem:[%s2 + $0xc90] sm:$0xff]
    %v515 = vld [vmem:[%s2 + $0xc98] sm:$0xff]
    %v516 = vld [vmem:[%s2 + $0xca0] sm:$0xff]
    %v517 = vld [vmem:[%s2 + $0xca8] sm:$0xff]
    %v518 = vld [vmem:[%s2 + $0xcb0] sm:$0xff]
    %v519 = vld [vmem:[%s2 + $0xcb8] sm:$0xff]
    %v520 = vld [vmem:[%s2 + $0xcc0] sm:$0xff]
    %v521 = vld [vmem:[%s2 + $0xcc8] sm:$0xff]
    %v522 = vld [vmem:[%s2 + $0xcd0] sm:$0xff]
    %v523 = vld [vmem:[%s2 + $0xcd8] sm:$0xff]
    %v524 = vld [vmem:[%s2 + $0xce0] sm:$0xff]
    %v525 = vld [vmem:[%s2 + $0xce8] sm:$0xff]
    %v526 = vld [vmem:[%s2 + $0xcf0] sm:$0xff]
    %v527 = vld [vmem:[%s2 + $0xcf8] sm:$0xff]
    %v528 = vld [vmem:[%s2 + $0xd00] sm:$0xff]
    %v529 = vld [vmem:[%s2 + $0xd08] sm:$0xff]
    %v530 = vld [vmem:[%s2 + $0xd10] sm:$0xff]
    %v531 = vld [vmem:[%s2 + $0xd18] sm:$0xff]
    %v532 = vld [vmem:[%s2 + $0xd20] sm:$0xff]
    %v533 = vld [vmem:[%s2 + $0xd28] sm:$0xff]
    %v534 = vld [vmem:[%s2 + $0xd30] sm:$0xff]
    %v535 = vld [vmem:[%s2 + $0xd38] sm:$0xff]
    %v536 = vld [vmem:[%s2 + $0xd40] sm:$0xff]
    %v537 = vld [vmem:[%s2 + $0xd48] sm:$0xff]
    %v538 = vld [vmem:[%s2 + $0xd50] sm:$0xff]
    %v539 = vld [vmem:[%s2 + $0xd58] sm:$0xff]
    %v540 = vld [vmem:[%s2 + $0xd60] sm:$0xff]
    %v541 = vld [vmem:[%s2 + $0xd68] sm:$0xff]
    %v542 = vld [vmem:[%s2 + $0xd70] sm:$0xff]
    %v543 = vld [vmem:[%s2 + $0xd78] sm:$0xff]
    %v544 = vld [vmem:[%s2 + $0xd80] sm:$0xff]
    %v545 = vld [vmem:[%s2 + $0xd88] sm:$0xff]
    %v546 = vld [vmem:[%s2 + $0xd90] sm:$0xff]
    %v547 = vld [vmem:[%s2 + $0xd98] sm:$0xff]
    %v548 = vld [vmem:[%s2 + $0xda0] sm:$0xff]
    %v549 = vld [vmem:[%s2 + $0xda8] sm:$0xff]
    %v550 = vld [vmem:[%s2 + $0xdb0] sm:$0xff]
    %v551 = vld [vmem:[%s2 + $0xdb8] sm:$0xff]
    %v552 = vld [vmem:[%s2 + $0xdc0] sm:$0xff]
    %v553 = vld [vmem:[%s2 + $0xdc8] sm:$0xff]
    %v554 = vld [vmem:[%s2 + $0xdd0] sm:$0xff]
    %v555 = vld [vmem:[%s2 + $0xdd8] sm:$0xff]
    %v556 = vld [vmem:[%s2 + $0xde0] sm:$0xff]
    %v557 = vld [vmem:[%s2 + $0xde8] sm:$0xff]
    %v558 = vld [vmem:[%s2 + $0xdf0] sm:$0xff]
    %v559 = vld [vmem:[%s2 + $0xdf8] sm:$0xff]
    %v560 = vld [vmem:[%s2 + $0xe00] sm:$0xff]
    %v561 = vld [vmem:[%s2 + $0xe08] sm:$0xff]
    %v562 = vld [vmem:[%s2 + $0xe10] sm:$0xff]
    %v563 = vld [vmem:[%s2 + $0xe18] sm:$0xff]
    %v564 = vld [vmem:[%s2 + $0xe20] sm:$0xff]
    %v565 = vld [vmem:[%s2 + $0xe28] sm:$0xff]
    %v566 = vld [vmem:[%s2 + $0xe30] sm:$0xff]
    %v567 = vld [vmem:[%s2 + $0xe38] sm:$0xff]
    %v568 = vld [vmem:[%s2 + $0xe40] sm:$0xff]
    %v569 = vld [vmem:[%s2 + $0xe48] sm:$0xff]
    %v570 = vld [vmem:[%s2 + $0xe50] sm:$0xff]
    %v571 = vld [vmem:[%s2 + $0xe58] sm:$0xff]
    %v572 = vld [vmem:[%s2 + $0xe60] sm:$0xff]
    %v573 = vld [vmem:[%s2 + $0xe68] sm:$0xff]
    %v574 = vld [vmem:[%s2 + $0xe70] sm:$0xff]
    %v575 = vld [vmem:[%s2 + $0xe78] sm:$0xff]
    %v576 = vld [vmem:[%s2 + $0xe80] sm:$0xff]
    %v577 = vld [vmem:[%s2 + $0xe88] sm:$0xff]
    %v578 = vld [vmem:[%s2 + $0xe90] sm:$0xff]
    %v579 = vld [vmem:[%s2 + $0xe98] sm:$0xff]
    %v580 = vld [vmem:[%s2 + $0xea0] sm:$0xff]
    %v581 = vld [vmem:[%s2 + $0xea8] sm:$0xff]
    %v582 = vld [vmem:[%s2 + $0xeb0] sm:$0xff]
    %v583 = vld [vmem:[%s2 + $0xeb8] sm:$0xff]
    %v584 = vld [vmem:[%s2 + $0xec0] sm:$0xff]
    %v585 = vld [vmem:[%s2 + $0xec8] sm:$0xff]
    %v586 = vld [vmem:[%s2 + $0xed0] sm:$0xff]
    %v587 = vld [vmem:[%s2 + $0xed8] sm:$0xff]
    %v588 = vld [vmem:[%s2 + $0xee0] sm:$0xff]
    %v589 = vld [vmem:[%s2 + $0xee8] sm:$0xff]
    %v590 = vld [vmem:[%s2 + $0xef0] sm:$0xff]
    %v591 = vld [vmem:[%s2 + $0xef8] sm:$0xff]
    %v592 = vld [vmem:[%s2 + $0xf00] sm:$0xff]
    %v593 = vld [vmem:[%s2 + $0xf08] sm:$0xff]
    %v594 = vld [vmem:[%s2 + $0xf10] sm:$0xff]
    %v595 = vld [vmem:[%s2 + $0xf18] sm:$0xff]
    %v596 = vld [vmem:[%s2 + $0xf20] sm:$0xff]
    %v597 = vld [vmem:[%s2 + $0xf28] sm:$0xff]
    %v598 = vld [vmem:[%s2 + $0xf30] sm:$0xff]
    %v599 = vld [vmem:[%s2 + $0xf38] sm:$0xff]
    %v600 = vld [vmem:[%s2 + $0xf40] sm:$0xff]
    %v601 = vld [vmem:[%s2 + $0xf48] sm:$0xff]
    %v602 = vld [vmem:[%s2 + $0xf50] sm:$0xff]
    %v603 = vld [vmem:[%s2 + $0xf58] sm:$0xff]
    %v604 = vld [vmem:[%s2 + $0xf60] sm:$0xff]
    %v605 = vld [vmem:[%s2 + $0xf68] sm:$0xff]
    %v606 = vld [vmem:[%s2 + $0xf70] sm:$0xff]
    %v607 = vld [vmem:[%s2 + $0xf78] sm:$0xff]
    %v608 = vld [vmem:[%s2 + $0xf80] sm:$0xff]
    %v609 = vld [vmem:[%s2 + $0xf88] sm:$0xff]
    %v610 = vld [vmem:[%s2 + $0xf90] sm:$0xff]
    %v611 = vld [vmem:[%s2 + $0xf98] sm:$0xff]
    %v612 = vld [vmem:[%s2 + $0xfa0] sm:$0xff]
    %v613 = vld [vmem:[%s2 + $0xfa8] sm:$0xff]
    %v614 = vld [vmem:[%s2 + $0xfb0] sm:$0xff]
    %v615 = vld [vmem:[%s2 + $0xfb8] sm:$0xff]
    %v616 = vld [vmem:[%s2 + $0xfc0] sm:$0xff]
    %v617 = vld [vmem:[%s2 + $0xfc8] sm:$0xff]
    %v618 = vld [vmem:[%s2 + $0xfd0] sm:$0xff]
    %v619 = vld [vmem:[%s2 + $0xfd8] sm:$0xff]
    %v620 = vld [vmem:[%s2 + $0xfe0] sm:$0xff]
    %v621 = vld [vmem:[%s2 + $0xfe8] sm:$0xff]
    %v622 = vld [vmem:[%s2 + $0xff0] sm:$0xff]
    %v623 = vld [vmem:[%s2 + $0xff8] sm:$0xff]
    %v624 = vld [vmem:[%s3] sm:$0xff]
    %v626 = vperm.slane %v624, 0
    %v627 = vperm.slane %v624, 1
    %v628 = vperm.slane %v624, 2
    %v629 = vperm.slane %v624, 3
    %v630 = vperm.slane %v624, 4
    %v631 = vperm.slane %v624, 5
    %v632 = vperm.slane %v624, 6
    %v633 = vperm.slane %v624, 7
    %v1154 = vunpack.c.l.b16 %v112
    %v1155 = vunpack.c.h.b16 %v112
    %v1156 = vunpack.c.l.b16 %v113
    %v1157 = vunpack.c.h.b16 %v113
    %v1158 = vunpack.c.l.b16 %v114
    %v1159 = vunpack.c.h.b16 %v114
    %v1160 = vunpack.c.l.b16 %v115
    %v1161 = vunpack.c.h.b16 %v115
    %v1162 = vunpack.c.l.b16 %v116
    %v1163 = vunpack.c.h.b16 %v116
    %v1164 = vunpack.c.l.b16 %v117
    %v1165 = vunpack.c.h.b16 %v117
    %v1166 = vunpack.c.l.b16 %v118
    %v1167 = vunpack.c.h.b16 %v118
    %v1168 = vunpack.c.l.b16 %v119
    %v1169 = vunpack.c.h.b16 %v119
    %v1170 = vunpack.c.l.b16 %v120
    %v1171 = vunpack.c.h.b16 %v120
    %v1172 = vunpack.c.l.b16 %v121
    %v1173 = vunpack.c.h.b16 %v121
    %v1174 = vunpack.c.l.b16 %v122
    %v1175 = vunpack.c.h.b16 %v122
    %v1176 = vunpack.c.l.b16 %v123
    %v1177 = vunpack.c.h.b16 %v123
    %v1178 = vunpack.c.l.b16 %v124
    %v1179 = vunpack.c.h.b16 %v124
    %v1180 = vunpack.c.l.b16 %v125
    %v1181 = vunpack.c.h.b16 %v125
    %v1182 = vunpack.c.l.b16 %v126
    %v1183 = vunpack.c.h.b16 %v126
    %v1184 = vunpack.c.l.b16 %v127
    %v1185 = vunpack.c.h.b16 %v127
    %v1186 = vunpack.c.l.b16 %v128
    %v1187 = vunpack.c.h.b16 %v128
    %v1188 = vunpack.c.l.b16 %v129
    %v1189 = vunpack.c.h.b16 %v129
    %v1190 = vunpack.c.l.b16 %v130
    %v1191 = vunpack.c.h.b16 %v130
    %v1192 = vunpack.c.l.b16 %v131
    %v1193 = vunpack.c.h.b16 %v131
    %v1194 = vunpack.c.l.b16 %v132
    %v1195 = vunpack.c.h.b16 %v132
    %v1196 = vunpack.c.l.b16 %v133
    %v1197 = vunpack.c.h.b16 %v133
    %v1198 = vunpack.c.l.b16 %v134
    %v1199 = vunpack.c.h.b16 %v134
    %v1200 = vunpack.c.l.b16 %v135
    %v1201 = vunpack.c.h.b16 %v135
    %v1202 = vunpack.c.l.b16 %v136
    %v1203 = vunpack.c.h.b16 %v136
    %v1204 = vunpack.c.l.b16 %v137
    %v1205 = vunpack.c.h.b16 %v137
    %v1206 = vunpack.c.l.b16 %v138
    %v1207 = vunpack.c.h.b16 %v138
    %v1208 = vunpack.c.l.b16 %v139
    %v1209 = vunpack.c.h.b16 %v139
    %v1210 = vunpack.c.l.b16 %v140
    %v1211 = vunpack.c.h.b16 %v140
    %v1212 = vunpack.c.l.b16 %v141
    %v1213 = vunpack.c.h.b16 %v141
    %v1214 = vunpack.c.l.b16 %v142
    %v1215 = vunpack.c.h.b16 %v142
    %v1216 = vunpack.c.l.b16 %v143
    %v1217 = vunpack.c.h.b16 %v143
    %v1218 = vunpack.c.l.b16 %v144
    %v1219 = vunpack.c.h.b16 %v144
    %v1220 = vunpack.c.l.b16 %v145
    %v1221 = vunpack.c.h.b16 %v145
    %v1222 = vunpack.c.l.b16 %v146
    %v1223 = vunpack.c.h.b16 %v146
    %v1224 = vunpack.c.l.b16 %v147
    %v1225 = vunpack.c.h.b16 %v147
    %v1226 = vunpack.c.l.b16 %v148
    %v1227 = vunpack.c.h.b16 %v148
    %v1228 = vunpack.c.l.b16 %v149
    %v1229 = vunpack.c.h.b16 %v149
    %v1230 = vunpack.c.l.b16 %v150
    %v1231 = vunpack.c.h.b16 %v150
    %v1232 = vunpack.c.l.b16 %v151
    %v1233 = vunpack.c.h.b16 %v151
    %v1234 = vunpack.c.l.b16 %v152
    %v1235 = vunpack.c.h.b16 %v152
    %v1236 = vunpack.c.l.b16 %v153
    %v1237 = vunpack.c.h.b16 %v153
    %v1238 = vunpack.c.l.b16 %v154
    %v1239 = vunpack.c.h.b16 %v154
    %v1240 = vunpack.c.l.b16 %v155
    %v1241 = vunpack.c.h.b16 %v155
    %v1242 = vunpack.c.l.b16 %v156
    %v1243 = vunpack.c.h.b16 %v156
    %v1244 = vunpack.c.l.b16 %v157
    %v1245 = vunpack.c.h.b16 %v157
    %v1246 = vunpack.c.l.b16 %v158
    %v1247 = vunpack.c.h.b16 %v158
    %v1248 = vunpack.c.l.b16 %v159
    %v1249 = vunpack.c.h.b16 %v159
    %v1250 = vunpack.c.l.b16 %v160
    %v1251 = vunpack.c.h.b16 %v160
    %v1252 = vunpack.c.l.b16 %v161
    %v1253 = vunpack.c.h.b16 %v161
    %v1254 = vunpack.c.l.b16 %v162
    %v1255 = vunpack.c.h.b16 %v162
    %v1256 = vunpack.c.l.b16 %v163
    %v1257 = vunpack.c.h.b16 %v163
    %v1258 = vunpack.c.l.b16 %v164
    %v1259 = vunpack.c.h.b16 %v164
    %v1260 = vunpack.c.l.b16 %v165
    %v1261 = vunpack.c.h.b16 %v165
    %v1262 = vunpack.c.l.b16 %v166
    %v1263 = vunpack.c.h.b16 %v166
    %v1264 = vunpack.c.l.b16 %v167
    %v1265 = vunpack.c.h.b16 %v167
    %v1266 = vunpack.c.l.b16 %v168
    %v1267 = vunpack.c.h.b16 %v168
    %v1268 = vunpack.c.l.b16 %v169
    %v1269 = vunpack.c.h.b16 %v169
    %v1270 = vunpack.c.l.b16 %v170
    %v1271 = vunpack.c.h.b16 %v170
    %v1272 = vunpack.c.l.b16 %v171
    %v1273 = vunpack.c.h.b16 %v171
    %v1274 = vunpack.c.l.b16 %v172
    %v1275 = vunpack.c.h.b16 %v172
    %v1276 = vunpack.c.l.b16 %v173
    %v1277 = vunpack.c.h.b16 %v173
    %v1278 = vunpack.c.l.b16 %v174
    %v1279 = vunpack.c.h.b16 %v174
    %v1280 = vunpack.c.l.b16 %v175
    %v1281 = vunpack.c.h.b16 %v175
    %v1282 = vunpack.c.l.b16 %v176
    %v1283 = vunpack.c.h.b16 %v176
    %v1284 = vunpack.c.l.b16 %v177
    %v1285 = vunpack.c.h.b16 %v177
    %v1286 = vunpack.c.l.b16 %v178
    %v1287 = vunpack.c.h.b16 %v178
    %v1288 = vunpack.c.l.b16 %v179
    %v1289 = vunpack.c.h.b16 %v179
    %v1290 = vunpack.c.l.b16 %v180
    %v1291 = vunpack.c.h.b16 %v180
    %v1292 = vunpack.c.l.b16 %v181
    %v1293 = vunpack.c.h.b16 %v181
    %v1294 = vunpack.c.l.b16 %v182
    %v1295 = vunpack.c.h.b16 %v182
    %v1296 = vunpack.c.l.b16 %v183
    %v1297 = vunpack.c.h.b16 %v183
    %v1298 = vunpack.c.l.b16 %v184
    %v1299 = vunpack.c.h.b16 %v184
    %v1300 = vunpack.c.l.b16 %v185
    %v1301 = vunpack.c.h.b16 %v185
    %v1302 = vunpack.c.l.b16 %v186
    %v1303 = vunpack.c.h.b16 %v186
    %v1304 = vunpack.c.l.b16 %v187
    %v1305 = vunpack.c.h.b16 %v187
    %v1306 = vunpack.c.l.b16 %v188
    %v1307 = vunpack.c.h.b16 %v188
    %v1308 = vunpack.c.l.b16 %v189
    %v1309 = vunpack.c.h.b16 %v189
    %v1310 = vunpack.c.l.b16 %v190
    %v1311 = vunpack.c.h.b16 %v190
    %v1312 = vunpack.c.l.b16 %v191
    %v1313 = vunpack.c.h.b16 %v191
    %v1314 = vunpack.c.l.b16 %v192
    %v1315 = vunpack.c.h.b16 %v192
    %v1316 = vunpack.c.l.b16 %v193
    %v1317 = vunpack.c.h.b16 %v193
    %v1318 = vunpack.c.l.b16 %v194
    %v1319 = vunpack.c.h.b16 %v194
    %v1320 = vunpack.c.l.b16 %v195
    %v1321 = vunpack.c.h.b16 %v195
    %v1322 = vunpack.c.l.b16 %v196
    %v1323 = vunpack.c.h.b16 %v196
    %v1324 = vunpack.c.l.b16 %v197
    %v1325 = vunpack.c.h.b16 %v197
    %v1326 = vunpack.c.l.b16 %v198
    %v1327 = vunpack.c.h.b16 %v198
    %v1328 = vunpack.c.l.b16 %v199
    %v1329 = vunpack.c.h.b16 %v199
    %v1330 = vunpack.c.l.b16 %v200
    %v1331 = vunpack.c.h.b16 %v200
    %v1332 = vunpack.c.l.b16 %v201
    %v1333 = vunpack.c.h.b16 %v201
    %v1334 = vunpack.c.l.b16 %v202
    %v1335 = vunpack.c.h.b16 %v202
    %v1336 = vunpack.c.l.b16 %v203
    %v1337 = vunpack.c.h.b16 %v203
    %v1338 = vunpack.c.l.b16 %v204
    %v1339 = vunpack.c.h.b16 %v204
    %v1340 = vunpack.c.l.b16 %v205
    %v1341 = vunpack.c.h.b16 %v205
    %v1342 = vunpack.c.l.b16 %v206
    %v1343 = vunpack.c.h.b16 %v206
    %v1344 = vunpack.c.l.b16 %v207
    %v1345 = vunpack.c.h.b16 %v207
    %v1346 = vunpack.c.l.b16 %v208
    %v1347 = vunpack.c.h.b16 %v208
    %v1348 = vunpack.c.l.b16 %v209
    %v1349 = vunpack.c.h.b16 %v209
    %v1350 = vunpack.c.l.b16 %v210
    %v1351 = vunpack.c.h.b16 %v210
    %v1352 = vunpack.c.l.b16 %v211
    %v1353 = vunpack.c.h.b16 %v211
    %v1354 = vunpack.c.l.b16 %v212
    %v1355 = vunpack.c.h.b16 %v212
    %v1356 = vunpack.c.l.b16 %v213
    %v1357 = vunpack.c.h.b16 %v213
    %v1358 = vunpack.c.l.b16 %v214
    %v1359 = vunpack.c.h.b16 %v214
    %v1360 = vunpack.c.l.b16 %v215
    %v1361 = vunpack.c.h.b16 %v215
    %v1362 = vunpack.c.l.b16 %v216
    %v1363 = vunpack.c.h.b16 %v216
    %v1364 = vunpack.c.l.b16 %v217
    %v1365 = vunpack.c.h.b16 %v217
    %v1366 = vunpack.c.l.b16 %v218
    %v1367 = vunpack.c.h.b16 %v218
    %v1368 = vunpack.c.l.b16 %v219
    %v1369 = vunpack.c.h.b16 %v219
    %v1370 = vunpack.c.l.b16 %v220
    %v1371 = vunpack.c.h.b16 %v220
    %v1372 = vunpack.c.l.b16 %v221
    %v1373 = vunpack.c.h.b16 %v221
    %v1374 = vunpack.c.l.b16 %v222
    %v1375 = vunpack.c.h.b16 %v222
    %v1376 = vunpack.c.l.b16 %v223
    %v1377 = vunpack.c.h.b16 %v223
    %v1378 = vunpack.c.l.b16 %v224
    %v1379 = vunpack.c.h.b16 %v224
    %v1380 = vunpack.c.l.b16 %v225
    %v1381 = vunpack.c.h.b16 %v225
    %v1382 = vunpack.c.l.b16 %v226
    %v1383 = vunpack.c.h.b16 %v226
    %v1384 = vunpack.c.l.b16 %v227
    %v1385 = vunpack.c.h.b16 %v227
    %v1386 = vunpack.c.l.b16 %v228
    %v1387 = vunpack.c.h.b16 %v228
    %v1388 = vunpack.c.l.b16 %v229
    %v1389 = vunpack.c.h.b16 %v229
    %v1390 = vunpack.c.l.b16 %v230
    %v1391 = vunpack.c.h.b16 %v230
    %v1392 = vunpack.c.l.b16 %v231
    %v1393 = vunpack.c.h.b16 %v231
    %v1394 = vunpack.c.l.b16 %v232
    %v1395 = vunpack.c.h.b16 %v232
    %v1396 = vunpack.c.l.b16 %v233
    %v1397 = vunpack.c.h.b16 %v233
    %v1398 = vunpack.c.l.b16 %v234
    %v1399 = vunpack.c.h.b16 %v234
    %v1400 = vunpack.c.l.b16 %v235
    %v1401 = vunpack.c.h.b16 %v235
    %v1402 = vunpack.c.l.b16 %v236
    %v1403 = vunpack.c.h.b16 %v236
    %v1404 = vunpack.c.l.b16 %v237
    %v1405 = vunpack.c.h.b16 %v237
    %v1406 = vunpack.c.l.b16 %v238
    %v1407 = vunpack.c.h.b16 %v238
    %v1408 = vunpack.c.l.b16 %v239
    %v1409 = vunpack.c.h.b16 %v239
    %v1410 = vunpack.c.l.b16 %v240
    %v1411 = vunpack.c.h.b16 %v240
    %v1412 = vunpack.c.l.b16 %v241
    %v1413 = vunpack.c.h.b16 %v241
    %v1414 = vunpack.c.l.b16 %v242
    %v1415 = vunpack.c.h.b16 %v242
    %v1416 = vunpack.c.l.b16 %v243
    %v1417 = vunpack.c.h.b16 %v243
    %v1418 = vunpack.c.l.b16 %v244
    %v1419 = vunpack.c.h.b16 %v244
    %v1420 = vunpack.c.l.b16 %v245
    %v1421 = vunpack.c.h.b16 %v245
    %v1422 = vunpack.c.l.b16 %v246
    %v1423 = vunpack.c.h.b16 %v246
    %v1424 = vunpack.c.l.b16 %v247
    %v1425 = vunpack.c.h.b16 %v247
    %v1426 = vunpack.c.l.b16 %v248
    %v1427 = vunpack.c.h.b16 %v248
    %v1428 = vunpack.c.l.b16 %v249
    %v1429 = vunpack.c.h.b16 %v249
    %v1430 = vunpack.c.l.b16 %v250
    %v1431 = vunpack.c.h.b16 %v250
    %v1432 = vunpack.c.l.b16 %v251
    %v1433 = vunpack.c.h.b16 %v251
    %v1434 = vunpack.c.l.b16 %v252
    %v1435 = vunpack.c.h.b16 %v252
    %v1436 = vunpack.c.l.b16 %v253
    %v1437 = vunpack.c.h.b16 %v253
    %v1438 = vunpack.c.l.b16 %v254
    %v1439 = vunpack.c.h.b16 %v254
    %v1440 = vunpack.c.l.b16 %v255
    %v1441 = vunpack.c.h.b16 %v255
    %v1442 = vunpack.c.l.b16 %v256
    %v1443 = vunpack.c.h.b16 %v256
    %v1444 = vunpack.c.l.b16 %v257
    %v1445 = vunpack.c.h.b16 %v257
    %v1446 = vunpack.c.l.b16 %v258
    %v1447 = vunpack.c.h.b16 %v258
    %v1448 = vunpack.c.l.b16 %v259
    %v1449 = vunpack.c.h.b16 %v259
    %v1450 = vunpack.c.l.b16 %v260
    %v1451 = vunpack.c.h.b16 %v260
    %v1452 = vunpack.c.l.b16 %v261
    %v1453 = vunpack.c.h.b16 %v261
    %v1454 = vunpack.c.l.b16 %v262
    %v1455 = vunpack.c.h.b16 %v262
    %v1456 = vunpack.c.l.b16 %v263
    %v1457 = vunpack.c.h.b16 %v263
    %v1458 = vunpack.c.l.b16 %v264
    %v1459 = vunpack.c.h.b16 %v264
    %v1460 = vunpack.c.l.b16 %v265
    %v1461 = vunpack.c.h.b16 %v265
    %v1462 = vunpack.c.l.b16 %v266
    %v1463 = vunpack.c.h.b16 %v266
    %v1464 = vunpack.c.l.b16 %v267
    %v1465 = vunpack.c.h.b16 %v267
    %v1466 = vunpack.c.l.b16 %v268
    %v1467 = vunpack.c.h.b16 %v268
    %v1468 = vunpack.c.l.b16 %v269
    %v1469 = vunpack.c.h.b16 %v269
    %v1470 = vunpack.c.l.b16 %v270
    %v1471 = vunpack.c.h.b16 %v270
    %v1472 = vunpack.c.l.b16 %v271
    %v1473 = vunpack.c.h.b16 %v271
    %v1474 = vunpack.c.l.b16 %v272
    %v1475 = vunpack.c.h.b16 %v272
    %v1476 = vunpack.c.l.b16 %v273
    %v1477 = vunpack.c.h.b16 %v273
    %v1478 = vunpack.c.l.b16 %v274
    %v1479 = vunpack.c.h.b16 %v274
    %v1480 = vunpack.c.l.b16 %v275
    %v1481 = vunpack.c.h.b16 %v275
    %v1482 = vunpack.c.l.b16 %v276
    %v1483 = vunpack.c.h.b16 %v276
    %v1484 = vunpack.c.l.b16 %v277
    %v1485 = vunpack.c.h.b16 %v277
    %v1486 = vunpack.c.l.b16 %v278
    %v1487 = vunpack.c.h.b16 %v278
    %v1488 = vunpack.c.l.b16 %v279
    %v1489 = vunpack.c.h.b16 %v279
    %v1490 = vunpack.c.l.b16 %v280
    %v1491 = vunpack.c.h.b16 %v280
    %v1492 = vunpack.c.l.b16 %v281
    %v1493 = vunpack.c.h.b16 %v281
    %v1494 = vunpack.c.l.b16 %v282
    %v1495 = vunpack.c.h.b16 %v282
    %v1496 = vunpack.c.l.b16 %v283
    %v1497 = vunpack.c.h.b16 %v283
    %v1498 = vunpack.c.l.b16 %v284
    %v1499 = vunpack.c.h.b16 %v284
    %v1500 = vunpack.c.l.b16 %v285
    %v1501 = vunpack.c.h.b16 %v285
    %v1502 = vunpack.c.l.b16 %v286
    %v1503 = vunpack.c.h.b16 %v286
    %v1504 = vunpack.c.l.b16 %v287
    %v1505 = vunpack.c.h.b16 %v287
    %v1506 = vunpack.c.l.b16 %v288
    %v1507 = vunpack.c.h.b16 %v288
    %v1508 = vunpack.c.l.b16 %v289
    %v1509 = vunpack.c.h.b16 %v289
    %v1510 = vunpack.c.l.b16 %v290
    %v1511 = vunpack.c.h.b16 %v290
    %v1512 = vunpack.c.l.b16 %v291
    %v1513 = vunpack.c.h.b16 %v291
    %v1514 = vunpack.c.l.b16 %v292
    %v1515 = vunpack.c.h.b16 %v292
    %v1516 = vunpack.c.l.b16 %v293
    %v1517 = vunpack.c.h.b16 %v293
    %v1518 = vunpack.c.l.b16 %v294
    %v1519 = vunpack.c.h.b16 %v294
    %v1520 = vunpack.c.l.b16 %v295
    %v1521 = vunpack.c.h.b16 %v295
    %v1522 = vunpack.c.l.b16 %v296
    %v1523 = vunpack.c.h.b16 %v296
    %v1524 = vunpack.c.l.b16 %v297
    %v1525 = vunpack.c.h.b16 %v297
    %v1526 = vunpack.c.l.b16 %v298
    %v1527 = vunpack.c.h.b16 %v298
    %v1528 = vunpack.c.l.b16 %v299
    %v1529 = vunpack.c.h.b16 %v299
    %v1530 = vunpack.c.l.b16 %v300
    %v1531 = vunpack.c.h.b16 %v300
    %v1532 = vunpack.c.l.b16 %v301
    %v1533 = vunpack.c.h.b16 %v301
    %v1534 = vunpack.c.l.b16 %v302
    %v1535 = vunpack.c.h.b16 %v302
    %v1536 = vunpack.c.l.b16 %v303
    %v1537 = vunpack.c.h.b16 %v303
    %v1538 = vunpack.c.l.b16 %v304
    %v1539 = vunpack.c.h.b16 %v304
    %v1540 = vunpack.c.l.b16 %v305
    %v1541 = vunpack.c.h.b16 %v305
    %v1542 = vunpack.c.l.b16 %v306
    %v1543 = vunpack.c.h.b16 %v306
    %v1544 = vunpack.c.l.b16 %v307
    %v1545 = vunpack.c.h.b16 %v307
    %v1546 = vunpack.c.l.b16 %v308
    %v1547 = vunpack.c.h.b16 %v308
    %v1548 = vunpack.c.l.b16 %v309
    %v1549 = vunpack.c.h.b16 %v309
    %v1550 = vunpack.c.l.b16 %v310
    %v1551 = vunpack.c.h.b16 %v310
    %v1552 = vunpack.c.l.b16 %v311
    %v1553 = vunpack.c.h.b16 %v311
    %v1554 = vunpack.c.l.b16 %v312
    %v1555 = vunpack.c.h.b16 %v312
    %v1556 = vunpack.c.l.b16 %v313
    %v1557 = vunpack.c.h.b16 %v313
    %v1558 = vunpack.c.l.b16 %v314
    %v1559 = vunpack.c.h.b16 %v314
    %v1560 = vunpack.c.l.b16 %v315
    %v1561 = vunpack.c.h.b16 %v315
    %v1562 = vunpack.c.l.b16 %v316
    %v1563 = vunpack.c.h.b16 %v316
    %v1564 = vunpack.c.l.b16 %v317
    %v1565 = vunpack.c.h.b16 %v317
    %v1566 = vunpack.c.l.b16 %v318
    %v1567 = vunpack.c.h.b16 %v318
    %v1568 = vunpack.c.l.b16 %v319
    %v1569 = vunpack.c.h.b16 %v319
    %v1570 = vunpack.c.l.b16 %v320
    %v1571 = vunpack.c.h.b16 %v320
    %v1572 = vunpack.c.l.b16 %v321
    %v1573 = vunpack.c.h.b16 %v321
    %v1574 = vunpack.c.l.b16 %v322
    %v1575 = vunpack.c.h.b16 %v322
    %v1576 = vunpack.c.l.b16 %v323
    %v1577 = vunpack.c.h.b16 %v323
    %v1578 = vunpack.c.l.b16 %v324
    %v1579 = vunpack.c.h.b16 %v324
    %v1580 = vunpack.c.l.b16 %v325
    %v1581 = vunpack.c.h.b16 %v325
    %v1582 = vunpack.c.l.b16 %v326
    %v1583 = vunpack.c.h.b16 %v326
    %v1584 = vunpack.c.l.b16 %v327
    %v1585 = vunpack.c.h.b16 %v327
    %v1586 = vunpack.c.l.b16 %v328
    %v1587 = vunpack.c.h.b16 %v328
    %v1588 = vunpack.c.l.b16 %v329
    %v1589 = vunpack.c.h.b16 %v329
    %v1590 = vunpack.c.l.b16 %v330
    %v1591 = vunpack.c.h.b16 %v330
    %v1592 = vunpack.c.l.b16 %v331
    %v1593 = vunpack.c.h.b16 %v331
    %v1594 = vunpack.c.l.b16 %v332
    %v1595 = vunpack.c.h.b16 %v332
    %v1596 = vunpack.c.l.b16 %v333
    %v1597 = vunpack.c.h.b16 %v333
    %v1598 = vunpack.c.l.b16 %v334
    %v1599 = vunpack.c.h.b16 %v334
    %v1600 = vunpack.c.l.b16 %v335
    %v1601 = vunpack.c.h.b16 %v335
    %v1602 = vunpack.c.l.b16 %v336
    %v1603 = vunpack.c.h.b16 %v336
    %v1604 = vunpack.c.l.b16 %v337
    %v1605 = vunpack.c.h.b16 %v337
    %v1606 = vunpack.c.l.b16 %v338
    %v1607 = vunpack.c.h.b16 %v338
    %v1608 = vunpack.c.l.b16 %v339
    %v1609 = vunpack.c.h.b16 %v339
    %v1610 = vunpack.c.l.b16 %v340
    %v1611 = vunpack.c.h.b16 %v340
    %v1612 = vunpack.c.l.b16 %v341
    %v1613 = vunpack.c.h.b16 %v341
    %v1614 = vunpack.c.l.b16 %v342
    %v1615 = vunpack.c.h.b16 %v342
    %v1616 = vunpack.c.l.b16 %v343
    %v1617 = vunpack.c.h.b16 %v343
    %v1618 = vunpack.c.l.b16 %v344
    %v1619 = vunpack.c.h.b16 %v344
    %v1620 = vunpack.c.l.b16 %v345
    %v1621 = vunpack.c.h.b16 %v345
    %v1622 = vunpack.c.l.b16 %v346
    %v1623 = vunpack.c.h.b16 %v346
    %v1624 = vunpack.c.l.b16 %v347
    %v1625 = vunpack.c.h.b16 %v347
    %v1626 = vunpack.c.l.b16 %v348
    %v1627 = vunpack.c.h.b16 %v348
    %v1628 = vunpack.c.l.b16 %v349
    %v1629 = vunpack.c.h.b16 %v349
    %v1630 = vunpack.c.l.b16 %v350
    %v1631 = vunpack.c.h.b16 %v350
    %v1632 = vunpack.c.l.b16 %v351
    %v1633 = vunpack.c.h.b16 %v351
    %v1634 = vunpack.c.l.b16 %v352
    %v1635 = vunpack.c.h.b16 %v352
    %v1636 = vunpack.c.l.b16 %v353
    %v1637 = vunpack.c.h.b16 %v353
    %v1638 = vunpack.c.l.b16 %v354
    %v1639 = vunpack.c.h.b16 %v354
    %v1640 = vunpack.c.l.b16 %v355
    %v1641 = vunpack.c.h.b16 %v355
    %v1642 = vunpack.c.l.b16 %v356
    %v1643 = vunpack.c.h.b16 %v356
    %v1644 = vunpack.c.l.b16 %v357
    %v1645 = vunpack.c.h.b16 %v357
    %v1646 = vunpack.c.l.b16 %v358
    %v1647 = vunpack.c.h.b16 %v358
    %v1648 = vunpack.c.l.b16 %v359
    %v1649 = vunpack.c.h.b16 %v359
    %v1650 = vunpack.c.l.b16 %v360
    %v1651 = vunpack.c.h.b16 %v360
    %v1652 = vunpack.c.l.b16 %v361
    %v1653 = vunpack.c.h.b16 %v361
    %v1654 = vunpack.c.l.b16 %v362
    %v1655 = vunpack.c.h.b16 %v362
    %v1656 = vunpack.c.l.b16 %v363
    %v1657 = vunpack.c.h.b16 %v363
    %v1658 = vunpack.c.l.b16 %v364
    %v1659 = vunpack.c.h.b16 %v364
    %v1660 = vunpack.c.l.b16 %v365
    %v1661 = vunpack.c.h.b16 %v365
    %v1662 = vunpack.c.l.b16 %v366
    %v1663 = vunpack.c.h.b16 %v366
    %v1664 = vunpack.c.l.b16 %v367
    %v1665 = vunpack.c.h.b16 %v367
    %v1666 = vunpack.c.l.b16 %v368
    %v1667 = vunpack.c.h.b16 %v368
    %v1668 = vunpack.c.l.b16 %v369
    %v1669 = vunpack.c.h.b16 %v369
    %v1670 = vunpack.c.l.b16 %v370
    %v1671 = vunpack.c.h.b16 %v370
    %v1672 = vunpack.c.l.b16 %v371
    %v1673 = vunpack.c.h.b16 %v371
    %v1674 = vunpack.c.l.b16 %v372
    %v1675 = vunpack.c.h.b16 %v372
    %v1676 = vunpack.c.l.b16 %v373
    %v1677 = vunpack.c.h.b16 %v373
    %v1678 = vunpack.c.l.b16 %v374
    %v1679 = vunpack.c.h.b16 %v374
    %v1680 = vunpack.c.l.b16 %v375
    %v1681 = vunpack.c.h.b16 %v375
    %v1682 = vunpack.c.l.b16 %v376
    %v1683 = vunpack.c.h.b16 %v376
    %v1684 = vunpack.c.l.b16 %v377
    %v1685 = vunpack.c.h.b16 %v377
    %v1686 = vunpack.c.l.b16 %v378
    %v1687 = vunpack.c.h.b16 %v378
    %v1688 = vunpack.c.l.b16 %v379
    %v1689 = vunpack.c.h.b16 %v379
    %v1690 = vunpack.c.l.b16 %v380
    %v1691 = vunpack.c.h.b16 %v380
    %v1692 = vunpack.c.l.b16 %v381
    %v1693 = vunpack.c.h.b16 %v381
    %v1694 = vunpack.c.l.b16 %v382
    %v1695 = vunpack.c.h.b16 %v382
    %v1696 = vunpack.c.l.b16 %v383
    %v1697 = vunpack.c.h.b16 %v383
    %v1698 = vunpack.c.l.b16 %v384
    %v1699 = vunpack.c.h.b16 %v384
    %v1700 = vunpack.c.l.b16 %v385
    %v1701 = vunpack.c.h.b16 %v385
    %v1702 = vunpack.c.l.b16 %v386
    %v1703 = vunpack.c.h.b16 %v386
    %v1704 = vunpack.c.l.b16 %v387
    %v1705 = vunpack.c.h.b16 %v387
    %v1706 = vunpack.c.l.b16 %v388
    %v1707 = vunpack.c.h.b16 %v388
    %v1708 = vunpack.c.l.b16 %v389
    %v1709 = vunpack.c.h.b16 %v389
    %v1710 = vunpack.c.l.b16 %v390
    %v1711 = vunpack.c.h.b16 %v390
    %v1712 = vunpack.c.l.b16 %v391
    %v1713 = vunpack.c.h.b16 %v391
    %v1714 = vunpack.c.l.b16 %v392
    %v1715 = vunpack.c.h.b16 %v392
    %v1716 = vunpack.c.l.b16 %v393
    %v1717 = vunpack.c.h.b16 %v393
    %v1718 = vunpack.c.l.b16 %v394
    %v1719 = vunpack.c.h.b16 %v394
    %v1720 = vunpack.c.l.b16 %v395
    %v1721 = vunpack.c.h.b16 %v395
    %v1722 = vunpack.c.l.b16 %v396
    %v1723 = vunpack.c.h.b16 %v396
    %v1724 = vunpack.c.l.b16 %v397
    %v1725 = vunpack.c.h.b16 %v397
    %v1726 = vunpack.c.l.b16 %v398
    %v1727 = vunpack.c.h.b16 %v398
    %v1728 = vunpack.c.l.b16 %v399
    %v1729 = vunpack.c.h.b16 %v399
    %v1730 = vunpack.c.l.b16 %v400
    %v1731 = vunpack.c.h.b16 %v400
    %v1732 = vunpack.c.l.b16 %v401
    %v1733 = vunpack.c.h.b16 %v401
    %v1734 = vunpack.c.l.b16 %v402
    %v1735 = vunpack.c.h.b16 %v402
    %v1736 = vunpack.c.l.b16 %v403
    %v1737 = vunpack.c.h.b16 %v403
    %v1738 = vunpack.c.l.b16 %v404
    %v1739 = vunpack.c.h.b16 %v404
    %v1740 = vunpack.c.l.b16 %v405
    %v1741 = vunpack.c.h.b16 %v405
    %v1742 = vunpack.c.l.b16 %v406
    %v1743 = vunpack.c.h.b16 %v406
    %v1744 = vunpack.c.l.b16 %v407
    %v1745 = vunpack.c.h.b16 %v407
    %v1746 = vunpack.c.l.b16 %v408
    %v1747 = vunpack.c.h.b16 %v408
    %v1748 = vunpack.c.l.b16 %v409
    %v1749 = vunpack.c.h.b16 %v409
    %v1750 = vunpack.c.l.b16 %v410
    %v1751 = vunpack.c.h.b16 %v410
    %v1752 = vunpack.c.l.b16 %v411
    %v1753 = vunpack.c.h.b16 %v411
    %v1754 = vunpack.c.l.b16 %v412
    %v1755 = vunpack.c.h.b16 %v412
    %v1756 = vunpack.c.l.b16 %v413
    %v1757 = vunpack.c.h.b16 %v413
    %v1758 = vunpack.c.l.b16 %v414
    %v1759 = vunpack.c.h.b16 %v414
    %v1760 = vunpack.c.l.b16 %v415
    %v1761 = vunpack.c.h.b16 %v415
    %v1762 = vunpack.c.l.b16 %v416
    %v1763 = vunpack.c.h.b16 %v416
    %v1764 = vunpack.c.l.b16 %v417
    %v1765 = vunpack.c.h.b16 %v417
    %v1766 = vunpack.c.l.b16 %v418
    %v1767 = vunpack.c.h.b16 %v418
    %v1768 = vunpack.c.l.b16 %v419
    %v1769 = vunpack.c.h.b16 %v419
    %v1770 = vunpack.c.l.b16 %v420
    %v1771 = vunpack.c.h.b16 %v420
    %v1772 = vunpack.c.l.b16 %v421
    %v1773 = vunpack.c.h.b16 %v421
    %v1774 = vunpack.c.l.b16 %v422
    %v1775 = vunpack.c.h.b16 %v422
    %v1776 = vunpack.c.l.b16 %v423
    %v1777 = vunpack.c.h.b16 %v423
    %v1778 = vunpack.c.l.b16 %v424
    %v1779 = vunpack.c.h.b16 %v424
    %v1780 = vunpack.c.l.b16 %v425
    %v1781 = vunpack.c.h.b16 %v425
    %v1782 = vunpack.c.l.b16 %v426
    %v1783 = vunpack.c.h.b16 %v426
    %v1784 = vunpack.c.l.b16 %v427
    %v1785 = vunpack.c.h.b16 %v427
    %v1786 = vunpack.c.l.b16 %v428
    %v1787 = vunpack.c.h.b16 %v428
    %v1788 = vunpack.c.l.b16 %v429
    %v1789 = vunpack.c.h.b16 %v429
    %v1790 = vunpack.c.l.b16 %v430
    %v1791 = vunpack.c.h.b16 %v430
    %v1792 = vunpack.c.l.b16 %v431
    %v1793 = vunpack.c.h.b16 %v431
    %v1794 = vunpack.c.l.b16 %v432
    %v1795 = vunpack.c.h.b16 %v432
    %v1796 = vunpack.c.l.b16 %v433
    %v1797 = vunpack.c.h.b16 %v433
    %v1798 = vunpack.c.l.b16 %v434
    %v1799 = vunpack.c.h.b16 %v434
    %v1800 = vunpack.c.l.b16 %v435
    %v1801 = vunpack.c.h.b16 %v435
    %v1802 = vunpack.c.l.b16 %v436
    %v1803 = vunpack.c.h.b16 %v436
    %v1804 = vunpack.c.l.b16 %v437
    %v1805 = vunpack.c.h.b16 %v437
    %v1806 = vunpack.c.l.b16 %v438
    %v1807 = vunpack.c.h.b16 %v438
    %v1808 = vunpack.c.l.b16 %v439
    %v1809 = vunpack.c.h.b16 %v439
    %v1810 = vunpack.c.l.b16 %v440
    %v1811 = vunpack.c.h.b16 %v440
    %v1812 = vunpack.c.l.b16 %v441
    %v1813 = vunpack.c.h.b16 %v441
    %v1814 = vunpack.c.l.b16 %v442
    %v1815 = vunpack.c.h.b16 %v442
    %v1816 = vunpack.c.l.b16 %v443
    %v1817 = vunpack.c.h.b16 %v443
    %v1818 = vunpack.c.l.b16 %v444
    %v1819 = vunpack.c.h.b16 %v444
    %v1820 = vunpack.c.l.b16 %v445
    %v1821 = vunpack.c.h.b16 %v445
    %v1822 = vunpack.c.l.b16 %v446
    %v1823 = vunpack.c.h.b16 %v446
    %v1824 = vunpack.c.l.b16 %v447
    %v1825 = vunpack.c.h.b16 %v447
    %v1826 = vunpack.c.l.b16 %v448
    %v1827 = vunpack.c.h.b16 %v448
    %v1828 = vunpack.c.l.b16 %v449
    %v1829 = vunpack.c.h.b16 %v449
    %v1830 = vunpack.c.l.b16 %v450
    %v1831 = vunpack.c.h.b16 %v450
    %v1832 = vunpack.c.l.b16 %v451
    %v1833 = vunpack.c.h.b16 %v451
    %v1834 = vunpack.c.l.b16 %v452
    %v1835 = vunpack.c.h.b16 %v452
    %v1836 = vunpack.c.l.b16 %v453
    %v1837 = vunpack.c.h.b16 %v453
    %v1838 = vunpack.c.l.b16 %v454
    %v1839 = vunpack.c.h.b16 %v454
    %v1840 = vunpack.c.l.b16 %v455
    %v1841 = vunpack.c.h.b16 %v455
    %v1842 = vunpack.c.l.b16 %v456
    %v1843 = vunpack.c.h.b16 %v456
    %v1844 = vunpack.c.l.b16 %v457
    %v1845 = vunpack.c.h.b16 %v457
    %v1846 = vunpack.c.l.b16 %v458
    %v1847 = vunpack.c.h.b16 %v458
    %v1848 = vunpack.c.l.b16 %v459
    %v1849 = vunpack.c.h.b16 %v459
    %v1850 = vunpack.c.l.b16 %v460
    %v1851 = vunpack.c.h.b16 %v460
    %v1852 = vunpack.c.l.b16 %v461
    %v1853 = vunpack.c.h.b16 %v461
    %v1854 = vunpack.c.l.b16 %v462
    %v1855 = vunpack.c.h.b16 %v462
    %v1856 = vunpack.c.l.b16 %v463
    %v1857 = vunpack.c.h.b16 %v463
    %v1858 = vunpack.c.l.b16 %v464
    %v1859 = vunpack.c.h.b16 %v464
    %v1860 = vunpack.c.l.b16 %v465
    %v1861 = vunpack.c.h.b16 %v465
    %v1862 = vunpack.c.l.b16 %v466
    %v1863 = vunpack.c.h.b16 %v466
    %v1864 = vunpack.c.l.b16 %v467
    %v1865 = vunpack.c.h.b16 %v467
    %v1866 = vunpack.c.l.b16 %v468
    %v1867 = vunpack.c.h.b16 %v468
    %v1868 = vunpack.c.l.b16 %v469
    %v1869 = vunpack.c.h.b16 %v469
    %v1870 = vunpack.c.l.b16 %v470
    %v1871 = vunpack.c.h.b16 %v470
    %v1872 = vunpack.c.l.b16 %v471
    %v1873 = vunpack.c.h.b16 %v471
    %v1874 = vunpack.c.l.b16 %v472
    %v1875 = vunpack.c.h.b16 %v472
    %v1876 = vunpack.c.l.b16 %v473
    %v1877 = vunpack.c.h.b16 %v473
    %v1878 = vunpack.c.l.b16 %v474
    %v1879 = vunpack.c.h.b16 %v474
    %v1880 = vunpack.c.l.b16 %v475
    %v1881 = vunpack.c.h.b16 %v475
    %v1882 = vunpack.c.l.b16 %v476
    %v1883 = vunpack.c.h.b16 %v476
    %v1884 = vunpack.c.l.b16 %v477
    %v1885 = vunpack.c.h.b16 %v477
    %v1886 = vunpack.c.l.b16 %v478
    %v1887 = vunpack.c.h.b16 %v478
    %v1888 = vunpack.c.l.b16 %v479
    %v1889 = vunpack.c.h.b16 %v479
    %v1890 = vunpack.c.l.b16 %v480
    %v1891 = vunpack.c.h.b16 %v480
    %v1892 = vunpack.c.l.b16 %v481
    %v1893 = vunpack.c.h.b16 %v481
    %v1894 = vunpack.c.l.b16 %v482
    %v1895 = vunpack.c.h.b16 %v482
    %v1896 = vunpack.c.l.b16 %v483
    %v1897 = vunpack.c.h.b16 %v483
    %v1898 = vunpack.c.l.b16 %v484
    %v1899 = vunpack.c.h.b16 %v484
    %v1900 = vunpack.c.l.b16 %v485
    %v1901 = vunpack.c.h.b16 %v485
    %v1902 = vunpack.c.l.b16 %v486
    %v1903 = vunpack.c.h.b16 %v486
    %v1904 = vunpack.c.l.b16 %v487
    %v1905 = vunpack.c.h.b16 %v487
    %v1906 = vunpack.c.l.b16 %v488
    %v1907 = vunpack.c.h.b16 %v488
    %v1908 = vunpack.c.l.b16 %v489
    %v1909 = vunpack.c.h.b16 %v489
    %v1910 = vunpack.c.l.b16 %v490
    %v1911 = vunpack.c.h.b16 %v490
    %v1912 = vunpack.c.l.b16 %v491
    %v1913 = vunpack.c.h.b16 %v491
    %v1914 = vunpack.c.l.b16 %v492
    %v1915 = vunpack.c.h.b16 %v492
    %v1916 = vunpack.c.l.b16 %v493
    %v1917 = vunpack.c.h.b16 %v493
    %v1918 = vunpack.c.l.b16 %v494
    %v1919 = vunpack.c.h.b16 %v494
    %v1920 = vunpack.c.l.b16 %v495
    %v1921 = vunpack.c.h.b16 %v495
    %v1922 = vunpack.c.l.b16 %v496
    %v1923 = vunpack.c.h.b16 %v496
    %v1924 = vunpack.c.l.b16 %v497
    %v1925 = vunpack.c.h.b16 %v497
    %v1926 = vunpack.c.l.b16 %v498
    %v1927 = vunpack.c.h.b16 %v498
    %v1928 = vunpack.c.l.b16 %v499
    %v1929 = vunpack.c.h.b16 %v499
    %v1930 = vunpack.c.l.b16 %v500
    %v1931 = vunpack.c.h.b16 %v500
    %v1932 = vunpack.c.l.b16 %v501
    %v1933 = vunpack.c.h.b16 %v501
    %v1934 = vunpack.c.l.b16 %v502
    %v1935 = vunpack.c.h.b16 %v502
    %v1936 = vunpack.c.l.b16 %v503
    %v1937 = vunpack.c.h.b16 %v503
    %v1938 = vunpack.c.l.b16 %v504
    %v1939 = vunpack.c.h.b16 %v504
    %v1940 = vunpack.c.l.b16 %v505
    %v1941 = vunpack.c.h.b16 %v505
    %v1942 = vunpack.c.l.b16 %v506
    %v1943 = vunpack.c.h.b16 %v506
    %v1944 = vunpack.c.l.b16 %v507
    %v1945 = vunpack.c.h.b16 %v507
    %v1946 = vunpack.c.l.b16 %v508
    %v1947 = vunpack.c.h.b16 %v508
    %v1948 = vunpack.c.l.b16 %v509
    %v1949 = vunpack.c.h.b16 %v509
    %v1950 = vunpack.c.l.b16 %v510
    %v1951 = vunpack.c.h.b16 %v510
    %v1952 = vunpack.c.l.b16 %v511
    %v1953 = vunpack.c.h.b16 %v511
    %v1954 = vunpack.c.l.b16 %v512
    %v1955 = vunpack.c.h.b16 %v512
    %v1956 = vunpack.c.l.b16 %v513
    %v1957 = vunpack.c.h.b16 %v513
    %v1958 = vunpack.c.l.b16 %v514
    %v1959 = vunpack.c.h.b16 %v514
    %v1960 = vunpack.c.l.b16 %v515
    %v1961 = vunpack.c.h.b16 %v515
    %v1962 = vunpack.c.l.b16 %v516
    %v1963 = vunpack.c.h.b16 %v516
    %v1964 = vunpack.c.l.b16 %v517
    %v1965 = vunpack.c.h.b16 %v517
    %v1966 = vunpack.c.l.b16 %v518
    %v1967 = vunpack.c.h.b16 %v518
    %v1968 = vunpack.c.l.b16 %v519
    %v1969 = vunpack.c.h.b16 %v519
    %v1970 = vunpack.c.l.b16 %v520
    %v1971 = vunpack.c.h.b16 %v520
    %v1972 = vunpack.c.l.b16 %v521
    %v1973 = vunpack.c.h.b16 %v521
    %v1974 = vunpack.c.l.b16 %v522
    %v1975 = vunpack.c.h.b16 %v522
    %v1976 = vunpack.c.l.b16 %v523
    %v1977 = vunpack.c.h.b16 %v523
    %v1978 = vunpack.c.l.b16 %v524
    %v1979 = vunpack.c.h.b16 %v524
    %v1980 = vunpack.c.l.b16 %v525
    %v1981 = vunpack.c.h.b16 %v525
    %v1982 = vunpack.c.l.b16 %v526
    %v1983 = vunpack.c.h.b16 %v526
    %v1984 = vunpack.c.l.b16 %v527
    %v1985 = vunpack.c.h.b16 %v527
    %v1986 = vunpack.c.l.b16 %v528
    %v1987 = vunpack.c.h.b16 %v528
    %v1988 = vunpack.c.l.b16 %v529
    %v1989 = vunpack.c.h.b16 %v529
    %v1990 = vunpack.c.l.b16 %v530
    %v1991 = vunpack.c.h.b16 %v530
    %v1992 = vunpack.c.l.b16 %v531
    %v1993 = vunpack.c.h.b16 %v531
    %v1994 = vunpack.c.l.b16 %v532
    %v1995 = vunpack.c.h.b16 %v532
    %v1996 = vunpack.c.l.b16 %v533
    %v1997 = vunpack.c.h.b16 %v533
    %v1998 = vunpack.c.l.b16 %v534
    %v1999 = vunpack.c.h.b16 %v534
    %v2000 = vunpack.c.l.b16 %v535
    %v2001 = vunpack.c.h.b16 %v535
    %v2002 = vunpack.c.l.b16 %v536
    %v2003 = vunpack.c.h.b16 %v536
    %v2004 = vunpack.c.l.b16 %v537
    %v2005 = vunpack.c.h.b16 %v537
    %v2006 = vunpack.c.l.b16 %v538
    %v2007 = vunpack.c.h.b16 %v538
    %v2008 = vunpack.c.l.b16 %v539
    %v2009 = vunpack.c.h.b16 %v539
    %v2010 = vunpack.c.l.b16 %v540
    %v2011 = vunpack.c.h.b16 %v540
    %v2012 = vunpack.c.l.b16 %v541
    %v2013 = vunpack.c.h.b16 %v541
    %v2014 = vunpack.c.l.b16 %v542
    %v2015 = vunpack.c.h.b16 %v542
    %v2016 = vunpack.c.l.b16 %v543
    %v2017 = vunpack.c.h.b16 %v543
    %v2018 = vunpack.c.l.b16 %v544
    %v2019 = vunpack.c.h.b16 %v544
    %v2020 = vunpack.c.l.b16 %v545
    %v2021 = vunpack.c.h.b16 %v545
    %v2022 = vunpack.c.l.b16 %v546
    %v2023 = vunpack.c.h.b16 %v546
    %v2024 = vunpack.c.l.b16 %v547
    %v2025 = vunpack.c.h.b16 %v547
    %v2026 = vunpack.c.l.b16 %v548
    %v2027 = vunpack.c.h.b16 %v548
    %v2028 = vunpack.c.l.b16 %v549
    %v2029 = vunpack.c.h.b16 %v549
    %v2030 = vunpack.c.l.b16 %v550
    %v2031 = vunpack.c.h.b16 %v550
    %v2032 = vunpack.c.l.b16 %v551
    %v2033 = vunpack.c.h.b16 %v551
    %v2034 = vunpack.c.l.b16 %v552
    %v2035 = vunpack.c.h.b16 %v552
    %v2036 = vunpack.c.l.b16 %v553
    %v2037 = vunpack.c.h.b16 %v553
    %v2038 = vunpack.c.l.b16 %v554
    %v2039 = vunpack.c.h.b16 %v554
    %v2040 = vunpack.c.l.b16 %v555
    %v2041 = vunpack.c.h.b16 %v555
    %v2042 = vunpack.c.l.b16 %v556
    %v2043 = vunpack.c.h.b16 %v556
    %v2044 = vunpack.c.l.b16 %v557
    %v2045 = vunpack.c.h.b16 %v557
    %v2046 = vunpack.c.l.b16 %v558
    %v2047 = vunpack.c.h.b16 %v558
    %v2048 = vunpack.c.l.b16 %v559
    %v2049 = vunpack.c.h.b16 %v559
    %v2050 = vunpack.c.l.b16 %v560
    %v2051 = vunpack.c.h.b16 %v560
    %v2052 = vunpack.c.l.b16 %v561
    %v2053 = vunpack.c.h.b16 %v561
    %v2054 = vunpack.c.l.b16 %v562
    %v2055 = vunpack.c.h.b16 %v562
    %v2056 = vunpack.c.l.b16 %v563
    %v2057 = vunpack.c.h.b16 %v563
    %v2058 = vunpack.c.l.b16 %v564
    %v2059 = vunpack.c.h.b16 %v564
    %v2060 = vunpack.c.l.b16 %v565
    %v2061 = vunpack.c.h.b16 %v565
    %v2062 = vunpack.c.l.b16 %v566
    %v2063 = vunpack.c.h.b16 %v566
    %v2064 = vunpack.c.l.b16 %v567
    %v2065 = vunpack.c.h.b16 %v567
    %v2066 = vunpack.c.l.b16 %v568
    %v2067 = vunpack.c.h.b16 %v568
    %v2068 = vunpack.c.l.b16 %v569
    %v2069 = vunpack.c.h.b16 %v569
    %v2070 = vunpack.c.l.b16 %v570
    %v2071 = vunpack.c.h.b16 %v570
    %v2072 = vunpack.c.l.b16 %v571
    %v2073 = vunpack.c.h.b16 %v571
    %v2074 = vunpack.c.l.b16 %v572
    %v2075 = vunpack.c.h.b16 %v572
    %v2076 = vunpack.c.l.b16 %v573
    %v2077 = vunpack.c.h.b16 %v573
    %v2078 = vunpack.c.l.b16 %v574
    %v2079 = vunpack.c.h.b16 %v574
    %v2080 = vunpack.c.l.b16 %v575
    %v2081 = vunpack.c.h.b16 %v575
    %v2082 = vunpack.c.l.b16 %v576
    %v2083 = vunpack.c.h.b16 %v576
    %v2084 = vunpack.c.l.b16 %v577
    %v2085 = vunpack.c.h.b16 %v577
    %v2086 = vunpack.c.l.b16 %v578
    %v2087 = vunpack.c.h.b16 %v578
    %v2088 = vunpack.c.l.b16 %v579
    %v2089 = vunpack.c.h.b16 %v579
    %v2090 = vunpack.c.l.b16 %v580
    %v2091 = vunpack.c.h.b16 %v580
    %v2092 = vunpack.c.l.b16 %v581
    %v2093 = vunpack.c.h.b16 %v581
    %v2094 = vunpack.c.l.b16 %v582
    %v2095 = vunpack.c.h.b16 %v582
    %v2096 = vunpack.c.l.b16 %v583
    %v2097 = vunpack.c.h.b16 %v583
    %v2098 = vunpack.c.l.b16 %v584
    %v2099 = vunpack.c.h.b16 %v584
    %v2100 = vunpack.c.l.b16 %v585
    %v2101 = vunpack.c.h.b16 %v585
    %v2102 = vunpack.c.l.b16 %v586
    %v2103 = vunpack.c.h.b16 %v586
    %v2104 = vunpack.c.l.b16 %v587
    %v2105 = vunpack.c.h.b16 %v587
    %v2106 = vunpack.c.l.b16 %v588
    %v2107 = vunpack.c.h.b16 %v588
    %v2108 = vunpack.c.l.b16 %v589
    %v2109 = vunpack.c.h.b16 %v589
    %v2110 = vunpack.c.l.b16 %v590
    %v2111 = vunpack.c.h.b16 %v590
    %v2112 = vunpack.c.l.b16 %v591
    %v2113 = vunpack.c.h.b16 %v591
    %v2114 = vunpack.c.l.b16 %v592
    %v2115 = vunpack.c.h.b16 %v592
    %v2116 = vunpack.c.l.b16 %v593
    %v2117 = vunpack.c.h.b16 %v593
    %v2118 = vunpack.c.l.b16 %v594
    %v2119 = vunpack.c.h.b16 %v594
    %v2120 = vunpack.c.l.b16 %v595
    %v2121 = vunpack.c.h.b16 %v595
    %v2122 = vunpack.c.l.b16 %v596
    %v2123 = vunpack.c.h.b16 %v596
    %v2124 = vunpack.c.l.b16 %v597
    %v2125 = vunpack.c.h.b16 %v597
    %v2126 = vunpack.c.l.b16 %v598
    %v2127 = vunpack.c.h.b16 %v598
    %v2128 = vunpack.c.l.b16 %v599
    %v2129 = vunpack.c.h.b16 %v599
    %v2130 = vunpack.c.l.b16 %v600
    %v2131 = vunpack.c.h.b16 %v600
    %v2132 = vunpack.c.l.b16 %v601
    %v2133 = vunpack.c.h.b16 %v601
    %v2134 = vunpack.c.l.b16 %v602
    %v2135 = vunpack.c.h.b16 %v602
    %v2136 = vunpack.c.l.b16 %v603
    %v2137 = vunpack.c.h.b16 %v603
    %v2138 = vunpack.c.l.b16 %v604
    %v2139 = vunpack.c.h.b16 %v604
    %v2140 = vunpack.c.l.b16 %v605
    %v2141 = vunpack.c.h.b16 %v605
    %v2142 = vunpack.c.l.b16 %v606
    %v2143 = vunpack.c.h.b16 %v606
    %v2144 = vunpack.c.l.b16 %v607
    %v2145 = vunpack.c.h.b16 %v607
    %v2146 = vunpack.c.l.b16 %v608
    %v2147 = vunpack.c.h.b16 %v608
    %v2148 = vunpack.c.l.b16 %v609
    %v2149 = vunpack.c.h.b16 %v609
    %v2150 = vunpack.c.l.b16 %v610
    %v2151 = vunpack.c.h.b16 %v610
    %v2152 = vunpack.c.l.b16 %v611
    %v2153 = vunpack.c.h.b16 %v611
    %v2154 = vunpack.c.l.b16 %v612
    %v2155 = vunpack.c.h.b16 %v612
    %v2156 = vunpack.c.l.b16 %v613
    %v2157 = vunpack.c.h.b16 %v613
    %v2158 = vunpack.c.l.b16 %v614
    %v2159 = vunpack.c.h.b16 %v614
    %v2160 = vunpack.c.l.b16 %v615
    %v2161 = vunpack.c.h.b16 %v615
    %v2162 = vunpack.c.l.b16 %v616
    %v2163 = vunpack.c.h.b16 %v616
    %v2164 = vunpack.c.l.b16 %v617
    %v2165 = vunpack.c.h.b16 %v617
    %v2166 = vunpack.c.l.b16 %v618
    %v2167 = vunpack.c.h.b16 %v618
    %v2168 = vunpack.c.l.b16 %v619
    %v2169 = vunpack.c.h.b16 %v619
    %v2170 = vunpack.c.l.b16 %v620
    %v2171 = vunpack.c.h.b16 %v620
    %v2172 = vunpack.c.l.b16 %v621
    %v2173 = vunpack.c.h.b16 %v621
    %v2174 = vunpack.c.l.b16 %v622
    %v2175 = vunpack.c.h.b16 %v622
    %v2176 = vunpack.c.l.b16 %v623
    %v2177 = vunpack.c.h.b16 %v623
    %v2178 = vpack.c.b16 %v1162, %v1154
    %v2179 = vpack.c.b16 %v1163, %v1155
    %v2180 = vpack.c.b16 %v1164, %v1156
    %v2181 = vpack.c.b16 %v1165, %v1157
    %v2182 = vpack.c.b16 %v1166, %v1158
    %v2183 = vpack.c.b16 %v1167, %v1159
    %v2184 = vpack.c.b16 %v1168, %v1160
    %v2185 = vpack.c.b16 %v1169, %v1161
    %v2186 = vpack.c.b16 %v1178, %v1170
    %v2187 = vpack.c.b16 %v1179, %v1171
    %v2188 = vpack.c.b16 %v1180, %v1172
    %v2189 = vpack.c.b16 %v1181, %v1173
    %v2190 = vpack.c.b16 %v1182, %v1174
    %v2191 = vpack.c.b16 %v1183, %v1175
    %v2192 = vpack.c.b16 %v1184, %v1176
    %v2193 = vpack.c.b16 %v1185, %v1177
    %v2194 = vpack.c.b16 %v1194, %v1186
    %v2195 = vpack.c.b16 %v1195, %v1187
    %v2196 = vpack.c.b16 %v1196, %v1188
    %v2197 = vpack.c.b16 %v1197, %v1189
    %v2198 = vpack.c.b16 %v1198, %v1190
    %v2199 = vpack.c.b16 %v1199, %v1191
    %v2200 = vpack.c.b16 %v1200, %v1192
    %v2201 = vpack.c.b16 %v1201, %v1193
    %v2202 = vpack.c.b16 %v1210, %v1202
    %v2203 = vpack.c.b16 %v1211, %v1203
    %v2204 = vpack.c.b16 %v1212, %v1204
    %v2205 = vpack.c.b16 %v1213, %v1205
    %v2206 = vpack.c.b16 %v1214, %v1206
    %v2207 = vpack.c.b16 %v1215, %v1207
    %v2208 = vpack.c.b16 %v1216, %v1208
    %v2209 = vpack.c.b16 %v1217, %v1209
    %v2210 = vpack.c.b16 %v1226, %v1218
    %v2211 = vpack.c.b16 %v1227, %v1219
    %v2212 = vpack.c.b16 %v1228, %v1220
    %v2213 = vpack.c.b16 %v1229, %v1221
    %v2214 = vpack.c.b16 %v1230, %v1222
    %v2215 = vpack.c.b16 %v1231, %v1223
    %v2216 = vpack.c.b16 %v1232, %v1224
    %v2217 = vpack.c.b16 %v1233, %v1225
    %v2218 = vpack.c.b16 %v1242, %v1234
    %v2219 = vpack.c.b16 %v1243, %v1235
    %v2220 = vpack.c.b16 %v1244, %v1236
    %v2221 = vpack.c.b16 %v1245, %v1237
    %v2222 = vpack.c.b16 %v1246, %v1238
    %v2223 = vpack.c.b16 %v1247, %v1239
    %v2224 = vpack.c.b16 %v1248, %v1240
    %v2225 = vpack.c.b16 %v1249, %v1241
    %v2226 = vpack.c.b16 %v1258, %v1250
    %v2227 = vpack.c.b16 %v1259, %v1251
    %v2228 = vpack.c.b16 %v1260, %v1252
    %v2229 = vpack.c.b16 %v1261, %v1253
    %v2230 = vpack.c.b16 %v1262, %v1254
    %v2231 = vpack.c.b16 %v1263, %v1255
    %v2232 = vpack.c.b16 %v1264, %v1256
    %v2233 = vpack.c.b16 %v1265, %v1257
    %v2234 = vpack.c.b16 %v1274, %v1266
    %v2235 = vpack.c.b16 %v1275, %v1267
    %v2236 = vpack.c.b16 %v1276, %v1268
    %v2237 = vpack.c.b16 %v1277, %v1269
    %v2238 = vpack.c.b16 %v1278, %v1270
    %v2239 = vpack.c.b16 %v1279, %v1271
    %v2240 = vpack.c.b16 %v1280, %v1272
    %v2241 = vpack.c.b16 %v1281, %v1273
    %v2242 = vpack.c.b16 %v1290, %v1282
    %v2243 = vpack.c.b16 %v1291, %v1283
    %v2244 = vpack.c.b16 %v1292, %v1284
    %v2245 = vpack.c.b16 %v1293, %v1285
    %v2246 = vpack.c.b16 %v1294, %v1286
    %v2247 = vpack.c.b16 %v1295, %v1287
    %v2248 = vpack.c.b16 %v1296, %v1288
    %v2249 = vpack.c.b16 %v1297, %v1289
    %v2250 = vpack.c.b16 %v1306, %v1298
    %v2251 = vpack.c.b16 %v1307, %v1299
    %v2252 = vpack.c.b16 %v1308, %v1300
    %v2253 = vpack.c.b16 %v1309, %v1301
    %v2254 = vpack.c.b16 %v1310, %v1302
    %v2255 = vpack.c.b16 %v1311, %v1303
    %v2256 = vpack.c.b16 %v1312, %v1304
    %v2257 = vpack.c.b16 %v1313, %v1305
    %v2258 = vpack.c.b16 %v1322, %v1314
    %v2259 = vpack.c.b16 %v1323, %v1315
    %v2260 = vpack.c.b16 %v1324, %v1316
    %v2261 = vpack.c.b16 %v1325, %v1317
    %v2262 = vpack.c.b16 %v1326, %v1318
    %v2263 = vpack.c.b16 %v1327, %v1319
    %v2264 = vpack.c.b16 %v1328, %v1320
    %v2265 = vpack.c.b16 %v1329, %v1321
    %v2266 = vpack.c.b16 %v1338, %v1330
    %v2267 = vpack.c.b16 %v1339, %v1331
    %v2268 = vpack.c.b16 %v1340, %v1332
    %v2269 = vpack.c.b16 %v1341, %v1333
    %v2270 = vpack.c.b16 %v1342, %v1334
    %v2271 = vpack.c.b16 %v1343, %v1335
    %v2272 = vpack.c.b16 %v1344, %v1336
    %v2273 = vpack.c.b16 %v1345, %v1337
    %v2274 = vpack.c.b16 %v1354, %v1346
    %v2275 = vpack.c.b16 %v1355, %v1347
    %v2276 = vpack.c.b16 %v1356, %v1348
    %v2277 = vpack.c.b16 %v1357, %v1349
    %v2278 = vpack.c.b16 %v1358, %v1350
    %v2279 = vpack.c.b16 %v1359, %v1351
    %v2280 = vpack.c.b16 %v1360, %v1352
    %v2281 = vpack.c.b16 %v1361, %v1353
    %v2282 = vpack.c.b16 %v1370, %v1362
    %v2283 = vpack.c.b16 %v1371, %v1363
    %v2284 = vpack.c.b16 %v1372, %v1364
    %v2285 = vpack.c.b16 %v1373, %v1365
    %v2286 = vpack.c.b16 %v1374, %v1366
    %v2287 = vpack.c.b16 %v1375, %v1367
    %v2288 = vpack.c.b16 %v1376, %v1368
    %v2289 = vpack.c.b16 %v1377, %v1369
    %v2290 = vpack.c.b16 %v1386, %v1378
    %v2291 = vpack.c.b16 %v1387, %v1379
    %v2292 = vpack.c.b16 %v1388, %v1380
    %v2293 = vpack.c.b16 %v1389, %v1381
    %v2294 = vpack.c.b16 %v1390, %v1382
    %v2295 = vpack.c.b16 %v1391, %v1383
    %v2296 = vpack.c.b16 %v1392, %v1384
    %v2297 = vpack.c.b16 %v1393, %v1385
    %v2298 = vpack.c.b16 %v1402, %v1394
    %v2299 = vpack.c.b16 %v1403, %v1395
    %v2300 = vpack.c.b16 %v1404, %v1396
    %v2301 = vpack.c.b16 %v1405, %v1397
    %v2302 = vpack.c.b16 %v1406, %v1398
    %v2303 = vpack.c.b16 %v1407, %v1399
    %v2304 = vpack.c.b16 %v1408, %v1400
    %v2305 = vpack.c.b16 %v1409, %v1401
    %v2306 = vpack.c.b16 %v1418, %v1410
    %v2307 = vpack.c.b16 %v1419, %v1411
    %v2308 = vpack.c.b16 %v1420, %v1412
    %v2309 = vpack.c.b16 %v1421, %v1413
    %v2310 = vpack.c.b16 %v1422, %v1414
    %v2311 = vpack.c.b16 %v1423, %v1415
    %v2312 = vpack.c.b16 %v1424, %v1416
    %v2313 = vpack.c.b16 %v1425, %v1417
    %v2314 = vpack.c.b16 %v1434, %v1426
    %v2315 = vpack.c.b16 %v1435, %v1427
    %v2316 = vpack.c.b16 %v1436, %v1428
    %v2317 = vpack.c.b16 %v1437, %v1429
    %v2318 = vpack.c.b16 %v1438, %v1430
    %v2319 = vpack.c.b16 %v1439, %v1431
    %v2320 = vpack.c.b16 %v1440, %v1432
    %v2321 = vpack.c.b16 %v1441, %v1433
    %v2322 = vpack.c.b16 %v1450, %v1442
    %v2323 = vpack.c.b16 %v1451, %v1443
    %v2324 = vpack.c.b16 %v1452, %v1444
    %v2325 = vpack.c.b16 %v1453, %v1445
    %v2326 = vpack.c.b16 %v1454, %v1446
    %v2327 = vpack.c.b16 %v1455, %v1447
    %v2328 = vpack.c.b16 %v1456, %v1448
    %v2329 = vpack.c.b16 %v1457, %v1449
    %v2330 = vpack.c.b16 %v1466, %v1458
    %v2331 = vpack.c.b16 %v1467, %v1459
    %v2332 = vpack.c.b16 %v1468, %v1460
    %v2333 = vpack.c.b16 %v1469, %v1461
    %v2334 = vpack.c.b16 %v1470, %v1462
    %v2335 = vpack.c.b16 %v1471, %v1463
    %v2336 = vpack.c.b16 %v1472, %v1464
    %v2337 = vpack.c.b16 %v1473, %v1465
    %v2338 = vpack.c.b16 %v1482, %v1474
    %v2339 = vpack.c.b16 %v1483, %v1475
    %v2340 = vpack.c.b16 %v1484, %v1476
    %v2341 = vpack.c.b16 %v1485, %v1477
    %v2342 = vpack.c.b16 %v1486, %v1478
    %v2343 = vpack.c.b16 %v1487, %v1479
    %v2344 = vpack.c.b16 %v1488, %v1480
    %v2345 = vpack.c.b16 %v1489, %v1481
    %v2346 = vpack.c.b16 %v1498, %v1490
    %v2347 = vpack.c.b16 %v1499, %v1491
    %v2348 = vpack.c.b16 %v1500, %v1492
    %v2349 = vpack.c.b16 %v1501, %v1493
    %v2350 = vpack.c.b16 %v1502, %v1494
    %v2351 = vpack.c.b16 %v1503, %v1495
    %v2352 = vpack.c.b16 %v1504, %v1496
    %v2353 = vpack.c.b16 %v1505, %v1497
    %v2354 = vpack.c.b16 %v1514, %v1506
    %v2355 = vpack.c.b16 %v1515, %v1507
    %v2356 = vpack.c.b16 %v1516, %v1508
    %v2357 = vpack.c.b16 %v1517, %v1509
    %v2358 = vpack.c.b16 %v1518, %v1510
    %v2359 = vpack.c.b16 %v1519, %v1511
    %v2360 = vpack.c.b16 %v1520, %v1512
    %v2361 = vpack.c.b16 %v1521, %v1513
    %v2362 = vpack.c.b16 %v1530, %v1522
    %v2363 = vpack.c.b16 %v1531, %v1523
    %v2364 = vpack.c.b16 %v1532, %v1524
    %v2365 = vpack.c.b16 %v1533, %v1525
    %v2366 = vpack.c.b16 %v1534, %v1526
    %v2367 = vpack.c.b16 %v1535, %v1527
    %v2368 = vpack.c.b16 %v1536, %v1528
    %v2369 = vpack.c.b16 %v1537, %v1529
    %v2370 = vpack.c.b16 %v1546, %v1538
    %v2371 = vpack.c.b16 %v1547, %v1539
    %v2372 = vpack.c.b16 %v1548, %v1540
    %v2373 = vpack.c.b16 %v1549, %v1541
    %v2374 = vpack.c.b16 %v1550, %v1542
    %v2375 = vpack.c.b16 %v1551, %v1543
    %v2376 = vpack.c.b16 %v1552, %v1544
    %v2377 = vpack.c.b16 %v1553, %v1545
    %v2378 = vpack.c.b16 %v1562, %v1554
    %v2379 = vpack.c.b16 %v1563, %v1555
    %v2380 = vpack.c.b16 %v1564, %v1556
    %v2381 = vpack.c.b16 %v1565, %v1557
    %v2382 = vpack.c.b16 %v1566, %v1558
    %v2383 = vpack.c.b16 %v1567, %v1559
    %v2384 = vpack.c.b16 %v1568, %v1560
    %v2385 = vpack.c.b16 %v1569, %v1561
    %v2386 = vpack.c.b16 %v1578, %v1570
    %v2387 = vpack.c.b16 %v1579, %v1571
    %v2388 = vpack.c.b16 %v1580, %v1572
    %v2389 = vpack.c.b16 %v1581, %v1573
    %v2390 = vpack.c.b16 %v1582, %v1574
    %v2391 = vpack.c.b16 %v1583, %v1575
    %v2392 = vpack.c.b16 %v1584, %v1576
    %v2393 = vpack.c.b16 %v1585, %v1577
    %v2394 = vpack.c.b16 %v1594, %v1586
    %v2395 = vpack.c.b16 %v1595, %v1587
    %v2396 = vpack.c.b16 %v1596, %v1588
    %v2397 = vpack.c.b16 %v1597, %v1589
    %v2398 = vpack.c.b16 %v1598, %v1590
    %v2399 = vpack.c.b16 %v1599, %v1591
    %v2400 = vpack.c.b16 %v1600, %v1592
    %v2401 = vpack.c.b16 %v1601, %v1593
    %v2402 = vpack.c.b16 %v1610, %v1602
    %v2403 = vpack.c.b16 %v1611, %v1603
    %v2404 = vpack.c.b16 %v1612, %v1604
    %v2405 = vpack.c.b16 %v1613, %v1605
    %v2406 = vpack.c.b16 %v1614, %v1606
    %v2407 = vpack.c.b16 %v1615, %v1607
    %v2408 = vpack.c.b16 %v1616, %v1608
    %v2409 = vpack.c.b16 %v1617, %v1609
    %v2410 = vpack.c.b16 %v1626, %v1618
    %v2411 = vpack.c.b16 %v1627, %v1619
    %v2412 = vpack.c.b16 %v1628, %v1620
    %v2413 = vpack.c.b16 %v1629, %v1621
    %v2414 = vpack.c.b16 %v1630, %v1622
    %v2415 = vpack.c.b16 %v1631, %v1623
    %v2416 = vpack.c.b16 %v1632, %v1624
    %v2417 = vpack.c.b16 %v1633, %v1625
    %v2418 = vpack.c.b16 %v1642, %v1634
    %v2419 = vpack.c.b16 %v1643, %v1635
    %v2420 = vpack.c.b16 %v1644, %v1636
    %v2421 = vpack.c.b16 %v1645, %v1637
    %v2422 = vpack.c.b16 %v1646, %v1638
    %v2423 = vpack.c.b16 %v1647, %v1639
    %v2424 = vpack.c.b16 %v1648, %v1640
    %v2425 = vpack.c.b16 %v1649, %v1641
    %v2426 = vpack.c.b16 %v1658, %v1650
    %v2427 = vpack.c.b16 %v1659, %v1651
    %v2428 = vpack.c.b16 %v1660, %v1652
    %v2429 = vpack.c.b16 %v1661, %v1653
    %v2430 = vpack.c.b16 %v1662, %v1654
    %v2431 = vpack.c.b16 %v1663, %v1655
    %v2432 = vpack.c.b16 %v1664, %v1656
    %v2433 = vpack.c.b16 %v1665, %v1657
    %v2434 = vpack.c.b16 %v1674, %v1666
    %v2435 = vpack.c.b16 %v1675, %v1667
    %v2436 = vpack.c.b16 %v1676, %v1668
    %v2437 = vpack.c.b16 %v1677, %v1669
    %v2438 = vpack.c.b16 %v1678, %v1670
    %v2439 = vpack.c.b16 %v1679, %v1671
    %v2440 = vpack.c.b16 %v1680, %v1672
    %v2441 = vpack.c.b16 %v1681, %v1673
    %v2442 = vpack.c.b16 %v1690, %v1682
    %v2443 = vpack.c.b16 %v1691, %v1683
    %v2444 = vpack.c.b16 %v1692, %v1684
    %v2445 = vpack.c.b16 %v1693, %v1685
    %v2446 = vpack.c.b16 %v1694, %v1686
    %v2447 = vpack.c.b16 %v1695, %v1687
    %v2448 = vpack.c.b16 %v1696, %v1688
    %v2449 = vpack.c.b16 %v1697, %v1689
    %v2450 = vpack.c.b16 %v1706, %v1698
    %v2451 = vpack.c.b16 %v1707, %v1699
    %v2452 = vpack.c.b16 %v1708, %v1700
    %v2453 = vpack.c.b16 %v1709, %v1701
    %v2454 = vpack.c.b16 %v1710, %v1702
    %v2455 = vpack.c.b16 %v1711, %v1703
    %v2456 = vpack.c.b16 %v1712, %v1704
    %v2457 = vpack.c.b16 %v1713, %v1705
    %v2458 = vpack.c.b16 %v1722, %v1714
    %v2459 = vpack.c.b16 %v1723, %v1715
    %v2460 = vpack.c.b16 %v1724, %v1716
    %v2461 = vpack.c.b16 %v1725, %v1717
    %v2462 = vpack.c.b16 %v1726, %v1718
    %v2463 = vpack.c.b16 %v1727, %v1719
    %v2464 = vpack.c.b16 %v1728, %v1720
    %v2465 = vpack.c.b16 %v1729, %v1721
    %v2466 = vpack.c.b16 %v1738, %v1730
    %v2467 = vpack.c.b16 %v1739, %v1731
    %v2468 = vpack.c.b16 %v1740, %v1732
    %v2469 = vpack.c.b16 %v1741, %v1733
    %v2470 = vpack.c.b16 %v1742, %v1734
    %v2471 = vpack.c.b16 %v1743, %v1735
    %v2472 = vpack.c.b16 %v1744, %v1736
    %v2473 = vpack.c.b16 %v1745, %v1737
    %v2474 = vpack.c.b16 %v1754, %v1746
    %v2475 = vpack.c.b16 %v1755, %v1747
    %v2476 = vpack.c.b16 %v1756, %v1748
    %v2477 = vpack.c.b16 %v1757, %v1749
    %v2478 = vpack.c.b16 %v1758, %v1750
    %v2479 = vpack.c.b16 %v1759, %v1751
    %v2480 = vpack.c.b16 %v1760, %v1752
    %v2481 = vpack.c.b16 %v1761, %v1753
    %v2482 = vpack.c.b16 %v1770, %v1762
    %v2483 = vpack.c.b16 %v1771, %v1763
    %v2484 = vpack.c.b16 %v1772, %v1764
    %v2485 = vpack.c.b16 %v1773, %v1765
    %v2486 = vpack.c.b16 %v1774, %v1766
    %v2487 = vpack.c.b16 %v1775, %v1767
    %v2488 = vpack.c.b16 %v1776, %v1768
    %v2489 = vpack.c.b16 %v1777, %v1769
    %v2490 = vpack.c.b16 %v1786, %v1778
    %v2491 = vpack.c.b16 %v1787, %v1779
    %v2492 = vpack.c.b16 %v1788, %v1780
    %v2493 = vpack.c.b16 %v1789, %v1781
    %v2494 = vpack.c.b16 %v1790, %v1782
    %v2495 = vpack.c.b16 %v1791, %v1783
    %v2496 = vpack.c.b16 %v1792, %v1784
    %v2497 = vpack.c.b16 %v1793, %v1785
    %v2498 = vpack.c.b16 %v1802, %v1794
    %v2499 = vpack.c.b16 %v1803, %v1795
    %v2500 = vpack.c.b16 %v1804, %v1796
    %v2501 = vpack.c.b16 %v1805, %v1797
    %v2502 = vpack.c.b16 %v1806, %v1798
    %v2503 = vpack.c.b16 %v1807, %v1799
    %v2504 = vpack.c.b16 %v1808, %v1800
    %v2505 = vpack.c.b16 %v1809, %v1801
    %v2506 = vpack.c.b16 %v1818, %v1810
    %v2507 = vpack.c.b16 %v1819, %v1811
    %v2508 = vpack.c.b16 %v1820, %v1812
    %v2509 = vpack.c.b16 %v1821, %v1813
    %v2510 = vpack.c.b16 %v1822, %v1814
    %v2511 = vpack.c.b16 %v1823, %v1815
    %v2512 = vpack.c.b16 %v1824, %v1816
    %v2513 = vpack.c.b16 %v1825, %v1817
    %v2514 = vpack.c.b16 %v1834, %v1826
    %v2515 = vpack.c.b16 %v1835, %v1827
    %v2516 = vpack.c.b16 %v1836, %v1828
    %v2517 = vpack.c.b16 %v1837, %v1829
    %v2518 = vpack.c.b16 %v1838, %v1830
    %v2519 = vpack.c.b16 %v1839, %v1831
    %v2520 = vpack.c.b16 %v1840, %v1832
    %v2521 = vpack.c.b16 %v1841, %v1833
    %v2522 = vpack.c.b16 %v1850, %v1842
    %v2523 = vpack.c.b16 %v1851, %v1843
    %v2524 = vpack.c.b16 %v1852, %v1844
    %v2525 = vpack.c.b16 %v1853, %v1845
    %v2526 = vpack.c.b16 %v1854, %v1846
    %v2527 = vpack.c.b16 %v1855, %v1847
    %v2528 = vpack.c.b16 %v1856, %v1848
    %v2529 = vpack.c.b16 %v1857, %v1849
    %v2530 = vpack.c.b16 %v1866, %v1858
    %v2531 = vpack.c.b16 %v1867, %v1859
    %v2532 = vpack.c.b16 %v1868, %v1860
    %v2533 = vpack.c.b16 %v1869, %v1861
    %v2534 = vpack.c.b16 %v1870, %v1862
    %v2535 = vpack.c.b16 %v1871, %v1863
    %v2536 = vpack.c.b16 %v1872, %v1864
    %v2537 = vpack.c.b16 %v1873, %v1865
    %v2538 = vpack.c.b16 %v1882, %v1874
    %v2539 = vpack.c.b16 %v1883, %v1875
    %v2540 = vpack.c.b16 %v1884, %v1876
    %v2541 = vpack.c.b16 %v1885, %v1877
    %v2542 = vpack.c.b16 %v1886, %v1878
    %v2543 = vpack.c.b16 %v1887, %v1879
    %v2544 = vpack.c.b16 %v1888, %v1880
    %v2545 = vpack.c.b16 %v1889, %v1881
    %v2546 = vpack.c.b16 %v1898, %v1890
    %v2547 = vpack.c.b16 %v1899, %v1891
    %v2548 = vpack.c.b16 %v1900, %v1892
    %v2549 = vpack.c.b16 %v1901, %v1893
    %v2550 = vpack.c.b16 %v1902, %v1894
    %v2551 = vpack.c.b16 %v1903, %v1895
    %v2552 = vpack.c.b16 %v1904, %v1896
    %v2553 = vpack.c.b16 %v1905, %v1897
    %v2554 = vpack.c.b16 %v1914, %v1906
    %v2555 = vpack.c.b16 %v1915, %v1907
    %v2556 = vpack.c.b16 %v1916, %v1908
    %v2557 = vpack.c.b16 %v1917, %v1909
    %v2558 = vpack.c.b16 %v1918, %v1910
    %v2559 = vpack.c.b16 %v1919, %v1911
    %v2560 = vpack.c.b16 %v1920, %v1912
    %v2561 = vpack.c.b16 %v1921, %v1913
    %v2562 = vpack.c.b16 %v1930, %v1922
    %v2563 = vpack.c.b16 %v1931, %v1923
    %v2564 = vpack.c.b16 %v1932, %v1924
    %v2565 = vpack.c.b16 %v1933, %v1925
    %v2566 = vpack.c.b16 %v1934, %v1926
    %v2567 = vpack.c.b16 %v1935, %v1927
    %v2568 = vpack.c.b16 %v1936, %v1928
    %v2569 = vpack.c.b16 %v1937, %v1929
    %v2570 = vpack.c.b16 %v1946, %v1938
    %v2571 = vpack.c.b16 %v1947, %v1939
    %v2572 = vpack.c.b16 %v1948, %v1940
    %v2573 = vpack.c.b16 %v1949, %v1941
    %v2574 = vpack.c.b16 %v1950, %v1942
    %v2575 = vpack.c.b16 %v1951, %v1943
    %v2576 = vpack.c.b16 %v1952, %v1944
    %v2577 = vpack.c.b16 %v1953, %v1945
    %v2578 = vpack.c.b16 %v1962, %v1954
    %v2579 = vpack.c.b16 %v1963, %v1955
    %v2580 = vpack.c.b16 %v1964, %v1956
    %v2581 = vpack.c.b16 %v1965, %v1957
    %v2582 = vpack.c.b16 %v1966, %v1958
    %v2583 = vpack.c.b16 %v1967, %v1959
    %v2584 = vpack.c.b16 %v1968, %v1960
    %v2585 = vpack.c.b16 %v1969, %v1961
    %v2586 = vpack.c.b16 %v1978, %v1970
    %v2587 = vpack.c.b16 %v1979, %v1971
    %v2588 = vpack.c.b16 %v1980, %v1972
    %v2589 = vpack.c.b16 %v1981, %v1973
    %v2590 = vpack.c.b16 %v1982, %v1974
    %v2591 = vpack.c.b16 %v1983, %v1975
    %v2592 = vpack.c.b16 %v1984, %v1976
    %v2593 = vpack.c.b16 %v1985, %v1977
    %v2594 = vpack.c.b16 %v1994, %v1986
    %v2595 = vpack.c.b16 %v1995, %v1987
    %v2596 = vpack.c.b16 %v1996, %v1988
    %v2597 = vpack.c.b16 %v1997, %v1989
    %v2598 = vpack.c.b16 %v1998, %v1990
    %v2599 = vpack.c.b16 %v1999, %v1991
    %v2600 = vpack.c.b16 %v2000, %v1992
    %v2601 = vpack.c.b16 %v2001, %v1993
    %v2602 = vpack.c.b16 %v2010, %v2002
    %v2603 = vpack.c.b16 %v2011, %v2003
    %v2604 = vpack.c.b16 %v2012, %v2004
    %v2605 = vpack.c.b16 %v2013, %v2005
    %v2606 = vpack.c.b16 %v2014, %v2006
    %v2607 = vpack.c.b16 %v2015, %v2007
    %v2608 = vpack.c.b16 %v2016, %v2008
    %v2609 = vpack.c.b16 %v2017, %v2009
    %v2610 = vpack.c.b16 %v2026, %v2018
    %v2611 = vpack.c.b16 %v2027, %v2019
    %v2612 = vpack.c.b16 %v2028, %v2020
    %v2613 = vpack.c.b16 %v2029, %v2021
    %v2614 = vpack.c.b16 %v2030, %v2022
    %v2615 = vpack.c.b16 %v2031, %v2023
    %v2616 = vpack.c.b16 %v2032, %v2024
    %v2617 = vpack.c.b16 %v2033, %v2025
    %v2618 = vpack.c.b16 %v2042, %v2034
    %v2619 = vpack.c.b16 %v2043, %v2035
    %v2620 = vpack.c.b16 %v2044, %v2036
    %v2621 = vpack.c.b16 %v2045, %v2037
    %v2622 = vpack.c.b16 %v2046, %v2038
    %v2623 = vpack.c.b16 %v2047, %v2039
    %v2624 = vpack.c.b16 %v2048, %v2040
    %v2625 = vpack.c.b16 %v2049, %v2041
    %v2626 = vpack.c.b16 %v2058, %v2050
    %v2627 = vpack.c.b16 %v2059, %v2051
    %v2628 = vpack.c.b16 %v2060, %v2052
    %v2629 = vpack.c.b16 %v2061, %v2053
    %v2630 = vpack.c.b16 %v2062, %v2054
    %v2631 = vpack.c.b16 %v2063, %v2055
    %v2632 = vpack.c.b16 %v2064, %v2056
    %v2633 = vpack.c.b16 %v2065, %v2057
    %v2634 = vpack.c.b16 %v2074, %v2066
    %v2635 = vpack.c.b16 %v2075, %v2067
    %v2636 = vpack.c.b16 %v2076, %v2068
    %v2637 = vpack.c.b16 %v2077, %v2069
    %v2638 = vpack.c.b16 %v2078, %v2070
    %v2639 = vpack.c.b16 %v2079, %v2071
    %v2640 = vpack.c.b16 %v2080, %v2072
    %v2641 = vpack.c.b16 %v2081, %v2073
    %v2642 = vpack.c.b16 %v2090, %v2082
    %v2643 = vpack.c.b16 %v2091, %v2083
    %v2644 = vpack.c.b16 %v2092, %v2084
    %v2645 = vpack.c.b16 %v2093, %v2085
    %v2646 = vpack.c.b16 %v2094, %v2086
    %v2647 = vpack.c.b16 %v2095, %v2087
    %v2648 = vpack.c.b16 %v2096, %v2088
    %v2649 = vpack.c.b16 %v2097, %v2089
    %v2650 = vpack.c.b16 %v2106, %v2098
    %v2651 = vpack.c.b16 %v2107, %v2099
    %v2652 = vpack.c.b16 %v2108, %v2100
    %v2653 = vpack.c.b16 %v2109, %v2101
    %v2654 = vpack.c.b16 %v2110, %v2102
    %v2655 = vpack.c.b16 %v2111, %v2103
    %v2656 = vpack.c.b16 %v2112, %v2104
    %v2657 = vpack.c.b16 %v2113, %v2105
    %v2658 = vpack.c.b16 %v2122, %v2114
    %v2659 = vpack.c.b16 %v2123, %v2115
    %v2660 = vpack.c.b16 %v2124, %v2116
    %v2661 = vpack.c.b16 %v2125, %v2117
    %v2662 = vpack.c.b16 %v2126, %v2118
    %v2663 = vpack.c.b16 %v2127, %v2119
    %v2664 = vpack.c.b16 %v2128, %v2120
    %v2665 = vpack.c.b16 %v2129, %v2121
    %v2666 = vpack.c.b16 %v2138, %v2130
    %v2667 = vpack.c.b16 %v2139, %v2131
    %v2668 = vpack.c.b16 %v2140, %v2132
    %v2669 = vpack.c.b16 %v2141, %v2133
    %v2670 = vpack.c.b16 %v2142, %v2134
    %v2671 = vpack.c.b16 %v2143, %v2135
    %v2672 = vpack.c.b16 %v2144, %v2136
    %v2673 = vpack.c.b16 %v2145, %v2137
    %v2674 = vpack.c.b16 %v2154, %v2146
    %v2675 = vpack.c.b16 %v2155, %v2147
    %v2676 = vpack.c.b16 %v2156, %v2148
    %v2677 = vpack.c.b16 %v2157, %v2149
    %v2678 = vpack.c.b16 %v2158, %v2150
    %v2679 = vpack.c.b16 %v2159, %v2151
    %v2680 = vpack.c.b16 %v2160, %v2152
    %v2681 = vpack.c.b16 %v2161, %v2153
    %v2682 = vpack.c.b16 %v2170, %v2162
    %v2683 = vpack.c.b16 %v2171, %v2163
    %v2684 = vpack.c.b16 %v2172, %v2164
    %v2685 = vpack.c.b16 %v2173, %v2165
    %v2686 = vpack.c.b16 %v2174, %v2166
    %v2687 = vpack.c.b16 %v2175, %v2167
    %v2688 = vpack.c.b16 %v2176, %v2168
    %v2689 = vpack.c.b16 %v2177, %v2169
    %3202 = vmatpush.bf16.msra.mxu0 %v2234
    %3203 = vmatpush.bf16.msra.mxu0 %v2226
    %3204 = vmatpush.bf16.msra.mxu0 %v2218
    %3205 = vmatpush.bf16.msra.mxu0 %v2210
    %3206 = vmatpush.bf16.msra.mxu0 %v2202
    %3207 = vmatpush.bf16.msra.mxu0 %v2194
    %3208 = vmatpush.bf16.msra.mxu0 %v2186
    %3209 = vmatpush.bf16.msra.mxu0 %v2178
    %3210 = vmatmul.bf16.gmra.mxu0 %v104
    %v3211 = vpop.f32.mrf.mxu0
    %v3212 = vadd.f32 %v626, %v3211
    %v3213 = vpop.f32.mrf.mxu0
    %3214 = vdwg.mxu0
    %3215 = vmatpush.bf16.msra.mxu0 %v2298
    %3216 = vmatpush.bf16.msra.mxu0 %v2290
    %3217 = vmatpush.bf16.msra.mxu0 %v2282
    %3218 = vmatpush.bf16.msra.mxu0 %v2274
    %3219 = vmatpush.bf16.msra.mxu0 %v2266
    %3220 = vmatpush.bf16.msra.mxu0 %v2258
    %3221 = vmatpush.bf16.msra.mxu0 %v2250
    %3222 = vmatpush.bf16.msra.mxu0 %v2242
    %3223 = vmatmul.bf16.gmra.mxu0 %v105
    %v3224 = vpop.f32.mrf.mxu0
    %v3225 = vadd.f32 %v3212, %v3224
    %v3226 = vpop.f32.mrf.mxu0
    %3227 = vdwg.mxu0
    %3228 = vmatpush.bf16.msra.mxu0 %v2362
    %3229 = vmatpush.bf16.msra.mxu0 %v2354
    %3230 = vmatpush.bf16.msra.mxu0 %v2346
    %3231 = vmatpush.bf16.msra.mxu0 %v2338
    %3232 = vmatpush.bf16.msra.mxu0 %v2330
    %3233 = vmatpush.bf16.msra.mxu0 %v2322
    %3234 = vmatpush.bf16.msra.mxu0 %v2314
    %3235 = vmatpush.bf16.msra.mxu0 %v2306
    %3236 = vmatmul.bf16.gmra.mxu0 %v106
    %v3237 = vpop.f32.mrf.mxu0
    %v3238 = vadd.f32 %v3225, %v3237
    %v3239 = vpop.f32.mrf.mxu0
    %3240 = vdwg.mxu0
    %3241 = vmatpush.bf16.msra.mxu0 %v2426
    %3242 = vmatpush.bf16.msra.mxu0 %v2418
    %3243 = vmatpush.bf16.msra.mxu0 %v2410
    %3244 = vmatpush.bf16.msra.mxu0 %v2402
    %3245 = vmatpush.bf16.msra.mxu0 %v2394
    %3246 = vmatpush.bf16.msra.mxu0 %v2386
    %3247 = vmatpush.bf16.msra.mxu0 %v2378
    %3248 = vmatpush.bf16.msra.mxu0 %v2370
    %3249 = vmatmul.bf16.gmra.mxu0 %v107
    %v3250 = vpop.f32.mrf.mxu0
    %v3251 = vadd.f32 %v3238, %v3250
    %v3252 = vpop.f32.mrf.mxu0
    %3253 = vdwg.mxu0
    %3254 = vmatpush.bf16.msra.mxu0 %v2490
    %3255 = vmatpush.bf16.msra.mxu0 %v2482
    %3256 = vmatpush.bf16.msra.mxu0 %v2474
    %3257 = vmatpush.bf16.msra.mxu0 %v2466
    %3258 = vmatpush.bf16.msra.mxu0 %v2458
    %3259 = vmatpush.bf16.msra.mxu0 %v2450
    %3260 = vmatpush.bf16.msra.mxu0 %v2442
    %3261 = vmatpush.bf16.msra.mxu0 %v2434
    %3262 = vmatmul.bf16.gmra.mxu0 %v108
    %v3263 = vpop.f32.mrf.mxu0
    %v3264 = vadd.f32 %v3251, %v3263
    %v3265 = vpop.f32.mrf.mxu0
    %3266 = vdwg.mxu0
    %3267 = vmatpush.bf16.msra.mxu0 %v2554
    %3268 = vmatpush.bf16.msra.mxu0 %v2546
    %3269 = vmatpush.bf16.msra.mxu0 %v2538
    %3270 = vmatpush.bf16.msra.mxu0 %v2530
    %3271 = vmatpush.bf16.msra.mxu0 %v2522
    %3272 = vmatpush.bf16.msra.mxu0 %v2514
    %3273 = vmatpush.bf16.msra.mxu0 %v2506
    %3274 = vmatpush.bf16.msra.mxu0 %v2498
    %3275 = vmatmul.bf16.gmra.mxu0 %v109
    %v3276 = vpop.f32.mrf.mxu0
    %v3277 = vadd.f32 %v3264, %v3276
    %v3278 = vpop.f32.mrf.mxu0
    %3279 = vdwg.mxu0
    %3280 = vmatpush.bf16.msra.mxu0 %v2618
    %3281 = vmatpush.bf16.msra.mxu0 %v2610
    %3282 = vmatpush.bf16.msra.mxu0 %v2602
    %3283 = vmatpush.bf16.msra.mxu0 %v2594
    %3284 = vmatpush.bf16.msra.mxu0 %v2586
    %3285 = vmatpush.bf16.msra.mxu0 %v2578
    %3286 = vmatpush.bf16.msra.mxu0 %v2570
    %3287 = vmatpush.bf16.msra.mxu0 %v2562
    %3288 = vmatmul.bf16.gmra.mxu0 %v110
    %v3289 = vpop.f32.mrf.mxu0
    %v3290 = vadd.f32 %v3277, %v3289
    %v3291 = vpop.f32.mrf.mxu0
    %3292 = vdwg.mxu0
    %3293 = vmatpush.bf16.msra.mxu0 %v2682
    %3294 = vmatpush.bf16.msra.mxu0 %v2674
    %3295 = vmatpush.bf16.msra.mxu0 %v2666
    %3296 = vmatpush.bf16.msra.mxu0 %v2658
    %3297 = vmatpush.bf16.msra.mxu0 %v2650
    %3298 = vmatpush.bf16.msra.mxu0 %v2642
    %3299 = vmatpush.bf16.msra.mxu0 %v2634
    %3300 = vmatpush.bf16.msra.mxu0 %v2626
    %3301 = vmatmul.bf16.gmra.mxu0 %v111
    %v3302 = vpop.f32.mrf.mxu0
    %v3303 = vadd.f32 %v3290, %v3302
    %v3304 = vpop.f32.mrf.mxu0
    %3305 = vdwg.mxu0
    %3306 = vmatpush.bf16.msra.mxu0 %v2235
    %3307 = vmatpush.bf16.msra.mxu0 %v2227
    %3308 = vmatpush.bf16.msra.mxu0 %v2219
    %3309 = vmatpush.bf16.msra.mxu0 %v2211
    %3310 = vmatpush.bf16.msra.mxu0 %v2203
    %3311 = vmatpush.bf16.msra.mxu0 %v2195
    %3312 = vmatpush.bf16.msra.mxu0 %v2187
    %3313 = vmatpush.bf16.msra.mxu0 %v2179
    %3314 = vmatmul.bf16.gmra.mxu0 %v104
    %v3315 = vpop.f32.mrf.mxu0
    %v3316 = vadd.f32 %v627, %v3315
    %v3317 = vpop.f32.mrf.mxu0
    %3318 = vdwg.mxu0
    %3319 = vmatpush.bf16.msra.mxu0 %v2299
    %3320 = vmatpush.bf16.msra.mxu0 %v2291
    %3321 = vmatpush.bf16.msra.mxu0 %v2283
    %3322 = vmatpush.bf16.msra.mxu0 %v2275
    %3323 = vmatpush.bf16.msra.mxu0 %v2267
    %3324 = vmatpush.bf16.msra.mxu0 %v2259
    %3325 = vmatpush.bf16.msra.mxu0 %v2251
    %3326 = vmatpush.bf16.msra.mxu0 %v2243
    %3327 = vmatmul.bf16.gmra.mxu0 %v105
    %v3328 = vpop.f32.mrf.mxu0
    %v3329 = vadd.f32 %v3316, %v3328
    %v3330 = vpop.f32.mrf.mxu0
    %3331 = vdwg.mxu0
    %3332 = vmatpush.bf16.msra.mxu0 %v2363
    %3333 = vmatpush.bf16.msra.mxu0 %v2355
    %3334 = vmatpush.bf16.msra.mxu0 %v2347
    %3335 = vmatpush.bf16.msra.mxu0 %v2339
    %3336 = vmatpush.bf16.msra.mxu0 %v2331
    %3337 = vmatpush.bf16.msra.mxu0 %v2323
    %3338 = vmatpush.bf16.msra.mxu0 %v2315
    %3339 = vmatpush.bf16.msra.mxu0 %v2307
    %3340 = vmatmul.bf16.gmra.mxu0 %v106
    %v3341 = vpop.f32.mrf.mxu0
    %v3342 = vadd.f32 %v3329, %v3341
    %v3343 = vpop.f32.mrf.mxu0
    %3344 = vdwg.mxu0
    %3345 = vmatpush.bf16.msra.mxu0 %v2427
    %3346 = vmatpush.bf16.msra.mxu0 %v2419
    %3347 = vmatpush.bf16.msra.mxu0 %v2411
    %3348 = vmatpush.bf16.msra.mxu0 %v2403
    %3349 = vmatpush.bf16.msra.mxu0 %v2395
    %3350 = vmatpush.bf16.msra.mxu0 %v2387
    %3351 = vmatpush.bf16.msra.mxu0 %v2379
    %3352 = vmatpush.bf16.msra.mxu0 %v2371
    %3353 = vmatmul.bf16.gmra.mxu0 %v107
    %v3354 = vpop.f32.mrf.mxu0
    %v3355 = vadd.f32 %v3342, %v3354
    %v3356 = vpop.f32.mrf.mxu0
    %3357 = vdwg.mxu0
    %3358 = vmatpush.bf16.msra.mxu0 %v2491
    %3359 = vmatpush.bf16.msra.mxu0 %v2483
    %3360 = vmatpush.bf16.msra.mxu0 %v2475
    %3361 = vmatpush.bf16.msra.mxu0 %v2467
    %3362 = vmatpush.bf16.msra.mxu0 %v2459
    %3363 = vmatpush.bf16.msra.mxu0 %v2451
    %3364 = vmatpush.bf16.msra.mxu0 %v2443
    %3365 = vmatpush.bf16.msra.mxu0 %v2435
    %3366 = vmatmul.bf16.gmra.mxu0 %v108
    %v3367 = vpop.f32.mrf.mxu0
    %v3368 = vadd.f32 %v3355, %v3367
    %v3369 = vpop.f32.mrf.mxu0
    %3370 = vdwg.mxu0
    %3371 = vmatpush.bf16.msra.mxu0 %v2555
    %3372 = vmatpush.bf16.msra.mxu0 %v2547
    %3373 = vmatpush.bf16.msra.mxu0 %v2539
    %3374 = vmatpush.bf16.msra.mxu0 %v2531
    %3375 = vmatpush.bf16.msra.mxu0 %v2523
    %3376 = vmatpush.bf16.msra.mxu0 %v2515
    %3377 = vmatpush.bf16.msra.mxu0 %v2507
    %3378 = vmatpush.bf16.msra.mxu0 %v2499
    %3379 = vmatmul.bf16.gmra.mxu0 %v109
    %v3380 = vpop.f32.mrf.mxu0
    %v3381 = vadd.f32 %v3368, %v3380
    %v3382 = vpop.f32.mrf.mxu0
    %3383 = vdwg.mxu0
    %3384 = vmatpush.bf16.msra.mxu0 %v2619
    %3385 = vmatpush.bf16.msra.mxu0 %v2611
    %3386 = vmatpush.bf16.msra.mxu0 %v2603
    %3387 = vmatpush.bf16.msra.mxu0 %v2595
    %3388 = vmatpush.bf16.msra.mxu0 %v2587
    %3389 = vmatpush.bf16.msra.mxu0 %v2579
    %3390 = vmatpush.bf16.msra.mxu0 %v2571
    %3391 = vmatpush.bf16.msra.mxu0 %v2563
    %3392 = vmatmul.bf16.gmra.mxu0 %v110
    %v3393 = vpop.f32.mrf.mxu0
    %v3394 = vadd.f32 %v3381, %v3393
    %v3395 = vpop.f32.mrf.mxu0
    %3396 = vdwg.mxu0
    %3397 = vmatpush.bf16.msra.mxu0 %v2683
    %3398 = vmatpush.bf16.msra.mxu0 %v2675
    %3399 = vmatpush.bf16.msra.mxu0 %v2667
    %3400 = vmatpush.bf16.msra.mxu0 %v2659
    %3401 = vmatpush.bf16.msra.mxu0 %v2651
    %3402 = vmatpush.bf16.msra.mxu0 %v2643
    %3403 = vmatpush.bf16.msra.mxu0 %v2635
    %3404 = vmatpush.bf16.msra.mxu0 %v2627
    %3405 = vmatmul.bf16.gmra.mxu0 %v111
    %v3406 = vpop.f32.mrf.mxu0
    %v3407 = vadd.f32 %v3394, %v3406
    %v3408 = vpop.f32.mrf.mxu0
    %3409 = vdwg.mxu0
    %3410 = vmatpush.bf16.msra.mxu0 %v2236
    %3411 = vmatpush.bf16.msra.mxu0 %v2228
    %3412 = vmatpush.bf16.msra.mxu0 %v2220
    %3413 = vmatpush.bf16.msra.mxu0 %v2212
    %3414 = vmatpush.bf16.msra.mxu0 %v2204
    %3415 = vmatpush.bf16.msra.mxu0 %v2196
    %3416 = vmatpush.bf16.msra.mxu0 %v2188
    %3417 = vmatpush.bf16.msra.mxu0 %v2180
    %3418 = vmatmul.bf16.gmra.mxu0 %v104
    %v3419 = vpop.f32.mrf.mxu0
    %v3420 = vadd.f32 %v628, %v3419
    %v3421 = vpop.f32.mrf.mxu0
    %3422 = vdwg.mxu0
    %3423 = vmatpush.bf16.msra.mxu0 %v2300
    %3424 = vmatpush.bf16.msra.mxu0 %v2292
    %3425 = vmatpush.bf16.msra.mxu0 %v2284
    %3426 = vmatpush.bf16.msra.mxu0 %v2276
    %3427 = vmatpush.bf16.msra.mxu0 %v2268
    %3428 = vmatpush.bf16.msra.mxu0 %v2260
    %3429 = vmatpush.bf16.msra.mxu0 %v2252
    %3430 = vmatpush.bf16.msra.mxu0 %v2244
    %3431 = vmatmul.bf16.gmra.mxu0 %v105
    %v3432 = vpop.f32.mrf.mxu0
    %v3433 = vadd.f32 %v3420, %v3432
    %v3434 = vpop.f32.mrf.mxu0
    %3435 = vdwg.mxu0
    %3436 = vmatpush.bf16.msra.mxu0 %v2364
    %3437 = vmatpush.bf16.msra.mxu0 %v2356
    %3438 = vmatpush.bf16.msra.mxu0 %v2348
    %3439 = vmatpush.bf16.msra.mxu0 %v2340
    %3440 = vmatpush.bf16.msra.mxu0 %v2332
    %3441 = vmatpush.bf16.msra.mxu0 %v2324
    %3442 = vmatpush.bf16.msra.mxu0 %v2316
    %3443 = vmatpush.bf16.msra.mxu0 %v2308
    %3444 = vmatmul.bf16.gmra.mxu0 %v106
    %v3445 = vpop.f32.mrf.mxu0
    %v3446 = vadd.f32 %v3433, %v3445
    %v3447 = vpop.f32.mrf.mxu0
    %3448 = vdwg.mxu0
    %3449 = vmatpush.bf16.msra.mxu0 %v2428
    %3450 = vmatpush.bf16.msra.mxu0 %v2420
    %3451 = vmatpush.bf16.msra.mxu0 %v2412
    %3452 = vmatpush.bf16.msra.mxu0 %v2404
    %3453 = vmatpush.bf16.msra.mxu0 %v2396
    %3454 = vmatpush.bf16.msra.mxu0 %v2388
    %3455 = vmatpush.bf16.msra.mxu0 %v2380
    %3456 = vmatpush.bf16.msra.mxu0 %v2372
    %3457 = vmatmul.bf16.gmra.mxu0 %v107
    %v3458 = vpop.f32.mrf.mxu0
    %v3459 = vadd.f32 %v3446, %v3458
    %v3460 = vpop.f32.mrf.mxu0
    %3461 = vdwg.mxu0
    %3462 = vmatpush.bf16.msra.mxu0 %v2492
    %3463 = vmatpush.bf16.msra.mxu0 %v2484
    %3464 = vmatpush.bf16.msra.mxu0 %v2476
    %3465 = vmatpush.bf16.msra.mxu0 %v2468
    %3466 = vmatpush.bf16.msra.mxu0 %v2460
    %3467 = vmatpush.bf16.msra.mxu0 %v2452
    %3468 = vmatpush.bf16.msra.mxu0 %v2444
    %3469 = vmatpush.bf16.msra.mxu0 %v2436
    %3470 = vmatmul.bf16.gmra.mxu0 %v108
    %v3471 = vpop.f32.mrf.mxu0
    %v3472 = vadd.f32 %v3459, %v3471
    %v3473 = vpop.f32.mrf.mxu0
    %3474 = vdwg.mxu0
    %3475 = vmatpush.bf16.msra.mxu0 %v2556
    %3476 = vmatpush.bf16.msra.mxu0 %v2548
    %3477 = vmatpush.bf16.msra.mxu0 %v2540
    %3478 = vmatpush.bf16.msra.mxu0 %v2532
    %3479 = vmatpush.bf16.msra.mxu0 %v2524
    %3480 = vmatpush.bf16.msra.mxu0 %v2516
    %3481 = vmatpush.bf16.msra.mxu0 %v2508
    %3482 = vmatpush.bf16.msra.mxu0 %v2500
    %3483 = vmatmul.bf16.gmra.mxu0 %v109
    %v3484 = vpop.f32.mrf.mxu0
    %v3485 = vadd.f32 %v3472, %v3484
    %v3486 = vpop.f32.mrf.mxu0
    %3487 = vdwg.mxu0
    %3488 = vmatpush.bf16.msra.mxu0 %v2620
    %3489 = vmatpush.bf16.msra.mxu0 %v2612
    %3490 = vmatpush.bf16.msra.mxu0 %v2604
    %3491 = vmatpush.bf16.msra.mxu0 %v2596
    %3492 = vmatpush.bf16.msra.mxu0 %v2588
    %3493 = vmatpush.bf16.msra.mxu0 %v2580
    %3494 = vmatpush.bf16.msra.mxu0 %v2572
    %3495 = vmatpush.bf16.msra.mxu0 %v2564
    %3496 = vmatmul.bf16.gmra.mxu0 %v110
    %v3497 = vpop.f32.mrf.mxu0
    %v3498 = vadd.f32 %v3485, %v3497
    %v3499 = vpop.f32.mrf.mxu0
    %3500 = vdwg.mxu0
    %3501 = vmatpush.bf16.msra.mxu0 %v2684
    %3502 = vmatpush.bf16.msra.mxu0 %v2676
    %3503 = vmatpush.bf16.msra.mxu0 %v2668
    %3504 = vmatpush.bf16.msra.mxu0 %v2660
    %3505 = vmatpush.bf16.msra.mxu0 %v2652
    %3506 = vmatpush.bf16.msra.mxu0 %v2644
    %3507 = vmatpush.bf16.msra.mxu0 %v2636
    %3508 = vmatpush.bf16.msra.mxu0 %v2628
    %3509 = vmatmul.bf16.gmra.mxu0 %v111
    %v3510 = vpop.f32.mrf.mxu0
    %v3511 = vadd.f32 %v3498, %v3510
    %v3512 = vpop.f32.mrf.mxu0
    %3513 = vdwg.mxu0
    %3514 = vmatpush.bf16.msra.mxu0 %v2237
    %3515 = vmatpush.bf16.msra.mxu0 %v2229
    %3516 = vmatpush.bf16.msra.mxu0 %v2221
    %3517 = vmatpush.bf16.msra.mxu0 %v2213
    %3518 = vmatpush.bf16.msra.mxu0 %v2205
    %3519 = vmatpush.bf16.msra.mxu0 %v2197
    %3520 = vmatpush.bf16.msra.mxu0 %v2189
    %3521 = vmatpush.bf16.msra.mxu0 %v2181
    %3522 = vmatmul.bf16.gmra.mxu0 %v104
    %v3523 = vpop.f32.mrf.mxu0
    %v3524 = vadd.f32 %v629, %v3523
    %v3525 = vpop.f32.mrf.mxu0
    %3526 = vdwg.mxu0
    %3527 = vmatpush.bf16.msra.mxu0 %v2301
    %3528 = vmatpush.bf16.msra.mxu0 %v2293
    %3529 = vmatpush.bf16.msra.mxu0 %v2285
    %3530 = vmatpush.bf16.msra.mxu0 %v2277
    %3531 = vmatpush.bf16.msra.mxu0 %v2269
    %3532 = vmatpush.bf16.msra.mxu0 %v2261
    %3533 = vmatpush.bf16.msra.mxu0 %v2253
    %3534 = vmatpush.bf16.msra.mxu0 %v2245
    %3535 = vmatmul.bf16.gmra.mxu0 %v105
    %v3536 = vpop.f32.mrf.mxu0
    %v3537 = vadd.f32 %v3524, %v3536
    %v3538 = vpop.f32.mrf.mxu0
    %3539 = vdwg.mxu0
    %3540 = vmatpush.bf16.msra.mxu0 %v2365
    %3541 = vmatpush.bf16.msra.mxu0 %v2357
    %3542 = vmatpush.bf16.msra.mxu0 %v2349
    %3543 = vmatpush.bf16.msra.mxu0 %v2341
    %3544 = vmatpush.bf16.msra.mxu0 %v2333
    %3545 = vmatpush.bf16.msra.mxu0 %v2325
    %3546 = vmatpush.bf16.msra.mxu0 %v2317
    %3547 = vmatpush.bf16.msra.mxu0 %v2309
    %3548 = vmatmul.bf16.gmra.mxu0 %v106
    %v3549 = vpop.f32.mrf.mxu0
    %v3550 = vadd.f32 %v3537, %v3549
    %v3551 = vpop.f32.mrf.mxu0
    %3552 = vdwg.mxu0
    %3553 = vmatpush.bf16.msra.mxu0 %v2429
    %3554 = vmatpush.bf16.msra.mxu0 %v2421
    %3555 = vmatpush.bf16.msra.mxu0 %v2413
    %3556 = vmatpush.bf16.msra.mxu0 %v2405
    %3557 = vmatpush.bf16.msra.mxu0 %v2397
    %3558 = vmatpush.bf16.msra.mxu0 %v2389
    %3559 = vmatpush.bf16.msra.mxu0 %v2381
    %3560 = vmatpush.bf16.msra.mxu0 %v2373
    %3561 = vmatmul.bf16.gmra.mxu0 %v107
    %v3562 = vpop.f32.mrf.mxu0
    %v3563 = vadd.f32 %v3550, %v3562
    %v3564 = vpop.f32.mrf.mxu0
    %3565 = vdwg.mxu0
    %3566 = vmatpush.bf16.msra.mxu0 %v2493
    %3567 = vmatpush.bf16.msra.mxu0 %v2485
    %3568 = vmatpush.bf16.msra.mxu0 %v2477
    %3569 = vmatpush.bf16.msra.mxu0 %v2469
    %3570 = vmatpush.bf16.msra.mxu0 %v2461
    %3571 = vmatpush.bf16.msra.mxu0 %v2453
    %3572 = vmatpush.bf16.msra.mxu0 %v2445
    %3573 = vmatpush.bf16.msra.mxu0 %v2437
    %3574 = vmatmul.bf16.gmra.mxu0 %v108
    %v3575 = vpop.f32.mrf.mxu0
    %v3576 = vadd.f32 %v3563, %v3575
    %v3577 = vpop.f32.mrf.mxu0
    %3578 = vdwg.mxu0
    %3579 = vmatpush.bf16.msra.mxu0 %v2557
    %3580 = vmatpush.bf16.msra.mxu0 %v2549
    %3581 = vmatpush.bf16.msra.mxu0 %v2541
    %3582 = vmatpush.bf16.msra.mxu0 %v2533
    %3583 = vmatpush.bf16.msra.mxu0 %v2525
    %3584 = vmatpush.bf16.msra.mxu0 %v2517
    %3585 = vmatpush.bf16.msra.mxu0 %v2509
    %3586 = vmatpush.bf16.msra.mxu0 %v2501
    %3587 = vmatmul.bf16.gmra.mxu0 %v109
    %v3588 = vpop.f32.mrf.mxu0
    %v3589 = vadd.f32 %v3576, %v3588
    %v3590 = vpop.f32.mrf.mxu0
    %3591 = vdwg.mxu0
    %3592 = vmatpush.bf16.msra.mxu0 %v2621
    %3593 = vmatpush.bf16.msra.mxu0 %v2613
    %3594 = vmatpush.bf16.msra.mxu0 %v2605
    %3595 = vmatpush.bf16.msra.mxu0 %v2597
    %3596 = vmatpush.bf16.msra.mxu0 %v2589
    %3597 = vmatpush.bf16.msra.mxu0 %v2581
    %3598 = vmatpush.bf16.msra.mxu0 %v2573
    %3599 = vmatpush.bf16.msra.mxu0 %v2565
    %3600 = vmatmul.bf16.gmra.mxu0 %v110
    %v3601 = vpop.f32.mrf.mxu0
    %v3602 = vadd.f32 %v3589, %v3601
    %v3603 = vpop.f32.mrf.mxu0
    %3604 = vdwg.mxu0
    %3605 = vmatpush.bf16.msra.mxu0 %v2685
    %3606 = vmatpush.bf16.msra.mxu0 %v2677
    %3607 = vmatpush.bf16.msra.mxu0 %v2669
    %3608 = vmatpush.bf16.msra.mxu0 %v2661
    %3609 = vmatpush.bf16.msra.mxu0 %v2653
    %3610 = vmatpush.bf16.msra.mxu0 %v2645
    %3611 = vmatpush.bf16.msra.mxu0 %v2637
    %3612 = vmatpush.bf16.msra.mxu0 %v2629
    %3613 = vmatmul.bf16.gmra.mxu0 %v111
    %v3614 = vpop.f32.mrf.mxu0
    %v3615 = vadd.f32 %v3602, %v3614
    %v3616 = vpop.f32.mrf.mxu0
    %3617 = vdwg.mxu0
    %3618 = vmatpush.bf16.msra.mxu0 %v2238
    %3619 = vmatpush.bf16.msra.mxu0 %v2230
    %3620 = vmatpush.bf16.msra.mxu0 %v2222
    %3621 = vmatpush.bf16.msra.mxu0 %v2214
    %3622 = vmatpush.bf16.msra.mxu0 %v2206
    %3623 = vmatpush.bf16.msra.mxu0 %v2198
    %3624 = vmatpush.bf16.msra.mxu0 %v2190
    %3625 = vmatpush.bf16.msra.mxu0 %v2182
    %3626 = vmatmul.bf16.gmra.mxu0 %v104
    %v3627 = vpop.f32.mrf.mxu0
    %v3628 = vadd.f32 %v630, %v3627
    %v3629 = vpop.f32.mrf.mxu0
    %3630 = vdwg.mxu0
    %3631 = vmatpush.bf16.msra.mxu0 %v2302
    %3632 = vmatpush.bf16.msra.mxu0 %v2294
    %3633 = vmatpush.bf16.msra.mxu0 %v2286
    %3634 = vmatpush.bf16.msra.mxu0 %v2278
    %3635 = vmatpush.bf16.msra.mxu0 %v2270
    %3636 = vmatpush.bf16.msra.mxu0 %v2262
    %3637 = vmatpush.bf16.msra.mxu0 %v2254
    %3638 = vmatpush.bf16.msra.mxu0 %v2246
    %3639 = vmatmul.bf16.gmra.mxu0 %v105
    %v3640 = vpop.f32.mrf.mxu0
    %v3641 = vadd.f32 %v3628, %v3640
    %v3642 = vpop.f32.mrf.mxu0
    %3643 = vdwg.mxu0
    %3644 = vmatpush.bf16.msra.mxu0 %v2366
    %3645 = vmatpush.bf16.msra.mxu0 %v2358
    %3646 = vmatpush.bf16.msra.mxu0 %v2350
    %3647 = vmatpush.bf16.msra.mxu0 %v2342
    %3648 = vmatpush.bf16.msra.mxu0 %v2334
    %3649 = vmatpush.bf16.msra.mxu0 %v2326
    %3650 = vmatpush.bf16.msra.mxu0 %v2318
    %3651 = vmatpush.bf16.msra.mxu0 %v2310
    %3652 = vmatmul.bf16.gmra.mxu0 %v106
    %v3653 = vpop.f32.mrf.mxu0
    %v3654 = vadd.f32 %v3641, %v3653
    %v3655 = vpop.f32.mrf.mxu0
    %3656 = vdwg.mxu0
    %3657 = vmatpush.bf16.msra.mxu0 %v2430
    %3658 = vmatpush.bf16.msra.mxu0 %v2422
    %3659 = vmatpush.bf16.msra.mxu0 %v2414
    %3660 = vmatpush.bf16.msra.mxu0 %v2406
    %3661 = vmatpush.bf16.msra.mxu0 %v2398
    %3662 = vmatpush.bf16.msra.mxu0 %v2390
    %3663 = vmatpush.bf16.msra.mxu0 %v2382
    %3664 = vmatpush.bf16.msra.mxu0 %v2374
    %3665 = vmatmul.bf16.gmra.mxu0 %v107
    %v3666 = vpop.f32.mrf.mxu0
    %v3667 = vadd.f32 %v3654, %v3666
    %v3668 = vpop.f32.mrf.mxu0
    %3669 = vdwg.mxu0
    %3670 = vmatpush.bf16.msra.mxu0 %v2494
    %3671 = vmatpush.bf16.msra.mxu0 %v2486
    %3672 = vmatpush.bf16.msra.mxu0 %v2478
    %3673 = vmatpush.bf16.msra.mxu0 %v2470
    %3674 = vmatpush.bf16.msra.mxu0 %v2462
    %3675 = vmatpush.bf16.msra.mxu0 %v2454
    %3676 = vmatpush.bf16.msra.mxu0 %v2446
    %3677 = vmatpush.bf16.msra.mxu0 %v2438
    %3678 = vmatmul.bf16.gmra.mxu0 %v108
    %v3679 = vpop.f32.mrf.mxu0
    %v3680 = vadd.f32 %v3667, %v3679
    %v3681 = vpop.f32.mrf.mxu0
    %3682 = vdwg.mxu0
    %3683 = vmatpush.bf16.msra.mxu0 %v2558
    %3684 = vmatpush.bf16.msra.mxu0 %v2550
    %3685 = vmatpush.bf16.msra.mxu0 %v2542
    %3686 = vmatpush.bf16.msra.mxu0 %v2534
    %3687 = vmatpush.bf16.msra.mxu0 %v2526
    %3688 = vmatpush.bf16.msra.mxu0 %v2518
    %3689 = vmatpush.bf16.msra.mxu0 %v2510
    %3690 = vmatpush.bf16.msra.mxu0 %v2502
    %3691 = vmatmul.bf16.gmra.mxu0 %v109
    %v3692 = vpop.f32.mrf.mxu0
    %v3693 = vadd.f32 %v3680, %v3692
    %v3694 = vpop.f32.mrf.mxu0
    %3695 = vdwg.mxu0
    %3696 = vmatpush.bf16.msra.mxu0 %v2622
    %3697 = vmatpush.bf16.msra.mxu0 %v2614
    %3698 = vmatpush.bf16.msra.mxu0 %v2606
    %3699 = vmatpush.bf16.msra.mxu0 %v2598
    %3700 = vmatpush.bf16.msra.mxu0 %v2590
    %3701 = vmatpush.bf16.msra.mxu0 %v2582
    %3702 = vmatpush.bf16.msra.mxu0 %v2574
    %3703 = vmatpush.bf16.msra.mxu0 %v2566
    %3704 = vmatmul.bf16.gmra.mxu0 %v110
    %v3705 = vpop.f32.mrf.mxu0
    %v3706 = vadd.f32 %v3693, %v3705
    %v3707 = vpop.f32.mrf.mxu0
    %3708 = vdwg.mxu0
    %3709 = vmatpush.bf16.msra.mxu0 %v2686
    %3710 = vmatpush.bf16.msra.mxu0 %v2678
    %3711 = vmatpush.bf16.msra.mxu0 %v2670
    %3712 = vmatpush.bf16.msra.mxu0 %v2662
    %3713 = vmatpush.bf16.msra.mxu0 %v2654
    %3714 = vmatpush.bf16.msra.mxu0 %v2646
    %3715 = vmatpush.bf16.msra.mxu0 %v2638
    %3716 = vmatpush.bf16.msra.mxu0 %v2630
    %3717 = vmatmul.bf16.gmra.mxu0 %v111
    %v3718 = vpop.f32.mrf.mxu0
    %v3719 = vadd.f32 %v3706, %v3718
    %v3720 = vpop.f32.mrf.mxu0
    %3721 = vdwg.mxu0
    %3722 = vmatpush.bf16.msra.mxu0 %v2239
    %3723 = vmatpush.bf16.msra.mxu0 %v2231
    %3724 = vmatpush.bf16.msra.mxu0 %v2223
    %3725 = vmatpush.bf16.msra.mxu0 %v2215
    %3726 = vmatpush.bf16.msra.mxu0 %v2207
    %3727 = vmatpush.bf16.msra.mxu0 %v2199
    %3728 = vmatpush.bf16.msra.mxu0 %v2191
    %3729 = vmatpush.bf16.msra.mxu0 %v2183
    %3730 = vmatmul.bf16.gmra.mxu0 %v104
    %v3731 = vpop.f32.mrf.mxu0
    %v3732 = vadd.f32 %v631, %v3731
    %v3733 = vpop.f32.mrf.mxu0
    %3734 = vdwg.mxu0
    %3735 = vmatpush.bf16.msra.mxu0 %v2303
    %3736 = vmatpush.bf16.msra.mxu0 %v2295
    %3737 = vmatpush.bf16.msra.mxu0 %v2287
    %3738 = vmatpush.bf16.msra.mxu0 %v2279
    %3739 = vmatpush.bf16.msra.mxu0 %v2271
    %3740 = vmatpush.bf16.msra.mxu0 %v2263
    %3741 = vmatpush.bf16.msra.mxu0 %v2255
    %3742 = vmatpush.bf16.msra.mxu0 %v2247
    %3743 = vmatmul.bf16.gmra.mxu0 %v105
    %v3744 = vpop.f32.mrf.mxu0
    %v3745 = vadd.f32 %v3732, %v3744
    %v3746 = vpop.f32.mrf.mxu0
    %3747 = vdwg.mxu0
    %3748 = vmatpush.bf16.msra.mxu0 %v2367
    %3749 = vmatpush.bf16.msra.mxu0 %v2359
    %3750 = vmatpush.bf16.msra.mxu0 %v2351
    %3751 = vmatpush.bf16.msra.mxu0 %v2343
    %3752 = vmatpush.bf16.msra.mxu0 %v2335
    %3753 = vmatpush.bf16.msra.mxu0 %v2327
    %3754 = vmatpush.bf16.msra.mxu0 %v2319
    %3755 = vmatpush.bf16.msra.mxu0 %v2311
    %3756 = vmatmul.bf16.gmra.mxu0 %v106
    %v3757 = vpop.f32.mrf.mxu0
    %v3758 = vadd.f32 %v3745, %v3757
    %v3759 = vpop.f32.mrf.mxu0
    %3760 = vdwg.mxu0
    %3761 = vmatpush.bf16.msra.mxu0 %v2431
    %3762 = vmatpush.bf16.msra.mxu0 %v2423
    %3763 = vmatpush.bf16.msra.mxu0 %v2415
    %3764 = vmatpush.bf16.msra.mxu0 %v2407
    %3765 = vmatpush.bf16.msra.mxu0 %v2399
    %3766 = vmatpush.bf16.msra.mxu0 %v2391
    %3767 = vmatpush.bf16.msra.mxu0 %v2383
    %3768 = vmatpush.bf16.msra.mxu0 %v2375
    %3769 = vmatmul.bf16.gmra.mxu0 %v107
    %v3770 = vpop.f32.mrf.mxu0
    %v3771 = vadd.f32 %v3758, %v3770
    %v3772 = vpop.f32.mrf.mxu0
    %3773 = vdwg.mxu0
    %3774 = vmatpush.bf16.msra.mxu0 %v2495
    %3775 = vmatpush.bf16.msra.mxu0 %v2487
    %3776 = vmatpush.bf16.msra.mxu0 %v2479
    %3777 = vmatpush.bf16.msra.mxu0 %v2471
    %3778 = vmatpush.bf16.msra.mxu0 %v2463
    %3779 = vmatpush.bf16.msra.mxu0 %v2455
    %3780 = vmatpush.bf16.msra.mxu0 %v2447
    %3781 = vmatpush.bf16.msra.mxu0 %v2439
    %3782 = vmatmul.bf16.gmra.mxu0 %v108
    %v3783 = vpop.f32.mrf.mxu0
    %v3784 = vadd.f32 %v3771, %v3783
    %v3785 = vpop.f32.mrf.mxu0
    %3786 = vdwg.mxu0
    %3787 = vmatpush.bf16.msra.mxu0 %v2559
    %3788 = vmatpush.bf16.msra.mxu0 %v2551
    %3789 = vmatpush.bf16.msra.mxu0 %v2543
    %3790 = vmatpush.bf16.msra.mxu0 %v2535
    %3791 = vmatpush.bf16.msra.mxu0 %v2527
    %3792 = vmatpush.bf16.msra.mxu0 %v2519
    %3793 = vmatpush.bf16.msra.mxu0 %v2511
    %3794 = vmatpush.bf16.msra.mxu0 %v2503
    %3795 = vmatmul.bf16.gmra.mxu0 %v109
    %v3796 = vpop.f32.mrf.mxu0
    %v3797 = vadd.f32 %v3784, %v3796
    %v3798 = vpop.f32.mrf.mxu0
    %3799 = vdwg.mxu0
    %3800 = vmatpush.bf16.msra.mxu0 %v2623
    %3801 = vmatpush.bf16.msra.mxu0 %v2615
    %3802 = vmatpush.bf16.msra.mxu0 %v2607
    %3803 = vmatpush.bf16.msra.mxu0 %v2599
    %3804 = vmatpush.bf16.msra.mxu0 %v2591
    %3805 = vmatpush.bf16.msra.mxu0 %v2583
    %3806 = vmatpush.bf16.msra.mxu0 %v2575
    %3807 = vmatpush.bf16.msra.mxu0 %v2567
    %3808 = vmatmul.bf16.gmra.mxu0 %v110
    %v3809 = vpop.f32.mrf.mxu0
    %v3810 = vadd.f32 %v3797, %v3809
    %v3811 = vpop.f32.mrf.mxu0
    %3812 = vdwg.mxu0
    %3813 = vmatpush.bf16.msra.mxu0 %v2687
    %3814 = vmatpush.bf16.msra.mxu0 %v2679
    %3815 = vmatpush.bf16.msra.mxu0 %v2671
    %3816 = vmatpush.bf16.msra.mxu0 %v2663
    %3817 = vmatpush.bf16.msra.mxu0 %v2655
    %3818 = vmatpush.bf16.msra.mxu0 %v2647
    %3819 = vmatpush.bf16.msra.mxu0 %v2639
    %3820 = vmatpush.bf16.msra.mxu0 %v2631
    %3821 = vmatmul.bf16.gmra.mxu0 %v111
    %v3822 = vpop.f32.mrf.mxu0
    %v3823 = vadd.f32 %v3810, %v3822
    %v3824 = vpop.f32.mrf.mxu0
    %3825 = vdwg.mxu0
    %3826 = vmatpush.bf16.msra.mxu0 %v2240
    %3827 = vmatpush.bf16.msra.mxu0 %v2232
    %3828 = vmatpush.bf16.msra.mxu0 %v2224
    %3829 = vmatpush.bf16.msra.mxu0 %v2216
    %3830 = vmatpush.bf16.msra.mxu0 %v2208
    %3831 = vmatpush.bf16.msra.mxu0 %v2200
    %3832 = vmatpush.bf16.msra.mxu0 %v2192
    %3833 = vmatpush.bf16.msra.mxu0 %v2184
    %3834 = vmatmul.bf16.gmra.mxu0 %v104
    %v3835 = vpop.f32.mrf.mxu0
    %v3836 = vadd.f32 %v632, %v3835
    %v3837 = vpop.f32.mrf.mxu0
    %3838 = vdwg.mxu0
    %3839 = vmatpush.bf16.msra.mxu0 %v2304
    %3840 = vmatpush.bf16.msra.mxu0 %v2296
    %3841 = vmatpush.bf16.msra.mxu0 %v2288
    %3842 = vmatpush.bf16.msra.mxu0 %v2280
    %3843 = vmatpush.bf16.msra.mxu0 %v2272
    %3844 = vmatpush.bf16.msra.mxu0 %v2264
    %3845 = vmatpush.bf16.msra.mxu0 %v2256
    %3846 = vmatpush.bf16.msra.mxu0 %v2248
    %3847 = vmatmul.bf16.gmra.mxu0 %v105
    %v3848 = vpop.f32.mrf.mxu0
    %v3849 = vadd.f32 %v3836, %v3848
    %v3850 = vpop.f32.mrf.mxu0
    %3851 = vdwg.mxu0
    %3852 = vmatpush.bf16.msra.mxu0 %v2368
    %3853 = vmatpush.bf16.msra.mxu0 %v2360
    %3854 = vmatpush.bf16.msra.mxu0 %v2352
    %3855 = vmatpush.bf16.msra.mxu0 %v2344
    %3856 = vmatpush.bf16.msra.mxu0 %v2336
    %3857 = vmatpush.bf16.msra.mxu0 %v2328
    %3858 = vmatpush.bf16.msra.mxu0 %v2320
    %3859 = vmatpush.bf16.msra.mxu0 %v2312
    %3860 = vmatmul.bf16.gmra.mxu0 %v106
    %v3861 = vpop.f32.mrf.mxu0
    %v3862 = vadd.f32 %v3849, %v3861
    %v3863 = vpop.f32.mrf.mxu0
    %3864 = vdwg.mxu0
    %3865 = vmatpush.bf16.msra.mxu0 %v2432
    %3866 = vmatpush.bf16.msra.mxu0 %v2424
    %3867 = vmatpush.bf16.msra.mxu0 %v2416
    %3868 = vmatpush.bf16.msra.mxu0 %v2408
    %3869 = vmatpush.bf16.msra.mxu0 %v2400
    %3870 = vmatpush.bf16.msra.mxu0 %v2392
    %3871 = vmatpush.bf16.msra.mxu0 %v2384
    %3872 = vmatpush.bf16.msra.mxu0 %v2376
    %3873 = vmatmul.bf16.gmra.mxu0 %v107
    %v3874 = vpop.f32.mrf.mxu0
    %v3875 = vadd.f32 %v3862, %v3874
    %v3876 = vpop.f32.mrf.mxu0
    %3877 = vdwg.mxu0
    %3878 = vmatpush.bf16.msra.mxu0 %v2496
    %3879 = vmatpush.bf16.msra.mxu0 %v2488
    %3880 = vmatpush.bf16.msra.mxu0 %v2480
    %3881 = vmatpush.bf16.msra.mxu0 %v2472
    %3882 = vmatpush.bf16.msra.mxu0 %v2464
    %3883 = vmatpush.bf16.msra.mxu0 %v2456
    %3884 = vmatpush.bf16.msra.mxu0 %v2448
    %3885 = vmatpush.bf16.msra.mxu0 %v2440
    %3886 = vmatmul.bf16.gmra.mxu0 %v108
    %v3887 = vpop.f32.mrf.mxu0
    %v3888 = vadd.f32 %v3875, %v3887
    %v3889 = vpop.f32.mrf.mxu0
    %3890 = vdwg.mxu0
    %3891 = vmatpush.bf16.msra.mxu0 %v2560
    %3892 = vmatpush.bf16.msra.mxu0 %v2552
    %3893 = vmatpush.bf16.msra.mxu0 %v2544
    %3894 = vmatpush.bf16.msra.mxu0 %v2536
    %3895 = vmatpush.bf16.msra.mxu0 %v2528
    %3896 = vmatpush.bf16.msra.mxu0 %v2520
    %3897 = vmatpush.bf16.msra.mxu0 %v2512
    %3898 = vmatpush.bf16.msra.mxu0 %v2504
    %3899 = vmatmul.bf16.gmra.mxu0 %v109
    %v3900 = vpop.f32.mrf.mxu0
    %v3901 = vadd.f32 %v3888, %v3900
    %v3902 = vpop.f32.mrf.mxu0
    %3903 = vdwg.mxu0
    %3904 = vmatpush.bf16.msra.mxu0 %v2624
    %3905 = vmatpush.bf16.msra.mxu0 %v2616
    %3906 = vmatpush.bf16.msra.mxu0 %v2608
    %3907 = vmatpush.bf16.msra.mxu0 %v2600
    %3908 = vmatpush.bf16.msra.mxu0 %v2592
    %3909 = vmatpush.bf16.msra.mxu0 %v2584
    %3910 = vmatpush.bf16.msra.mxu0 %v2576
    %3911 = vmatpush.bf16.msra.mxu0 %v2568
    %3912 = vmatmul.bf16.gmra.mxu0 %v110
    %v3913 = vpop.f32.mrf.mxu0
    %v3914 = vadd.f32 %v3901, %v3913
    %v3915 = vpop.f32.mrf.mxu0
    %3916 = vdwg.mxu0
    %3917 = vmatpush.bf16.msra.mxu0 %v2688
    %3918 = vmatpush.bf16.msra.mxu0 %v2680
    %3919 = vmatpush.bf16.msra.mxu0 %v2672
    %3920 = vmatpush.bf16.msra.mxu0 %v2664
    %3921 = vmatpush.bf16.msra.mxu0 %v2656
    %3922 = vmatpush.bf16.msra.mxu0 %v2648
    %3923 = vmatpush.bf16.msra.mxu0 %v2640
    %3924 = vmatpush.bf16.msra.mxu0 %v2632
    %3925 = vmatmul.bf16.gmra.mxu0 %v111
    %v3926 = vpop.f32.mrf.mxu0
    %v3927 = vadd.f32 %v3914, %v3926
    %v3928 = vpop.f32.mrf.mxu0
    %3929 = vdwg.mxu0
    %3930 = vmatpush.bf16.msra.mxu0 %v2241
    %3931 = vmatpush.bf16.msra.mxu0 %v2233
    %3932 = vmatpush.bf16.msra.mxu0 %v2225
    %3933 = vmatpush.bf16.msra.mxu0 %v2217
    %3934 = vmatpush.bf16.msra.mxu0 %v2209
    %3935 = vmatpush.bf16.msra.mxu0 %v2201
    %3936 = vmatpush.bf16.msra.mxu0 %v2193
    %3937 = vmatpush.bf16.msra.mxu0 %v2185
    %3938 = vmatmul.bf16.gmra.mxu0 %v104
    %v3939 = vpop.f32.mrf.mxu0
    %v3940 = vadd.f32 %v633, %v3939
    %v3941 = vpop.f32.mrf.mxu0
    %3942 = vdwg.mxu0
    %3943 = vmatpush.bf16.msra.mxu0 %v2305
    %3944 = vmatpush.bf16.msra.mxu0 %v2297
    %3945 = vmatpush.bf16.msra.mxu0 %v2289
    %3946 = vmatpush.bf16.msra.mxu0 %v2281
    %3947 = vmatpush.bf16.msra.mxu0 %v2273
    %3948 = vmatpush.bf16.msra.mxu0 %v2265
    %3949 = vmatpush.bf16.msra.mxu0 %v2257
    %3950 = vmatpush.bf16.msra.mxu0 %v2249
    %3951 = vmatmul.bf16.gmra.mxu0 %v105
    %v3952 = vpop.f32.mrf.mxu0
    %v3953 = vadd.f32 %v3940, %v3952
    %v3954 = vpop.f32.mrf.mxu0
    %3955 = vdwg.mxu0
    %3956 = vmatpush.bf16.msra.mxu0 %v2369
    %3957 = vmatpush.bf16.msra.mxu0 %v2361
    %3958 = vmatpush.bf16.msra.mxu0 %v2353
    %3959 = vmatpush.bf16.msra.mxu0 %v2345
    %3960 = vmatpush.bf16.msra.mxu0 %v2337
    %3961 = vmatpush.bf16.msra.mxu0 %v2329
    %3962 = vmatpush.bf16.msra.mxu0 %v2321
    %3963 = vmatpush.bf16.msra.mxu0 %v2313
    %3964 = vmatmul.bf16.gmra.mxu0 %v106
    %v3965 = vpop.f32.mrf.mxu0
    %v3966 = vadd.f32 %v3953, %v3965
    %v3967 = vpop.f32.mrf.mxu0
    %3968 = vdwg.mxu0
    %3969 = vmatpush.bf16.msra.mxu0 %v2433
    %3970 = vmatpush.bf16.msra.mxu0 %v2425
    %3971 = vmatpush.bf16.msra.mxu0 %v2417
    %3972 = vmatpush.bf16.msra.mxu0 %v2409
    %3973 = vmatpush.bf16.msra.mxu0 %v2401
    %3974 = vmatpush.bf16.msra.mxu0 %v2393
    %3975 = vmatpush.bf16.msra.mxu0 %v2385
    %3976 = vmatpush.bf16.msra.mxu0 %v2377
    %3977 = vmatmul.bf16.gmra.mxu0 %v107
    %v3978 = vpop.f32.mrf.mxu0
    %v3979 = vadd.f32 %v3966, %v3978
    %v3980 = vpop.f32.mrf.mxu0
    %3981 = vdwg.mxu0
    %3982 = vmatpush.bf16.msra.mxu0 %v2497
    %3983 = vmatpush.bf16.msra.mxu0 %v2489
    %3984 = vmatpush.bf16.msra.mxu0 %v2481
    %3985 = vmatpush.bf16.msra.mxu0 %v2473
    %3986 = vmatpush.bf16.msra.mxu0 %v2465
    %3987 = vmatpush.bf16.msra.mxu0 %v2457
    %3988 = vmatpush.bf16.msra.mxu0 %v2449
    %3989 = vmatpush.bf16.msra.mxu0 %v2441
    %3990 = vmatmul.bf16.gmra.mxu0 %v108
    %v3991 = vpop.f32.mrf.mxu0
    %v3992 = vadd.f32 %v3979, %v3991
    %v3993 = vpop.f32.mrf.mxu0
    %3994 = vdwg.mxu0
    %3995 = vmatpush.bf16.msra.mxu0 %v2561
    %3996 = vmatpush.bf16.msra.mxu0 %v2553
    %3997 = vmatpush.bf16.msra.mxu0 %v2545
    %3998 = vmatpush.bf16.msra.mxu0 %v2537
    %3999 = vmatpush.bf16.msra.mxu0 %v2529
    %4000 = vmatpush.bf16.msra.mxu0 %v2521
    %4001 = vmatpush.bf16.msra.mxu0 %v2513
    %4002 = vmatpush.bf16.msra.mxu0 %v2505
    %4003 = vmatmul.bf16.gmra.mxu0 %v109
    %v4004 = vpop.f32.mrf.mxu0
    %v4005 = vadd.f32 %v3992, %v4004
    %v4006 = vpop.f32.mrf.mxu0
    %4007 = vdwg.mxu0
    %4008 = vmatpush.bf16.msra.mxu0 %v2625
    %4009 = vmatpush.bf16.msra.mxu0 %v2617
    %4010 = vmatpush.bf16.msra.mxu0 %v2609
    %4011 = vmatpush.bf16.msra.mxu0 %v2601
    %4012 = vmatpush.bf16.msra.mxu0 %v2593
    %4013 = vmatpush.bf16.msra.mxu0 %v2585
    %4014 = vmatpush.bf16.msra.mxu0 %v2577
    %4015 = vmatpush.bf16.msra.mxu0 %v2569
    %4016 = vmatmul.bf16.gmra.mxu0 %v110
    %v4017 = vpop.f32.mrf.mxu0
    %v4018 = vadd.f32 %v4005, %v4017
    %v4019 = vpop.f32.mrf.mxu0
    %4020 = vdwg.mxu0
    %4021 = vmatpush.bf16.msra.mxu0 %v2689
    %4022 = vmatpush.bf16.msra.mxu0 %v2681
    %4023 = vmatpush.bf16.msra.mxu0 %v2673
    %4024 = vmatpush.bf16.msra.mxu0 %v2665
    %4025 = vmatpush.bf16.msra.mxu0 %v2657
    %4026 = vmatpush.bf16.msra.mxu0 %v2649
    %4027 = vmatpush.bf16.msra.mxu0 %v2641
    %4028 = vmatpush.bf16.msra.mxu0 %v2633
    %4029 = vmatmul.bf16.gmra.mxu0 %v111
    %v4030 = vpop.f32.mrf.mxu0
    %v4031 = vadd.f32 %v4018, %v4030
    %v4032 = vpop.f32.mrf.mxu0
    %4033 = vdwg.mxu0
    %v4034 = vmax.f32 %v3303, 0.0
    %v4035 = vmax.f32 %v3407, 0.0
    %v4036 = vmax.f32 %v3511, 0.0
    %v4037 = vmax.f32 %v3615, 0.0
    %v4038 = vmax.f32 %v3719, 0.0
    %v4039 = vmax.f32 %v3823, 0.0
    %v4040 = vmax.f32 %v3927, 0.0
    %v4041 = vmax.f32 %v4031, 0.0
    %v4042 = vld [vmem:[%s4] sm:$0xff]
    %v4043 = vsub.f32 0.0, %v4042
    %v4044 = vmul.f32 %v4043, 1.442695
    %v4045 = vpow.pop %v4044
    %v4046 = vadd.f32 %v4045, 1.0
    %v4047 = vrcp.pop %v4046
    %v4048 = vmul.f32 %v4046, %v4047
    %v4049 = vsub.f32 1.0, %v4048
    %v4050 = vmul.f32 %v4047, %v4049
    %v4051 = vadd.f32 %v4047, %v4050
    %vm4052 = vweird.f32 %v4046
    %vm4053 = vweird.f32 %v4047
    %vm4054 = vmor %vm4052, %vm4053
    %v4055 = vsel %vm4054, %v4047, %v4051
    %v4056 = vand.u32 2147483647, %v4046
    %vm4057 = vcmp.eq.f32.partialorder %v4056, 8.507059e+37
    %v4058 = vand.u32 %v4046, 2147483648
    %v4059 = vor.u32 1.1754944e-38, %v4058
    %v4060 = vsel %vm4057, %v4059, %v4055
    %v4061 = vmul.f32 1.0, %v4060
    %v4062 = vmul.f32 %v4061, 1.2
    %v4063 = vadd.f32 %v4062, -0.1
    %v4064 = vmax.f32 %v4063, 0.0
    %v4065 = vmin.f32 %v4064, 1.0
    %v4067 = vperm.slane %v4065, 0
    %v4068 = vperm.slane %v4065, 1
    %v4069 = vperm.slane %v4065, 2
    %v4070 = vperm.slane %v4065, 3
    %v4071 = vperm.slane %v4065, 4
    %v4072 = vperm.slane %v4065, 5
    %v4073 = vperm.slane %v4065, 6
    %v4074 = vperm.slane %v4065, 7
    %v4083 = vmul.f32 %v4034, %v4067
    %v4084 = vmul.f32 %v4035, %v4068
    %v4085 = vmul.f32 %v4036, %v4069
    %v4086 = vmul.f32 %v4037, %v4070
    %v4087 = vmul.f32 %v4038, %v4071
    %v4088 = vmul.f32 %v4039, %v4072
    %v4089 = vmul.f32 %v4040, %v4073
    %v4090 = vmul.f32 %v4041, %v4074
    %v4091 = vpack.c.bf16 %v4083, %v4083
    %v4092 = vpack.c.bf16 %v4084, %v4084
    %v4093 = vpack.c.bf16 %v4085, %v4085
    %v4094 = vpack.c.bf16 %v4086, %v4086
    %v4095 = vpack.c.bf16 %v4087, %v4087
    %v4096 = vpack.c.bf16 %v4088, %v4088
    %v4097 = vpack.c.bf16 %v4089, %v4089
    %v4098 = vpack.c.bf16 %v4090, %v4090
    %v4099 = vld [vmem:[%s5] sm:$0xf]
    %v4100 = vld [vmem:[%s5 + $0x4] sm:$0xf]
    %v4101 = vld [vmem:[%s5 + $0x8] sm:$0xf]
    %v4102 = vld [vmem:[%s5 + $0xc] sm:$0xf]
    %v4103 = vld [vmem:[%s5 + $0x10] sm:$0xf]
    %v4104 = vld [vmem:[%s5 + $0x14] sm:$0xf]
    %v4105 = vld [vmem:[%s5 + $0x18] sm:$0xf]
    %v4106 = vld [vmem:[%s5 + $0x1c] sm:$0xf]
    %v4107 = vld [vmem:[%s5 + $0x20] sm:$0xf]
    %v4108 = vld [vmem:[%s5 + $0x24] sm:$0xf]
    %v4109 = vld [vmem:[%s5 + $0x28] sm:$0xf]
    %v4110 = vld [vmem:[%s5 + $0x2c] sm:$0xf]
    %v4111 = vld [vmem:[%s5 + $0x30] sm:$0xf]
    %v4112 = vld [vmem:[%s5 + $0x34] sm:$0xf]
    %v4113 = vld [vmem:[%s5 + $0x38] sm:$0xf]
    %v4114 = vld [vmem:[%s5 + $0x3c] sm:$0xf]
    %v4115 = vld [vmem:[%s5 + $0x40] sm:$0xf]
    %v4116 = vld [vmem:[%s5 + $0x44] sm:$0xf]
    %v4117 = vld [vmem:[%s5 + $0x48] sm:$0xf]
    %v4118 = vld [vmem:[%s5 + $0x4c] sm:$0xf]
    %v4119 = vld [vmem:[%s5 + $0x50] sm:$0xf]
    %v4120 = vld [vmem:[%s5 + $0x54] sm:$0xf]
    %v4121 = vld [vmem:[%s5 + $0x58] sm:$0xf]
    %v4122 = vld [vmem:[%s5 + $0x5c] sm:$0xf]
    %v4123 = vld [vmem:[%s5 + $0x60] sm:$0xf]
    %v4124 = vld [vmem:[%s5 + $0x64] sm:$0xf]
    %v4125 = vld [vmem:[%s5 + $0x68] sm:$0xf]
    %v4126 = vld [vmem:[%s5 + $0x6c] sm:$0xf]
    %v4127 = vld [vmem:[%s5 + $0x70] sm:$0xf]
    %v4128 = vld [vmem:[%s5 + $0x74] sm:$0xf]
    %v4129 = vld [vmem:[%s5 + $0x78] sm:$0xf]
    %v4130 = vld [vmem:[%s5 + $0x7c] sm:$0xf]
    %v4131 = vld [vmem:[%s5 + $0x80] sm:$0xf]
    %v4132 = vld [vmem:[%s5 + $0x84] sm:$0xf]
    %v4133 = vld [vmem:[%s5 + $0x88] sm:$0xf]
    %v4134 = vld [vmem:[%s5 + $0x8c] sm:$0xf]
    %v4135 = vld [vmem:[%s5 + $0x90] sm:$0xf]
    %v4136 = vld [vmem:[%s5 + $0x94] sm:$0xf]
    %v4137 = vld [vmem:[%s5 + $0x98] sm:$0xf]
    %v4138 = vld [vmem:[%s5 + $0x9c] sm:$0xf]
    %v4139 = vld [vmem:[%s5 + $0xa0] sm:$0xf]
    %v4140 = vld [vmem:[%s5 + $0xa4] sm:$0xf]
    %v4141 = vld [vmem:[%s5 + $0xa8] sm:$0xf]
    %v4142 = vld [vmem:[%s5 + $0xac] sm:$0xf]
    %v4143 = vld [vmem:[%s5 + $0xb0] sm:$0xf]
    %v4144 = vld [vmem:[%s5 + $0xb4] sm:$0xf]
    %v4145 = vld [vmem:[%s5 + $0xb8] sm:$0xf]
    %v4146 = vld [vmem:[%s5 + $0xbc] sm:$0xf]
    %v4147 = vld [vmem:[%s5 + $0xc0] sm:$0xf]
    %v4148 = vld [vmem:[%s5 + $0xc4] sm:$0xf]
    %v4149 = vld [vmem:[%s5 + $0xc8] sm:$0xf]
    %v4150 = vld [vmem:[%s5 + $0xcc] sm:$0xf]
    %v4151 = vld [vmem:[%s5 + $0xd0] sm:$0xf]
    %v4152 = vld [vmem:[%s5 + $0xd4] sm:$0xf]
    %v4153 = vld [vmem:[%s5 + $0xd8] sm:$0xf]
    %v4154 = vld [vmem:[%s5 + $0xdc] sm:$0xf]
    %v4155 = vld [vmem:[%s5 + $0xe0] sm:$0xf]
    %v4156 = vld [vmem:[%s5 + $0xe4] sm:$0xf]
    %v4157 = vld [vmem:[%s5 + $0xe8] sm:$0xf]
    %v4158 = vld [vmem:[%s5 + $0xec] sm:$0xf]
    %v4159 = vld [vmem:[%s5 + $0xf0] sm:$0xf]
    %v4160 = vld [vmem:[%s5 + $0xf4] sm:$0xf]
    %v4161 = vld [vmem:[%s5 + $0xf8] sm:$0xf]
    %v4162 = vld [vmem:[%s5 + $0xfc] sm:$0xf]
    %v4163 = vld [vmem:[%s5 + $0x100] sm:$0xf]
    %v4164 = vld [vmem:[%s5 + $0x104] sm:$0xf]
    %v4165 = vld [vmem:[%s5 + $0x108] sm:$0xf]
    %v4166 = vld [vmem:[%s5 + $0x10c] sm:$0xf]
    %v4167 = vld [vmem:[%s5 + $0x110] sm:$0xf]
    %v4168 = vld [vmem:[%s5 + $0x114] sm:$0xf]
    %v4169 = vld [vmem:[%s5 + $0x118] sm:$0xf]
    %v4170 = vld [vmem:[%s5 + $0x11c] sm:$0xf]
    %v4171 = vld [vmem:[%s5 + $0x120] sm:$0xf]
    %v4172 = vld [vmem:[%s5 + $0x124] sm:$0xf]
    %v4173 = vld [vmem:[%s5 + $0x128] sm:$0xf]
    %v4174 = vld [vmem:[%s5 + $0x12c] sm:$0xf]
    %v4175 = vld [vmem:[%s5 + $0x130] sm:$0xf]
    %v4176 = vld [vmem:[%s5 + $0x134] sm:$0xf]
    %v4177 = vld [vmem:[%s5 + $0x138] sm:$0xf]
    %v4178 = vld [vmem:[%s5 + $0x13c] sm:$0xf]
    %v4179 = vld [vmem:[%s5 + $0x140] sm:$0xf]
    %v4180 = vld [vmem:[%s5 + $0x144] sm:$0xf]
    %v4181 = vld [vmem:[%s5 + $0x148] sm:$0xf]
    %v4182 = vld [vmem:[%s5 + $0x14c] sm:$0xf]
    %v4183 = vld [vmem:[%s5 + $0x150] sm:$0xf]
    %v4184 = vld [vmem:[%s5 + $0x154] sm:$0xf]
    %v4185 = vld [vmem:[%s5 + $0x158] sm:$0xf]
    %v4186 = vld [vmem:[%s5 + $0x15c] sm:$0xf]
    %v4187 = vld [vmem:[%s5 + $0x160] sm:$0xf]
    %v4188 = vld [vmem:[%s5 + $0x164] sm:$0xf]
    %v4189 = vld [vmem:[%s5 + $0x168] sm:$0xf]
    %v4190 = vld [vmem:[%s5 + $0x16c] sm:$0xf]
    %v4191 = vld [vmem:[%s5 + $0x170] sm:$0xf]
    %v4192 = vld [vmem:[%s5 + $0x174] sm:$0xf]
    %v4193 = vld [vmem:[%s5 + $0x178] sm:$0xf]
    %v4194 = vld [vmem:[%s5 + $0x17c] sm:$0xf]
    %v4195 = vld [vmem:[%s5 + $0x180] sm:$0xf]
    %v4196 = vld [vmem:[%s5 + $0x184] sm:$0xf]
    %v4197 = vld [vmem:[%s5 + $0x188] sm:$0xf]
    %v4198 = vld [vmem:[%s5 + $0x18c] sm:$0xf]
    %v4199 = vld [vmem:[%s5 + $0x190] sm:$0xf]
    %v4200 = vld [vmem:[%s5 + $0x194] sm:$0xf]
    %v4201 = vld [vmem:[%s5 + $0x198] sm:$0xf]
    %v4202 = vld [vmem:[%s5 + $0x19c] sm:$0xf]
    %v4203 = vld [vmem:[%s5 + $0x1a0] sm:$0xf]
    %v4204 = vld [vmem:[%s5 + $0x1a4] sm:$0xf]
    %v4205 = vld [vmem:[%s5 + $0x1a8] sm:$0xf]
    %v4206 = vld [vmem:[%s5 + $0x1ac] sm:$0xf]
    %v4207 = vld [vmem:[%s5 + $0x1b0] sm:$0xf]
    %v4208 = vld [vmem:[%s5 + $0x1b4] sm:$0xf]
    %v4209 = vld [vmem:[%s5 + $0x1b8] sm:$0xf]
    %v4210 = vld [vmem:[%s5 + $0x1bc] sm:$0xf]
    %v4211 = vld [vmem:[%s5 + $0x1c0] sm:$0xf]
    %v4212 = vld [vmem:[%s5 + $0x1c4] sm:$0xf]
    %v4213 = vld [vmem:[%s5 + $0x1c8] sm:$0xf]
    %v4214 = vld [vmem:[%s5 + $0x1cc] sm:$0xf]
    %v4215 = vld [vmem:[%s5 + $0x1d0] sm:$0xf]
    %v4216 = vld [vmem:[%s5 + $0x1d4] sm:$0xf]
    %v4217 = vld [vmem:[%s5 + $0x1d8] sm:$0xf]
    %v4218 = vld [vmem:[%s5 + $0x1dc] sm:$0xf]
    %v4219 = vld [vmem:[%s5 + $0x1e0] sm:$0xf]
    %v4220 = vld [vmem:[%s5 + $0x1e4] sm:$0xf]
    %v4221 = vld [vmem:[%s5 + $0x1e8] sm:$0xf]
    %v4222 = vld [vmem:[%s5 + $0x1ec] sm:$0xf]
    %v4223 = vld [vmem:[%s5 + $0x1f0] sm:$0xf]
    %v4224 = vld [vmem:[%s6] sm:$0x1]
    %v4226 = vperm.slane %v4224, 0
    %v4353 = vunpack.c.l.b16 %v4099
    %v4354 = vunpack.c.l.b16 %v4100
    %v4355 = vunpack.c.l.b16 %v4101
    %v4356 = vunpack.c.l.b16 %v4102
    %v4357 = vunpack.c.l.b16 %v4103
    %v4358 = vunpack.c.l.b16 %v4104
    %v4359 = vunpack.c.l.b16 %v4105
    %v4360 = vunpack.c.l.b16 %v4106
    %v4361 = vunpack.c.l.b16 %v4107
    %v4362 = vunpack.c.l.b16 %v4108
    %v4363 = vunpack.c.l.b16 %v4109
    %v4364 = vunpack.c.l.b16 %v4110
    %v4365 = vunpack.c.l.b16 %v4111
    %v4366 = vunpack.c.l.b16 %v4112
    %v4367 = vunpack.c.l.b16 %v4113
    %v4368 = vunpack.c.l.b16 %v4114
    %v4369 = vunpack.c.l.b16 %v4115
    %v4370 = vunpack.c.l.b16 %v4116
    %v4371 = vunpack.c.l.b16 %v4117
    %v4372 = vunpack.c.l.b16 %v4118
    %v4373 = vunpack.c.l.b16 %v4119
    %v4374 = vunpack.c.l.b16 %v4120
    %v4375 = vunpack.c.l.b16 %v4121
    %v4376 = vunpack.c.l.b16 %v4122
    %v4377 = vunpack.c.l.b16 %v4123
    %v4378 = vunpack.c.l.b16 %v4124
    %v4379 = vunpack.c.l.b16 %v4125
    %v4380 = vunpack.c.l.b16 %v4126
    %v4381 = vunpack.c.l.b16 %v4127
    %v4382 = vunpack.c.l.b16 %v4128
    %v4383 = vunpack.c.l.b16 %v4129
    %v4384 = vunpack.c.l.b16 %v4130
    %v4385 = vunpack.c.l.b16 %v4131
    %v4386 = vunpack.c.l.b16 %v4132
    %v4387 = vunpack.c.l.b16 %v4133
    %v4388 = vunpack.c.l.b16 %v4134
    %v4389 = vunpack.c.l.b16 %v4135
    %v4390 = vunpack.c.l.b16 %v4136
    %v4391 = vunpack.c.l.b16 %v4137
    %v4392 = vunpack.c.l.b16 %v4138
    %v4393 = vunpack.c.l.b16 %v4139
    %v4394 = vunpack.c.l.b16 %v4140
    %v4395 = vunpack.c.l.b16 %v4141
    %v4396 = vunpack.c.l.b16 %v4142
    %v4397 = vunpack.c.l.b16 %v4143
    %v4398 = vunpack.c.l.b16 %v4144
    %v4399 = vunpack.c.l.b16 %v4145
    %v4400 = vunpack.c.l.b16 %v4146
    %v4401 = vunpack.c.l.b16 %v4147
    %v4402 = vunpack.c.l.b16 %v4148
    %v4403 = vunpack.c.l.b16 %v4149
    %v4404 = vunpack.c.l.b16 %v4150
    %v4405 = vunpack.c.l.b16 %v4151
    %v4406 = vunpack.c.l.b16 %v4152
    %v4407 = vunpack.c.l.b16 %v4153
    %v4408 = vunpack.c.l.b16 %v4154
    %v4409 = vunpack.c.l.b16 %v4155
    %v4410 = vunpack.c.l.b16 %v4156
    %v4411 = vunpack.c.l.b16 %v4157
    %v4412 = vunpack.c.l.b16 %v4158
    %v4413 = vunpack.c.l.b16 %v4159
    %v4414 = vunpack.c.l.b16 %v4160
    %v4415 = vunpack.c.l.b16 %v4161
    %v4416 = vunpack.c.l.b16 %v4162
    %v4417 = vunpack.c.l.b16 %v4163
    %v4418 = vunpack.c.l.b16 %v4164
    %v4419 = vunpack.c.l.b16 %v4165
    %v4420 = vunpack.c.l.b16 %v4166
    %v4421 = vunpack.c.l.b16 %v4167
    %v4422 = vunpack.c.l.b16 %v4168
    %v4423 = vunpack.c.l.b16 %v4169
    %v4424 = vunpack.c.l.b16 %v4170
    %v4425 = vunpack.c.l.b16 %v4171
    %v4426 = vunpack.c.l.b16 %v4172
    %v4427 = vunpack.c.l.b16 %v4173
    %v4428 = vunpack.c.l.b16 %v4174
    %v4429 = vunpack.c.l.b16 %v4175
    %v4430 = vunpack.c.l.b16 %v4176
    %v4431 = vunpack.c.l.b16 %v4177
    %v4432 = vunpack.c.l.b16 %v4178
    %v4433 = vunpack.c.l.b16 %v4179
    %v4434 = vunpack.c.l.b16 %v4180
    %v4435 = vunpack.c.l.b16 %v4181
    %v4436 = vunpack.c.l.b16 %v4182
    %v4437 = vunpack.c.l.b16 %v4183
    %v4438 = vunpack.c.l.b16 %v4184
    %v4439 = vunpack.c.l.b16 %v4185
    %v4440 = vunpack.c.l.b16 %v4186
    %v4441 = vunpack.c.l.b16 %v4187
    %v4442 = vunpack.c.l.b16 %v4188
    %v4443 = vunpack.c.l.b16 %v4189
    %v4444 = vunpack.c.l.b16 %v4190
    %v4445 = vunpack.c.l.b16 %v4191
    %v4446 = vunpack.c.l.b16 %v4192
    %v4447 = vunpack.c.l.b16 %v4193
    %v4448 = vunpack.c.l.b16 %v4194
    %v4449 = vunpack.c.l.b16 %v4195
    %v4450 = vunpack.c.l.b16 %v4196
    %v4451 = vunpack.c.l.b16 %v4197
    %v4452 = vunpack.c.l.b16 %v4198
    %v4453 = vunpack.c.l.b16 %v4199
    %v4454 = vunpack.c.l.b16 %v4200
    %v4455 = vunpack.c.l.b16 %v4201
    %v4456 = vunpack.c.l.b16 %v4202
    %v4457 = vunpack.c.l.b16 %v4203
    %v4458 = vunpack.c.l.b16 %v4204
    %v4459 = vunpack.c.l.b16 %v4205
    %v4460 = vunpack.c.l.b16 %v4206
    %v4461 = vunpack.c.l.b16 %v4207
    %v4462 = vunpack.c.l.b16 %v4208
    %v4463 = vunpack.c.l.b16 %v4209
    %v4464 = vunpack.c.l.b16 %v4210
    %v4465 = vunpack.c.l.b16 %v4211
    %v4466 = vunpack.c.l.b16 %v4212
    %v4467 = vunpack.c.l.b16 %v4213
    %v4468 = vunpack.c.l.b16 %v4214
    %v4469 = vunpack.c.l.b16 %v4215
    %v4470 = vunpack.c.l.b16 %v4216
    %v4471 = vunpack.c.l.b16 %v4217
    %v4472 = vunpack.c.l.b16 %v4218
    %v4473 = vunpack.c.l.b16 %v4219
    %v4474 = vunpack.c.l.b16 %v4220
    %v4475 = vunpack.c.l.b16 %v4221
    %v4476 = vunpack.c.l.b16 %v4222
    %v4477 = vunpack.c.l.b16 %v4223
    %v4478 = vpack.c.b16 %v4354, %v4353
    %v4479 = vpack.c.b16 %v4356, %v4355
    %v4480 = vpack.c.b16 %v4358, %v4357
    %v4481 = vpack.c.b16 %v4360, %v4359
    %v4482 = vpack.c.b16 %v4362, %v4361
    %v4483 = vpack.c.b16 %v4364, %v4363
    %v4484 = vpack.c.b16 %v4366, %v4365
    %v4485 = vpack.c.b16 %v4368, %v4367
    %v4486 = vpack.c.b16 %v4370, %v4369
    %v4487 = vpack.c.b16 %v4372, %v4371
    %v4488 = vpack.c.b16 %v4374, %v4373
    %v4489 = vpack.c.b16 %v4376, %v4375
    %v4490 = vpack.c.b16 %v4378, %v4377
    %v4491 = vpack.c.b16 %v4380, %v4379
    %v4492 = vpack.c.b16 %v4382, %v4381
    %v4493 = vpack.c.b16 %v4384, %v4383
    %v4494 = vpack.c.b16 %v4386, %v4385
    %v4495 = vpack.c.b16 %v4388, %v4387
    %v4496 = vpack.c.b16 %v4390, %v4389
    %v4497 = vpack.c.b16 %v4392, %v4391
    %v4498 = vpack.c.b16 %v4394, %v4393
    %v4499 = vpack.c.b16 %v4396, %v4395
    %v4500 = vpack.c.b16 %v4398, %v4397
    %v4501 = vpack.c.b16 %v4400, %v4399
    %v4502 = vpack.c.b16 %v4402, %v4401
    %v4503 = vpack.c.b16 %v4404, %v4403
    %v4504 = vpack.c.b16 %v4406, %v4405
    %v4505 = vpack.c.b16 %v4408, %v4407
    %v4506 = vpack.c.b16 %v4410, %v4409
    %v4507 = vpack.c.b16 %v4412, %v4411
    %v4508 = vpack.c.b16 %v4414, %v4413
    %v4509 = vpack.c.b16 %v4416, %v4415
    %v4510 = vpack.c.b16 %v4418, %v4417
    %v4511 = vpack.c.b16 %v4420, %v4419
    %v4512 = vpack.c.b16 %v4422, %v4421
    %v4513 = vpack.c.b16 %v4424, %v4423
    %v4514 = vpack.c.b16 %v4426, %v4425
    %v4515 = vpack.c.b16 %v4428, %v4427
    %v4516 = vpack.c.b16 %v4430, %v4429
    %v4517 = vpack.c.b16 %v4432, %v4431
    %v4518 = vpack.c.b16 %v4434, %v4433
    %v4519 = vpack.c.b16 %v4436, %v4435
    %v4520 = vpack.c.b16 %v4438, %v4437
    %v4521 = vpack.c.b16 %v4440, %v4439
    %v4522 = vpack.c.b16 %v4442, %v4441
    %v4523 = vpack.c.b16 %v4444, %v4443
    %v4524 = vpack.c.b16 %v4446, %v4445
    %v4525 = vpack.c.b16 %v4448, %v4447
    %v4526 = vpack.c.b16 %v4450, %v4449
    %v4527 = vpack.c.b16 %v4452, %v4451
    %v4528 = vpack.c.b16 %v4454, %v4453
    %v4529 = vpack.c.b16 %v4456, %v4455
    %v4530 = vpack.c.b16 %v4458, %v4457
    %v4531 = vpack.c.b16 %v4460, %v4459
    %v4532 = vpack.c.b16 %v4462, %v4461
    %v4533 = vpack.c.b16 %v4464, %v4463
    %v4534 = vpack.c.b16 %v4466, %v4465
    %v4535 = vpack.c.b16 %v4468, %v4467
    %v4536 = vpack.c.b16 %v4470, %v4469
    %v4537 = vpack.c.b16 %v4472, %v4471
    %v4538 = vpack.c.b16 %v4474, %v4473
    %v4539 = vpack.c.b16 %v4476, %v4475
    %v4540 = vpack.c.b16 %v4477, %v4477
    %vm4603 = vcmask 850944
    %v4605 = vsel %vm4603, %v4098, 0
    %v4608 = vsel %vm74, %v4540, 0
    %4610 = vmatpush.bf16.msra.mxu0 %v4485
    %4611 = vmatpush.bf16.msra.mxu0 %v4484
    %4612 = vmatpush.bf16.msra.mxu0 %v4483
    %4613 = vmatpush.bf16.msra.mxu0 %v4482
    %4614 = vmatpush.bf16.msra.mxu0 %v4481
    %4615 = vmatpush.bf16.msra.mxu0 %v4480
    %4616 = vmatpush.bf16.msra.mxu0 %v4479
    %4617 = vmatpush.bf16.msra.mxu0 %v4478
    %4618 = vmatmul.bf16.gmra.mxu0 %v4091
    %v4619 = vpop.f32.mrf.mxu0
    %v4620 = vadd.f32 %v4226, %v4619
    %v4621 = vpop.f32.mrf.mxu0
    %4622 = vdwg.mxu0
    %4623 = vmatpush.bf16.msra.mxu0 %v4493
    %4624 = vmatpush.bf16.msra.mxu0 %v4492
    %4625 = vmatpush.bf16.msra.mxu0 %v4491
    %4626 = vmatpush.bf16.msra.mxu0 %v4490
    %4627 = vmatpush.bf16.msra.mxu0 %v4489
    %4628 = vmatpush.bf16.msra.mxu0 %v4488
    %4629 = vmatpush.bf16.msra.mxu0 %v4487
    %4630 = vmatpush.bf16.msra.mxu0 %v4486
    %4631 = vmatmul.bf16.gmra.mxu0 %v4092
    %v4632 = vpop.f32.mrf.mxu0
    %v4633 = vadd.f32 %v4620, %v4632
    %v4634 = vpop.f32.mrf.mxu0
    %4635 = vdwg.mxu0
    %4636 = vmatpush.bf16.msra.mxu0 %v4501
    %4637 = vmatpush.bf16.msra.mxu0 %v4500
    %4638 = vmatpush.bf16.msra.mxu0 %v4499
    %4639 = vmatpush.bf16.msra.mxu0 %v4498
    %4640 = vmatpush.bf16.msra.mxu0 %v4497
    %4641 = vmatpush.bf16.msra.mxu0 %v4496
    %4642 = vmatpush.bf16.msra.mxu0 %v4495
    %4643 = vmatpush.bf16.msra.mxu0 %v4494
    %4644 = vmatmul.bf16.gmra.mxu0 %v4093
    %v4645 = vpop.f32.mrf.mxu0
    %v4646 = vadd.f32 %v4633, %v4645
    %v4647 = vpop.f32.mrf.mxu0
    %4648 = vdwg.mxu0
    %4649 = vmatpush.bf16.msra.mxu0 %v4509
    %4650 = vmatpush.bf16.msra.mxu0 %v4508
    %4651 = vmatpush.bf16.msra.mxu0 %v4507
    %4652 = vmatpush.bf16.msra.mxu0 %v4506
    %4653 = vmatpush.bf16.msra.mxu0 %v4505
    %4654 = vmatpush.bf16.msra.mxu0 %v4504
    %4655 = vmatpush.bf16.msra.mxu0 %v4503
    %4656 = vmatpush.bf16.msra.mxu0 %v4502
    %4657 = vmatmul.bf16.gmra.mxu0 %v4094
    %v4658 = vpop.f32.mrf.mxu0
    %v4659 = vadd.f32 %v4646, %v4658
    %v4660 = vpop.f32.mrf.mxu0
    %4661 = vdwg.mxu0
    %4662 = vmatpush.bf16.msra.mxu0 %v4517
    %4663 = vmatpush.bf16.msra.mxu0 %v4516
    %4664 = vmatpush.bf16.msra.mxu0 %v4515
    %4665 = vmatpush.bf16.msra.mxu0 %v4514
    %4666 = vmatpush.bf16.msra.mxu0 %v4513
    %4667 = vmatpush.bf16.msra.mxu0 %v4512
    %4668 = vmatpush.bf16.msra.mxu0 %v4511
    %4669 = vmatpush.bf16.msra.mxu0 %v4510
    %4670 = vmatmul.bf16.gmra.mxu0 %v4095
    %v4671 = vpop.f32.mrf.mxu0
    %v4672 = vadd.f32 %v4659, %v4671
    %v4673 = vpop.f32.mrf.mxu0
    %4674 = vdwg.mxu0
    %4675 = vmatpush.bf16.msra.mxu0 %v4525
    %4676 = vmatpush.bf16.msra.mxu0 %v4524
    %4677 = vmatpush.bf16.msra.mxu0 %v4523
    %4678 = vmatpush.bf16.msra.mxu0 %v4522
    %4679 = vmatpush.bf16.msra.mxu0 %v4521
    %4680 = vmatpush.bf16.msra.mxu0 %v4520
    %4681 = vmatpush.bf16.msra.mxu0 %v4519
    %4682 = vmatpush.bf16.msra.mxu0 %v4518
    %4683 = vmatmul.bf16.gmra.mxu0 %v4096
    %v4684 = vpop.f32.mrf.mxu0
    %v4685 = vadd.f32 %v4672, %v4684
    %v4686 = vpop.f32.mrf.mxu0
    %4687 = vdwg.mxu0
    %4688 = vmatpush.bf16.msra.mxu0 %v4533
    %4689 = vmatpush.bf16.msra.mxu0 %v4532
    %4690 = vmatpush.bf16.msra.mxu0 %v4531
    %4691 = vmatpush.bf16.msra.mxu0 %v4530
    %4692 = vmatpush.bf16.msra.mxu0 %v4529
    %4693 = vmatpush.bf16.msra.mxu0 %v4528
    %4694 = vmatpush.bf16.msra.mxu0 %v4527
    %4695 = vmatpush.bf16.msra.mxu0 %v4526
    %4696 = vmatmul.bf16.gmra.mxu0 %v4097
    %v4697 = vpop.f32.mrf.mxu0
    %v4698 = vadd.f32 %v4685, %v4697
    %v4699 = vpop.f32.mrf.mxu0
    %4700 = vdwg.mxu0
    %4701 = vmatpush.bf16.msra.mxu0 0
    %4702 = vmatpush.bf16.msra.mxu0 %v4608
    %4703 = vmatpush.bf16.msra.mxu0 %v4539
    %4704 = vmatpush.bf16.msra.mxu0 %v4538
    %4705 = vmatpush.bf16.msra.mxu0 %v4537
    %4706 = vmatpush.bf16.msra.mxu0 %v4536
    %4707 = vmatpush.bf16.msra.mxu0 %v4535
    %4708 = vmatpush.bf16.msra.mxu0 %v4534
    %4709 = vmatmul.bf16.gmra.mxu0 %v4605
    %v4710 = vpop.f32.mrf.mxu0
    %v4711 = vadd.f32 %v4698, %v4710
    %v4712 = vpop.f32.mrf.mxu0
    %4713 = vdwg.mxu0
    %vm4714 = vcmask 74752
    %4715 = vst.msk [vmem:[#allocation2] sm:$0x3] %vm4714, %v4711
    // Predicated region
    $region30: #{l0_model_cnn_forward.5} parent=1 // pred_check
      _
    $region31: #{l0_model_cnn_forward.5} parent=1 // pred_check_branch
      %4717 = sbr.rel (0) target = $region33
    $region32: #{l0_model_cnn_forward.5} parent=1 // pred_region
      %4719 = vsyncadd [#allocation3], 0
      %s4721 = sshll.u32 [#allocation2], 4
      %s4722 = int_to_ptr.vmem [resolvable:$true] %s4721
      %s4723 = sshll.u32 %s7, 4
      %s4724 = int_to_ptr.hbm [resolvable:$true] %s4723
      %4726 = dma.vmem_to_hbm [thread:$0]  %s4722, 32, %s4724, [#allocation3]
    $region33: #{l0_model_cnn_forward.5} parent=1 // pred_fallthru
      _
    // Predicated region
    $region34: #{l0_model_cnn_forward.5} parent=1 // pred_check
      _
    $region35: #{l0_model_cnn_forward.5} parent=1 // pred_check_branch
      %4728 = sbr.rel (0) target = $region37
    $region36: #{l0_model_cnn_forward.5} parent=1 // pred_region
      %4730 = dma.done [#allocation3], 32
    $region37: #{l0_model_cnn_forward.5} parent=1 // pred_fallthru
      _
    %4731 = vsyncpa [#allocation3], 1

</llo_original>
